<compile_context>
chip_gen: v6e
topology: v6e:2x2x1
jax: 0.10.0
libtpu: 0.0.40
codegen_flags: <defaults>
</compile_context>

<pallas_src>
import functools
import math

import numpy as np
import jax
import jax.numpy as jnp
from jax import lax
from jax.experimental import pallas as pl
from jax.experimental.pallas import tpu as pltpu

TRAIN_SIZE = 352
BN_EPS = 1e-5
_INV_SQRT2 = 0.7071067811865476


# ------------------------------- GELU ----------------------------------------

def _erf_poly(z):
    # Abramowitz & Stegun 7.1.26 (|err| < 1.5e-7). Uses only +,*,/ and exp so it
    # is guaranteed to lower through Mosaic (lax.erf support is not relied on
    # inside the kernel).
    az = jnp.abs(z)
    t = 1.0 / (1.0 + 0.3275911 * az)
    poly = t * (0.254829592 + t * (-0.284496736 + t * (1.421413741
               + t * (-1.453152027 + t * 1.061405429))))
    e = 1.0 - poly * jnp.exp(-az * az)
    return jnp.where(z < 0, -e, e)


def _gelu(x):
    # PyTorch nn.GELU() default (exact, erf-based); erf via A&S polynomial.
    return 0.5 * x * (1.0 + _erf_poly(x * _INV_SQRT2))


def _gelu_exact(x):
    # Pure-JAX reference path (true erf).
    return 0.5 * x * (1.0 + lax.erf(x * _INV_SQRT2))


# --------------------- static geometry (host-side numpy, cached) -------------

def _bilinear_matrix_np(n_in, n_out):
    """1-D interpolation matrix (n_out, n_in); bilinear, align_corners=True."""
    if n_out == 1 or n_in == 1:
        a = np.zeros((n_out, n_in), np.float32)
        a[:, 0] = 1.0
        return a
    src = np.arange(n_out, dtype=np.float64) * (n_in - 1) / (n_out - 1)
    i0 = np.clip(np.floor(src).astype(np.int64), 0, n_in - 1)
    i1 = np.clip(i0 + 1, 0, n_in - 1)
    frac = (src - i0).astype(np.float32)
    a = np.zeros((n_out, n_in), np.float32)
    rows = np.arange(n_out)
    np.add.at(a, (rows, i0), (1.0 - frac).astype(np.float32))
    np.add.at(a, (rows, i1), frac.astype(np.float32))
    return a


@functools.lru_cache(maxsize=None)
def _interp_geometry(H, W, H2, W2):
    """Shape-dependent constant operands; numpy ONLY (safe to cache)."""
    M = H * W
    ah_up = _bilinear_matrix_np(H2, H)            # (H, H2)
    aw_up = _bilinear_matrix_np(W2, W)            # (W, W2)
    # Kronecker x2-upsample operator, transposed: (H2*W2, H*W)
    up_t = np.einsum('hp,wq->pqhw', ah_up, aw_up).reshape(H2 * W2, M)
    up_t = np.ascontiguousarray(up_t.astype(np.float32))

    ah_full = _bilinear_matrix_np(H, TRAIN_SIZE)  # (352, H)
    aw_full = _bilinear_matrix_np(W, TRAIN_SIZE)  # (352, W)

    # Fused unflatten + resize operators: pred = (RH * p) @ CW
    r = np.arange(M)
    hh, ww = r // W, r % W
    rh = np.ascontiguousarray(ah_full[:, hh])     # (352, M): RH[i,m]=A_h[i, m//W]
    cw = np.ascontiguousarray(aw_full[:, ww].T)   # (M, 352): CW[m,j]=A_w[j, m%W]

    return dict(up_t=up_t, rh=rh, cw=cw,
                ah_up=ah_up, aw_up=aw_up, ah_full=ah_full, aw_full=aw_full)


@functools.lru_cache(maxsize=None)
def _tap_masks(H, W, bpb):
    """Per-tap zero-padding validity masks, tiled per image: (9, 1, bpb*H*W)."""
    M = H * W
    r = np.arange(M)
    hh, ww = r // W, r % W
    masks = np.zeros((9, 1, M), np.float32)
    for t, (dy, dx) in enumerate([(dy, dx) for dy in range(3) for dx in range(3)]):
        valid = ((hh + dy - 1 >= 0) & (hh + dy - 1 < H)
                 & (ww + dx - 1 >= 0) & (ww + dx - 1 < W))
        masks[t, 0] = valid.astype(np.float32)
    return np.ascontiguousarray(np.tile(masks, (1, 1, bpb)))


def _pick_batch_block(B, M, M2, requested=None, cap=8):
    """Images per grid step; lane blocks must stay 128-aligned (or cover B)."""
    if requested is not None:
        assert B % requested == 0
        return requested
    best = None
    for d in range(1, min(B, cap) + 1):
        if B % d == 0 and (d * M) % 128 == 0 and (d * M2) % 128 == 0:
            best = d
    return best if best is not None else B


# ------------------------------ parameters -----------------------------------

def init_params(key, inc, outc):
    ks = jax.random.split(key, 4)

    def conv_init(k, cout, cin, ksz):
        fan_out = ksz * ksz * cout                 # matches MCM._init_weights
        std = math.sqrt(2.0 / fan_out)
        w = jax.random.normal(k, (cout, cin, ksz, ksz), jnp.float32) * std
        return w, jnp.zeros((cout,), jnp.float32)

    def bn_default(c):
        return (jnp.ones((c,), jnp.float32), jnp.zeros((c,), jnp.float32),
                jnp.zeros((c,), jnp.float32), jnp.ones((c,), jnp.float32))

    def fold_bn(w, b, gamma, beta, mean, var, eps=BN_EPS):
        scale = gamma / jnp.sqrt(var + eps)
        return w * scale[:, None, None, None], (b - mean) * scale + beta

    def stack_w(w_oihw):
        # (O, I, 3, 3) -> (O, 9*I), column index = (dy*3+dx)*I + cin  (tap-major)
        cout, cin = w_oihw.shape[0], w_oihw.shape[1]
        return jnp.transpose(w_oihw, (0, 2, 3, 1)).reshape(cout, 9 * cin)

    rc_w, rc_b = conv_init(ks[0], outc, inc, 3)
    rc2_w, rc2_b = conv_init(ks[1], outc, 2 * outc, 3)
    pt3_w, pt3_b = conv_init(ks[2], outc, outc, 3)
    pt1_w, pt1_b = conv_init(ks[3], 1, outc, 1)

    rc_wf, rc_bf = fold_bn(rc_w, rc_b, *bn_default(outc))
    rc2_wf, rc2_bf = fold_bn(rc2_w, rc2_b, *bn_default(outc))
    pt3_wf, pt3_bf = fold_bn(pt3_w, pt3_b, *bn_default(outc))

    return {
        # fused (Cout, 9*Cin) matmul form for the Pallas kernel
        'rc_w': stack_w(rc_wf), 'rc_b': rc_bf.reshape(outc, 1),
        'rc2_w': stack_w(rc2_wf), 'rc2_b': rc2_bf.reshape(outc, 1),
        'pt3_w': stack_w(pt3_wf), 'pt3_b': pt3_bf.reshape(outc, 1),
        'pt1_w': pt1_w[:, :, 0, 0].reshape(1, outc),
        'pt1_b': pt1_b.reshape(1, 1),
        # folded OIHW form for the pure-JAX reference
        'rc_w_oihw': rc_wf, 'rc_b_vec': rc_bf,
        'rc2_w_oihw': rc2_wf, 'rc2_b_vec': rc2_bf,
        'pt3_w_oihw': pt3_wf, 'pt3_b_vec': pt3_bf,
        'pt1_w_oihw': pt1_w, 'pt1_b_vec': pt1_b,
    }


# ------------------------------ fused kernel ----------------------------------

def _make_mcm_kernel(H, W, H2, W2, inc, outc, bpb):
    M, M2 = H * W, H2 * W2
    N = bpb * M
    shifts = [(dy - 1) * W + (dx - 1) for dy in range(3) for dx in range(3)]

    def stack_taps(x, masks):
        # x: (Cin, N) -> (9*Cin, N). Row block t holds, at lane m, the value of
        # x at the (dy,dx) neighbour of pixel m (zero outside its own image).
        # Masking the rolled INPUT is equivalent to masking the per-tap output
        # and also makes the cross-image lane wrap of the roll harmless.
        rows = []
        for t, s in enumerate(shifts):
            if s == 0:
                rows.append(x)                       # centre tap: mask all-ones
            else:
                rows.append(pltpu.roll(x, (-s) % N, axis=1) * masks[t])
        return jnp.concatenate(rows, axis=0)

    def kernel(x1_ref, x2_ref, up_ref, rcw_ref, rcb_ref, rc2w_ref, rc2b_ref,
               pt3w_ref, pt3b_ref, pt1w_ref, pt1b_ref, masks_ref,
               rh_ref, cw_ref, pred_ref, xf_ref):
        masks = masks_ref[...]                       # (9, 1, N)
        x1 = x1_ref[...]                             # (outc, N)

        # upsample2(x2): x2 bilinear, align_corners=True == per-image matmul
        up = up_ref[...]                             # (M2, M)
        x2 = x2_ref[...]                             # (inc, bpb*M2)
        x2_up = jnp.concatenate(
            [jnp.dot(x2[:, b * M2:(b + 1) * M2], up,
                     preferred_element_type=jnp.float32)
             for b in range(bpb)], axis=1)           # (inc, N)

        # rc: fused 9-tap conv3x3 (+folded BN) + GELU -- one MXU dot
        x2_rc = _gelu(jnp.dot(rcw_ref[...], stack_taps(x2_up, masks),
                              preferred_element_type=jnp.float32)
                      + rcb_ref[...])                # (outc, N)

        # rc2 on cat(x1, x2_rc): one dot, fused shortcut + mul epilogue
        xcat = jnp.concatenate([x1, x2_rc], axis=0)  # (2*outc, N)
        xf = _gelu(jnp.dot(rc2w_ref[...], stack_taps(xcat, masks),
                           preferred_element_type=jnp.float32)
                   + rc2b_ref[...])
        xf = xf + x2_rc + x1 * x2_rc                 # (outc, N)
        for b in range(bpb):
            xf_ref[b] = xf[:, b * M:(b + 1) * M].astype(xf_ref.dtype)

        # predtrans: conv3x3+BN+GELU (one dot), then 1x1 conv -> (1, N)
        h3 = _gelu(jnp.dot(pt3w_ref[...], stack_taps(xf, masks),
                           preferred_element_type=jnp.float32)
                   + pt3b_ref[...])
        p = (jnp.dot(pt1w_ref[...], h3, preferred_element_type=jnp.float32)
             + pt1b_ref[0, 0])                       # (1, N)

        # fused unflatten + bilinear resize to 352x352: pred_b = (RH * p_b) @ CW
        rh = rh_ref[...]                             # (352, M)
        cw = cw_ref[...]                             # (M, 352)
        for b in range(bpb):
            pb = p[:, b * M:(b + 1) * M]             # (1, M)
            pred_ref[b] = jnp.dot(rh * pb, cw,
                                  preferred_element_type=jnp.float32
                                  ).astype(pred_ref.dtype)

    return kernel


def mcm_forward(params, x1_nchw, x2_nchw, batch_block=None):
    B, outc, H, W = x1_nchw.shape
    _, inc, H2, W2 = x2_nchw.shape
    assert H == 2 * H2 and W == 2 * W2, "x1 must be the 2x-resolution of x2"
    M, M2 = H * W, H2 * W2

    bpb = _pick_batch_block(B, M, M2, batch_block)
    n_blocks = B // bpb

    g = _interp_geometry(H, W, H2, W2)               # numpy constants
    masks = _tap_masks(H, W, bpb)                    # numpy constants

    # Lane-dense layout: channels on sublanes, (image, pixel) folded into lanes.
    x1f = jnp.transpose(x1_nchw, (1, 0, 2, 3)).reshape(outc, B * M)
    x2f = jnp.transpose(x2_nchw, (1, 0, 2, 3)).reshape(inc, B * M2)

    kernel = _make_mcm_kernel(H, W, H2, W2, inc, outc, bpb)

    def const_spec(arr):
        nd = arr.ndim
        return pl.BlockSpec(arr.shape, lambda i, _nd=nd: (0,) * _nd)

    pred, xf = pl.pallas_call(
        kernel,
        out_shape=(jax.ShapeDtypeStruct((B, TRAIN_SIZE, TRAIN_SIZE), jnp.float32),
                   jax.ShapeDtypeStruct((B, outc, M), jnp.float32)),
        grid=(n_blocks,),
        in_specs=[
            pl.BlockSpec((outc, bpb * M), lambda i: (0, i)),        # x1
            pl.BlockSpec((inc, bpb * M2), lambda i: (0, i)),        # x2
            const_spec(g['up_t']),                                  # upsample op
            const_spec(params['rc_w']), const_spec(params['rc_b']),
            const_spec(params['rc2_w']), const_spec(params['rc2_b']),
            const_spec(params['pt3_w']), const_spec(params['pt3_b']),
            const_spec(params['pt1_w']),
            pl.BlockSpec(memory_space=pltpu.MemorySpace.SMEM),      # pt1 bias
            const_spec(masks),                                      # tap masks
            const_spec(g['rh']),                                    # RH (352, M)
            const_spec(g['cw']),                                    # CW (M, 352)
        ],
        out_specs=(pl.BlockSpec((bpb, TRAIN_SIZE, TRAIN_SIZE),
                                lambda i: (i, 0, 0)),
                   pl.BlockSpec((bpb, outc, M), lambda i: (i, 0, 0))),
        compiler_params=pltpu.CompilerParams(
            dimension_semantics=("parallel",),
            vmem_limit_bytes=64 * 1024 * 1024),
    )(x1f, x2f, g['up_t'],
      params['rc_w'], params['rc_b'], params['rc2_w'], params['rc2_b'],
      params['pt3_w'], params['pt3_b'], params['pt1_w'], params['pt1_b'],
      masks, g['rh'], g['cw'])

    return (pred.reshape(B, 1, TRAIN_SIZE, TRAIN_SIZE),
            xf.reshape(B, outc, H, W))


# ----------------------------- pure-JAX reference -----------------------------

def _ref_conv(x, w, b, pad):
    y = lax.conv_general_dilated(x, w, (1, 1), ((pad, pad), (pad, pad)),
                                 dimension_numbers=('NCHW', 'OIHW', 'NCHW'),
                                 precision=lax.Precision.HIGHEST)
    return y + b[None, :, None, None]


def reference_forward(params, x1, x2):
    B, outc, H, W = x1.shape
    _, inc, H2, W2 = x2.shape
    g = _interp_geometry(H, W, H2, W2)
    hi = lax.Precision.HIGHEST
    x2u = jnp.einsum('oh,bchw,pw->bcop', g['ah_up'], x2, g['aw_up'], precision=hi)
    x2rc = _gelu_exact(_ref_conv(x2u, params['rc_w_oihw'], params['rc_b_vec'], 1))
    xcat = jnp.concatenate([x1, x2rc], axis=1)
    xf = (_gelu_exact(_ref_conv(xcat, params['rc2_w_oihw'], params['rc2_b_vec'], 1))
          + x2rc + x1 * x2rc)
    h = _gelu_exact(_ref_conv(xf, params['pt3_w_oihw'], params['pt3_b_vec'], 1))
    p = _ref_conv(h, params['pt1_w_oihw'], params['pt1_b_vec'], 0)
    pred = jnp.einsum('oh,bchw,pw->bcop', g['ah_full'], p, g['aw_full'],
                      precision=hi)
    return pred, xf


# ----------------------------------- main --------------------------------------

if __name__ == "__main__":
    B, inc, outc, H, W = 2, 8, 4, 16, 16
    key = jax.random.PRNGKey(0)
    kp, k1, k2 = jax.random.split(key, 3)

    params = init_params(kp, inc, outc)
    x1 = jax.random.normal(k1, (B, outc, H, W), jnp.float32)
    x2 = jax.random.normal(k2, (B, inc, H // 2, W // 2), jnp.float32)

    fwd = jax.jit(mcm_forward)
    pred, x_forward = jax.block_until_ready(fwd(params, x1, x2))

    pred_ref, xf_ref = reference_forward(params, x1, x2)
    assert pred.shape == (B, 1, TRAIN_SIZE, TRAIN_SIZE)
    assert x_forward.shape == (B, outc, H, W)
    # 5e-3 tolerance covers MXU pass-precision differences while still catching
    # any algorithmic mismatch (f32 accumulate everywhere).
    assert jnp.allclose(x_forward, xf_ref, atol=5e-3, rtol=5e-3), (
        float(jnp.max(jnp.abs(x_forward - xf_ref))))
    assert jnp.allclose(pred, pred_ref, atol=5e-3, rtol=5e-3), (
        float(jnp.max(jnp.abs(pred - pred_ref))))

    print("KERNEL_OK")
</pallas_src>

<mosaic_0001>
module attributes {stable_mosaic.version = 11 : i64} {
  func.func @kernel(%arg0: i32, %arg1: memref<4x512xf32, #tpu.memory_space<vmem>>, %arg2: memref<8x128xf32, #tpu.memory_space<vmem>>, %arg3: memref<64x256xf32, #tpu.memory_space<vmem>>, %arg4: memref<4x72xf32, #tpu.memory_space<vmem>>, %arg5: memref<4x1xf32, #tpu.memory_space<vmem>>, %arg6: memref<4x72xf32, #tpu.memory_space<vmem>>, %arg7: memref<4x1xf32, #tpu.memory_space<vmem>>, %arg8: memref<4x36xf32, #tpu.memory_space<vmem>>, %arg9: memref<4x1xf32, #tpu.memory_space<vmem>>, %arg10: memref<1x4xf32, #tpu.memory_space<vmem>>, %arg11: memref<1x1xf32, #tpu.memory_space<smem>>, %arg12: memref<9x1x512xf32, #tpu.memory_space<vmem>>, %arg13: memref<352x256xf32, #tpu.memory_space<vmem>>, %arg14: memref<256x352xf32, #tpu.memory_space<vmem>>, %arg15: memref<2x352x352xf32, #tpu.memory_space<vmem>>, %arg16: memref<2x4x256xf32, #tpu.memory_space<vmem>>) attributes {dimension_semantics = [#tpu.dimension_semantics<parallel>], iteration_bounds = array<i64: 1>, scalar_prefetch = 0 : i64, scratch_operands = 0 : i64, tpu.core_type = #tpu.core_type<tc>, window_params = [{transform_indices = @transform_0, window_bounds = array<i64: 4, 512>}, {transform_indices = @transform_1, window_bounds = array<i64: 8, 128>}, {pipeline_mode = #tpu.pipeline_mode<synchronous>, transform_indices = @transform_2, window_bounds = array<i64: 64, 256>}, {pipeline_mode = #tpu.pipeline_mode<synchronous>, transform_indices = @transform_3, window_bounds = array<i64: 4, 72>}, {pipeline_mode = #tpu.pipeline_mode<synchronous>, transform_indices = @transform_4, window_bounds = array<i64: 4, 1>}, {pipeline_mode = #tpu.pipeline_mode<synchronous>, transform_indices = @transform_5, window_bounds = array<i64: 4, 72>}, {pipeline_mode = #tpu.pipeline_mode<synchronous>, transform_indices = @transform_6, window_bounds = array<i64: 4, 1>}, {pipeline_mode = #tpu.pipeline_mode<synchronous>, transform_indices = @transform_7, window_bounds = array<i64: 4, 36>}, {pipeline_mode = #tpu.pipeline_mode<synchronous>, transform_indices = @transform_8, window_bounds = array<i64: 4, 1>}, {pipeline_mode = #tpu.pipeline_mode<synchronous>, transform_indices = @transform_9, window_bounds = array<i64: 1, 4>}, {transform_indices = @transform_10, window_bounds = array<i64: 1, 1>}, {pipeline_mode = #tpu.pipeline_mode<synchronous>, transform_indices = @transform_11, window_bounds = array<i64: 9, 1, 512>}, {pipeline_mode = #tpu.pipeline_mode<synchronous>, transform_indices = @transform_12, window_bounds = array<i64: 352, 256>}, {pipeline_mode = #tpu.pipeline_mode<synchronous>, transform_indices = @transform_13, window_bounds = array<i64: 256, 352>}, {transform_indices = @transform_14, window_bounds = array<i64: 2, 352, 352>}, {transform_indices = @transform_15, window_bounds = array<i64: 2, 4, 256>}]} {
    %c0 = arith.constant 0 : index
    %c0_0 = arith.constant 0 : index
    %c0_1 = arith.constant 0 : index
    %0 = vector.load %arg12[%c0, %c0_0, %c0_1] : memref<9x1x512xf32, #tpu.memory_space<vmem>>, vector<9x1x512xf32>
    %c0_2 = arith.constant 0 : index
    %c0_3 = arith.constant 0 : index
    %1 = vector.load %arg1[%c0_2, %c0_3] : memref<4x512xf32, #tpu.memory_space<vmem>>, vector<4x512xf32>
    %c0_4 = arith.constant 0 : index
    %c0_5 = arith.constant 0 : index
    %2 = vector.load %arg3[%c0_4, %c0_5] : memref<64x256xf32, #tpu.memory_space<vmem>>, vector<64x256xf32>
    %c0_6 = arith.constant 0 : index
    %c0_7 = arith.constant 0 : index
    %3 = vector.load %arg2[%c0_6, %c0_7] : memref<8x128xf32, #tpu.memory_space<vmem>>, vector<8x128xf32>
    %4 = vector.extract_strided_slice %3 {offsets = [0, 0], sizes = [8, 64], strides = [1, 1]} : vector<8x128xf32> to vector<8x64xf32>
    %cst = arith.constant dense<0.000000e+00> : vector<8x256xf32>
    %5 = tpu.matmul %4, %2, %cst {dimension_numbers = #tpu.dot_dimension_numbers<[1], [0], [0], [1], [0, 0, 1, 1], [], []>} : vector<8x64xf32>, vector<64x256xf32>, vector<8x256xf32> -> vector<8x256xf32>
    %6 = vector.extract_strided_slice %3 {offsets = [0, 64], sizes = [8, 64], strides = [1, 1]} : vector<8x128xf32> to vector<8x64xf32>
    %cst_8 = arith.constant dense<0.000000e+00> : vector<8x256xf32>
    %7 = tpu.matmul %6, %2, %cst_8 {dimension_numbers = #tpu.dot_dimension_numbers<[1], [0], [0], [1], [0, 0, 1, 1], [], []>} : vector<8x64xf32>, vector<64x256xf32>, vector<8x256xf32> -> vector<8x256xf32>
    %8 = tpu.concatenate %5, %7 in 1 : vector<8x256xf32>, vector<8x256xf32> -> vector<8x512xf32>
    %c0_9 = arith.constant 0 : index
    %c0_10 = arith.constant 0 : index
    %9 = vector.load %arg4[%c0_9, %c0_10] : memref<4x72xf32, #tpu.memory_space<vmem>>, vector<4x72xf32>
    %c17_i32 = arith.constant 17 : i32
    %10 = tpu.dynamic_rotate %8 by %c17_i32 dim 1 : vector<8x512xf32>, i32 -> vector<8x512xf32>
    %11 = vector.extract_strided_slice %0 {offsets = [0, 0, 0], sizes = [1, 1, 512], strides = [1, 1, 1]} : vector<9x1x512xf32> to vector<1x1x512xf32>
    %12 = vector.shape_cast %11 : vector<1x1x512xf32> to vector<1x512xf32>
    %13 = vector.broadcast %12 : vector<1x512xf32> to vector<8x512xf32>
    %14 = arith.mulf %10, %13 : vector<8x512xf32>
    %c16_i32 = arith.constant 16 : i32
    %15 = tpu.dynamic_rotate %8 by %c16_i32 dim 1 : vector<8x512xf32>, i32 -> vector<8x512xf32>
    %16 = vector.extract_strided_slice %0 {offsets = [1, 0, 0], sizes = [1, 1, 512], strides = [1, 1, 1]} : vector<9x1x512xf32> to vector<1x1x512xf32>
    %17 = vector.shape_cast %16 : vector<1x1x512xf32> to vector<1x512xf32>
    %18 = vector.broadcast %17 : vector<1x512xf32> to vector<8x512xf32>
    %19 = arith.mulf %15, %18 : vector<8x512xf32>
    %c15_i32 = arith.constant 15 : i32
    %20 = tpu.dynamic_rotate %8 by %c15_i32 dim 1 : vector<8x512xf32>, i32 -> vector<8x512xf32>
    %21 = vector.extract_strided_slice %0 {offsets = [2, 0, 0], sizes = [1, 1, 512], strides = [1, 1, 1]} : vector<9x1x512xf32> to vector<1x1x512xf32>
    %22 = vector.shape_cast %21 : vector<1x1x512xf32> to vector<1x512xf32>
    %23 = vector.broadcast %22 : vector<1x512xf32> to vector<8x512xf32>
    %24 = arith.mulf %20, %23 : vector<8x512xf32>
    %c1_i32 = arith.constant 1 : i32
    %25 = tpu.dynamic_rotate %8 by %c1_i32 dim 1 : vector<8x512xf32>, i32 -> vector<8x512xf32>
    %26 = vector.extract_strided_slice %0 {offsets = [3, 0, 0], sizes = [1, 1, 512], strides = [1, 1, 1]} : vector<9x1x512xf32> to vector<1x1x512xf32>
    %27 = vector.shape_cast %26 : vector<1x1x512xf32> to vector<1x512xf32>
    %28 = vector.broadcast %27 : vector<1x512xf32> to vector<8x512xf32>
    %29 = arith.mulf %25, %28 : vector<8x512xf32>
    %c511_i32 = arith.constant 511 : i32
    %30 = tpu.dynamic_rotate %8 by %c511_i32 dim 1 : vector<8x512xf32>, i32 -> vector<8x512xf32>
    %31 = vector.extract_strided_slice %0 {offsets = [5, 0, 0], sizes = [1, 1, 512], strides = [1, 1, 1]} : vector<9x1x512xf32> to vector<1x1x512xf32>
    %32 = vector.shape_cast %31 : vector<1x1x512xf32> to vector<1x512xf32>
    %33 = vector.broadcast %32 : vector<1x512xf32> to vector<8x512xf32>
    %34 = arith.mulf %30, %33 : vector<8x512xf32>
    %c497_i32 = arith.constant 497 : i32
    %35 = tpu.dynamic_rotate %8 by %c497_i32 dim 1 : vector<8x512xf32>, i32 -> vector<8x512xf32>
    %36 = vector.extract_strided_slice %0 {offsets = [6, 0, 0], sizes = [1, 1, 512], strides = [1, 1, 1]} : vector<9x1x512xf32> to vector<1x1x512xf32>
    %37 = vector.shape_cast %36 : vector<1x1x512xf32> to vector<1x512xf32>
    %38 = vector.broadcast %37 : vector<1x512xf32> to vector<8x512xf32>
    %39 = arith.mulf %35, %38 : vector<8x512xf32>
    %c496_i32 = arith.constant 496 : i32
    %40 = tpu.dynamic_rotate %8 by %c496_i32 dim 1 : vector<8x512xf32>, i32 -> vector<8x512xf32>
    %41 = vector.extract_strided_slice %0 {offsets = [7, 0, 0], sizes = [1, 1, 512], strides = [1, 1, 1]} : vector<9x1x512xf32> to vector<1x1x512xf32>
    %42 = vector.shape_cast %41 : vector<1x1x512xf32> to vector<1x512xf32>
    %43 = vector.broadcast %42 : vector<1x512xf32> to vector<8x512xf32>
    %44 = arith.mulf %40, %43 : vector<8x512xf32>
    %c495_i32 = arith.constant 495 : i32
    %45 = tpu.dynamic_rotate %8 by %c495_i32 dim 1 : vector<8x512xf32>, i32 -> vector<8x512xf32>
    %46 = vector.extract_strided_slice %0 {offsets = [8, 0, 0], sizes = [1, 1, 512], strides = [1, 1, 1]} : vector<9x1x512xf32> to vector<1x1x512xf32>
    %47 = vector.shape_cast %46 : vector<1x1x512xf32> to vector<1x512xf32>
    %48 = vector.broadcast %47 : vector<1x512xf32> to vector<8x512xf32>
    %49 = arith.mulf %45, %48 : vector<8x512xf32>
    %50 = tpu.concatenate %14, %19, %24, %29, %8, %34, %39, %44, %49 in 0 : vector<8x512xf32>, vector<8x512xf32>, vector<8x512xf32>, vector<8x512xf32>, vector<8x512xf32>, vector<8x512xf32>, vector<8x512xf32>, vector<8x512xf32>, vector<8x512xf32> -> vector<72x512xf32>
    %cst_11 = arith.constant dense<0.000000e+00> : vector<4x512xf32>
    %51 = tpu.matmul %9, %50, %cst_11 {dimension_numbers = #tpu.dot_dimension_numbers<[1], [0], [0], [1], [0, 0, 1, 1], [], []>} : vector<4x72xf32>, vector<72x512xf32>, vector<4x512xf32> -> vector<4x512xf32>
    %c0_12 = arith.constant 0 : index
    %c0_13 = arith.constant 0 : index
    %52 = vector.load %arg5[%c0_12, %c0_13] : memref<4x1xf32, #tpu.memory_space<vmem>>, vector<4x1xf32>
    %53 = vector.broadcast %52 : vector<4x1xf32> to vector<4x512xf32>
    %54 = arith.addf %51, %53 : vector<4x512xf32>
    %cst_14 = arith.constant 5.000000e-01 : f32
    %55 = vector.broadcast %cst_14 : f32 to vector<4x512xf32>
    %56 = arith.mulf %55, %54 : vector<4x512xf32>
    %cst_15 = arith.constant 0.707106769 : f32
    %57 = vector.broadcast %cst_15 : f32 to vector<4x512xf32>
    %58 = arith.mulf %54, %57 : vector<4x512xf32>
    %59 = math.absf %58 : vector<4x512xf32>
    %cst_16 = arith.constant 0.327591091 : f32
    %60 = vector.broadcast %cst_16 : f32 to vector<4x512xf32>
    %61 = arith.mulf %60, %59 : vector<4x512xf32>
    %cst_17 = arith.constant 1.000000e+00 : f32
    %62 = vector.broadcast %cst_17 : f32 to vector<4x512xf32>
    %63 = arith.addf %62, %61 : vector<4x512xf32>
    %cst_18 = arith.constant 1.000000e+00 : f32
    %64 = vector.broadcast %cst_18 : f32 to vector<4x512xf32>
    %65 = arith.divf %64, %63 : vector<4x512xf32>
    %cst_19 = arith.constant 1.06140542 : f32
    %66 = vector.broadcast %cst_19 : f32 to vector<4x512xf32>
    %67 = arith.mulf %65, %66 : vector<4x512xf32>
    %cst_20 = arith.constant -1.45315206 : f32
    %68 = vector.broadcast %cst_20 : f32 to vector<4x512xf32>
    %69 = arith.addf %68, %67 : vector<4x512xf32>
    %70 = arith.mulf %65, %69 : vector<4x512xf32>
    %cst_21 = arith.constant 1.42141378 : f32
    %71 = vector.broadcast %cst_21 : f32 to vector<4x512xf32>
    %72 = arith.addf %71, %70 : vector<4x512xf32>
    %73 = arith.mulf %65, %72 : vector<4x512xf32>
    %cst_22 = arith.constant -0.284496725 : f32
    %74 = vector.broadcast %cst_22 : f32 to vector<4x512xf32>
    %75 = arith.addf %74, %73 : vector<4x512xf32>
    %76 = arith.mulf %65, %75 : vector<4x512xf32>
    %cst_23 = arith.constant 0.254829586 : f32
    %77 = vector.broadcast %cst_23 : f32 to vector<4x512xf32>
    %78 = arith.addf %77, %76 : vector<4x512xf32>
    %79 = arith.mulf %65, %78 : vector<4x512xf32>
    %cst_24 = arith.constant 0.000000e+00 : f32
    %80 = vector.broadcast %cst_24 : f32 to vector<4x512xf32>
    %81 = arith.subf %80, %59 : vector<4x512xf32>
    %82 = arith.mulf %81, %59 : vector<4x512xf32>
    %83 = math.exp %82 : vector<4x512xf32>
    %84 = arith.mulf %79, %83 : vector<4x512xf32>
    %cst_25 = arith.constant 1.000000e+00 : f32
    %85 = vector.broadcast %cst_25 : f32 to vector<4x512xf32>
    %86 = arith.subf %85, %84 : vector<4x512xf32>
    %cst_26 = arith.constant 0.000000e+00 : f32
    %87 = vector.broadcast %cst_26 : f32 to vector<4x512xf32>
    %88 = arith.cmpf olt, %58, %87 : vector<4x512xf32>
    %cst_27 = arith.constant 0.000000e+00 : f32
    %89 = vector.broadcast %cst_27 : f32 to vector<4x512xf32>
    %90 = arith.subf %89, %86 : vector<4x512xf32>
    %91 = arith.select %88, %90, %86 : vector<4x512xi1>, vector<4x512xf32>
    %cst_28 = arith.constant 1.000000e+00 : f32
    %92 = vector.broadcast %cst_28 : f32 to vector<4x512xf32>
    %93 = arith.addf %92, %91 : vector<4x512xf32>
    %94 = arith.mulf %56, %93 : vector<4x512xf32>
    %95 = tpu.concatenate %1, %94 in 0 : vector<4x512xf32>, vector<4x512xf32> -> vector<8x512xf32>
    %c0_29 = arith.constant 0 : index
    %c0_30 = arith.constant 0 : index
    %96 = vector.load %arg6[%c0_29, %c0_30] : memref<4x72xf32, #tpu.memory_space<vmem>>, vector<4x72xf32>
    %c17_i32_31 = arith.constant 17 : i32
    %97 = tpu.dynamic_rotate %95 by %c17_i32_31 dim 1 : vector<8x512xf32>, i32 -> vector<8x512xf32>
    %98 = vector.extract_strided_slice %0 {offsets = [0, 0, 0], sizes = [1, 1, 512], strides = [1, 1, 1]} : vector<9x1x512xf32> to vector<1x1x512xf32>
    %99 = vector.shape_cast %98 : vector<1x1x512xf32> to vector<1x512xf32>
    %100 = vector.broadcast %99 : vector<1x512xf32> to vector<8x512xf32>
    %101 = arith.mulf %97, %100 : vector<8x512xf32>
    %c16_i32_32 = arith.constant 16 : i32
    %102 = tpu.dynamic_rotate %95 by %c16_i32_32 dim 1 : vector<8x512xf32>, i32 -> vector<8x512xf32>
    %103 = vector.extract_strided_slice %0 {offsets = [1, 0, 0], sizes = [1, 1, 512], strides = [1, 1, 1]} : vector<9x1x512xf32> to vector<1x1x512xf32>
    %104 = vector.shape_cast %103 : vector<1x1x512xf32> to vector<1x512xf32>
    %105 = vector.broadcast %104 : vector<1x512xf32> to vector<8x512xf32>
    %106 = arith.mulf %102, %105 : vector<8x512xf32>
    %c15_i32_33 = arith.constant 15 : i32
    %107 = tpu.dynamic_rotate %95 by %c15_i32_33 dim 1 : vector<8x512xf32>, i32 -> vector<8x512xf32>
    %108 = vector.extract_strided_slice %0 {offsets = [2, 0, 0], sizes = [1, 1, 512], strides = [1, 1, 1]} : vector<9x1x512xf32> to vector<1x1x512xf32>
    %109 = vector.shape_cast %108 : vector<1x1x512xf32> to vector<1x512xf32>
    %110 = vector.broadcast %109 : vector<1x512xf32> to vector<8x512xf32>
    %111 = arith.mulf %107, %110 : vector<8x512xf32>
    %c1_i32_34 = arith.constant 1 : i32
    %112 = tpu.dynamic_rotate %95 by %c1_i32_34 dim 1 : vector<8x512xf32>, i32 -> vector<8x512xf32>
    %113 = vector.extract_strided_slice %0 {offsets = [3, 0, 0], sizes = [1, 1, 512], strides = [1, 1, 1]} : vector<9x1x512xf32> to vector<1x1x512xf32>
    %114 = vector.shape_cast %113 : vector<1x1x512xf32> to vector<1x512xf32>
    %115 = vector.broadcast %114 : vector<1x512xf32> to vector<8x512xf32>
    %116 = arith.mulf %112, %115 : vector<8x512xf32>
    %c511_i32_35 = arith.constant 511 : i32
    %117 = tpu.dynamic_rotate %95 by %c511_i32_35 dim 1 : vector<8x512xf32>, i32 -> vector<8x512xf32>
    %118 = vector.extract_strided_slice %0 {offsets = [5, 0, 0], sizes = [1, 1, 512], strides = [1, 1, 1]} : vector<9x1x512xf32> to vector<1x1x512xf32>
    %119 = vector.shape_cast %118 : vector<1x1x512xf32> to vector<1x512xf32>
    %120 = vector.broadcast %119 : vector<1x512xf32> to vector<8x512xf32>
    %121 = arith.mulf %117, %120 : vector<8x512xf32>
    %c497_i32_36 = arith.constant 497 : i32
    %122 = tpu.dynamic_rotate %95 by %c497_i32_36 dim 1 : vector<8x512xf32>, i32 -> vector<8x512xf32>
    %123 = vector.extract_strided_slice %0 {offsets = [6, 0, 0], sizes = [1, 1, 512], strides = [1, 1, 1]} : vector<9x1x512xf32> to vector<1x1x512xf32>
    %124 = vector.shape_cast %123 : vector<1x1x512xf32> to vector<1x512xf32>
    %125 = vector.broadcast %124 : vector<1x512xf32> to vector<8x512xf32>
    %126 = arith.mulf %122, %125 : vector<8x512xf32>
    %c496_i32_37 = arith.constant 496 : i32
    %127 = tpu.dynamic_rotate %95 by %c496_i32_37 dim 1 : vector<8x512xf32>, i32 -> vector<8x512xf32>
    %128 = vector.extract_strided_slice %0 {offsets = [7, 0, 0], sizes = [1, 1, 512], strides = [1, 1, 1]} : vector<9x1x512xf32> to vector<1x1x512xf32>
    %129 = vector.shape_cast %128 : vector<1x1x512xf32> to vector<1x512xf32>
    %130 = vector.broadcast %129 : vector<1x512xf32> to vector<8x512xf32>
    %131 = arith.mulf %127, %130 : vector<8x512xf32>
    %c495_i32_38 = arith.constant 495 : i32
    %132 = tpu.dynamic_rotate %95 by %c495_i32_38 dim 1 : vector<8x512xf32>, i32 -> vector<8x512xf32>
    %133 = vector.extract_strided_slice %0 {offsets = [8, 0, 0], sizes = [1, 1, 512], strides = [1, 1, 1]} : vector<9x1x512xf32> to vector<1x1x512xf32>
    %134 = vector.shape_cast %133 : vector<1x1x512xf32> to vector<1x512xf32>
    %135 = vector.broadcast %134 : vector<1x512xf32> to vector<8x512xf32>
    %136 = arith.mulf %132, %135 : vector<8x512xf32>
    %137 = tpu.concatenate %101, %106, %111, %116, %95, %121, %126, %131, %136 in 0 : vector<8x512xf32>, vector<8x512xf32>, vector<8x512xf32>, vector<8x512xf32>, vector<8x512xf32>, vector<8x512xf32>, vector<8x512xf32>, vector<8x512xf32>, vector<8x512xf32> -> vector<72x512xf32>
    %cst_39 = arith.constant dense<0.000000e+00> : vector<4x512xf32>
    %138 = tpu.matmul %96, %137, %cst_39 {dimension_numbers = #tpu.dot_dimension_numbers<[1], [0], [0], [1], [0, 0, 1, 1], [], []>} : vector<4x72xf32>, vector<72x512xf32>, vector<4x512xf32> -> vector<4x512xf32>
    %c0_40 = arith.constant 0 : index
    %c0_41 = arith.constant 0 : index
    %139 = vector.load %arg7[%c0_40, %c0_41] : memref<4x1xf32, #tpu.memory_space<vmem>>, vector<4x1xf32>
    %140 = vector.broadcast %139 : vector<4x1xf32> to vector<4x512xf32>
    %141 = arith.addf %138, %140 : vector<4x512xf32>
    %cst_42 = arith.constant 5.000000e-01 : f32
    %142 = vector.broadcast %cst_42 : f32 to vector<4x512xf32>
    %143 = arith.mulf %142, %141 : vector<4x512xf32>
    %cst_43 = arith.constant 0.707106769 : f32
    %144 = vector.broadcast %cst_43 : f32 to vector<4x512xf32>
    %145 = arith.mulf %141, %144 : vector<4x512xf32>
    %146 = math.absf %145 : vector<4x512xf32>
    %cst_44 = arith.constant 0.327591091 : f32
    %147 = vector.broadcast %cst_44 : f32 to vector<4x512xf32>
    %148 = arith.mulf %147, %146 : vector<4x512xf32>
    %cst_45 = arith.constant 1.000000e+00 : f32
    %149 = vector.broadcast %cst_45 : f32 to vector<4x512xf32>
    %150 = arith.addf %149, %148 : vector<4x512xf32>
    %cst_46 = arith.constant 1.000000e+00 : f32
    %151 = vector.broadcast %cst_46 : f32 to vector<4x512xf32>
    %152 = arith.divf %151, %150 : vector<4x512xf32>
    %cst_47 = arith.constant 1.06140542 : f32
    %153 = vector.broadcast %cst_47 : f32 to vector<4x512xf32>
    %154 = arith.mulf %152, %153 : vector<4x512xf32>
    %cst_48 = arith.constant -1.45315206 : f32
    %155 = vector.broadcast %cst_48 : f32 to vector<4x512xf32>
    %156 = arith.addf %155, %154 : vector<4x512xf32>
    %157 = arith.mulf %152, %156 : vector<4x512xf32>
    %cst_49 = arith.constant 1.42141378 : f32
    %158 = vector.broadcast %cst_49 : f32 to vector<4x512xf32>
    %159 = arith.addf %158, %157 : vector<4x512xf32>
    %160 = arith.mulf %152, %159 : vector<4x512xf32>
    %cst_50 = arith.constant -0.284496725 : f32
    %161 = vector.broadcast %cst_50 : f32 to vector<4x512xf32>
    %162 = arith.addf %161, %160 : vector<4x512xf32>
    %163 = arith.mulf %152, %162 : vector<4x512xf32>
    %cst_51 = arith.constant 0.254829586 : f32
    %164 = vector.broadcast %cst_51 : f32 to vector<4x512xf32>
    %165 = arith.addf %164, %163 : vector<4x512xf32>
    %166 = arith.mulf %152, %165 : vector<4x512xf32>
    %cst_52 = arith.constant 0.000000e+00 : f32
    %167 = vector.broadcast %cst_52 : f32 to vector<4x512xf32>
    %168 = arith.subf %167, %146 : vector<4x512xf32>
    %169 = arith.mulf %168, %146 : vector<4x512xf32>
    %170 = math.exp %169 : vector<4x512xf32>
    %171 = arith.mulf %166, %170 : vector<4x512xf32>
    %cst_53 = arith.constant 1.000000e+00 : f32
    %172 = vector.broadcast %cst_53 : f32 to vector<4x512xf32>
    %173 = arith.subf %172, %171 : vector<4x512xf32>
    %cst_54 = arith.constant 0.000000e+00 : f32
    %174 = vector.broadcast %cst_54 : f32 to vector<4x512xf32>
    %175 = arith.cmpf olt, %145, %174 : vector<4x512xf32>
    %cst_55 = arith.constant 0.000000e+00 : f32
    %176 = vector.broadcast %cst_55 : f32 to vector<4x512xf32>
    %177 = arith.subf %176, %173 : vector<4x512xf32>
    %178 = arith.select %175, %177, %173 : vector<4x512xi1>, vector<4x512xf32>
    %cst_56 = arith.constant 1.000000e+00 : f32
    %179 = vector.broadcast %cst_56 : f32 to vector<4x512xf32>
    %180 = arith.addf %179, %178 : vector<4x512xf32>
    %181 = arith.mulf %143, %180 : vector<4x512xf32>
    %182 = arith.addf %181, %94 : vector<4x512xf32>
    %183 = arith.mulf %1, %94 : vector<4x512xf32>
    %184 = arith.addf %182, %183 : vector<4x512xf32>
    %185 = vector.extract_strided_slice %184 {offsets = [0, 0], sizes = [4, 256], strides = [1, 1]} : vector<4x512xf32> to vector<4x256xf32>
    %c0_57 = arith.constant 0 : index
    %c0_58 = arith.constant 0 : index
    %c0_59 = arith.constant 0 : index
    %186 = vector.load %arg16[%c0_57, %c0_58, %c0_59] : memref<2x4x256xf32, #tpu.memory_space<vmem>>, vector<1x4x256xf32>
    %187 = vector.shape_cast %186 : vector<1x4x256xf32> to vector<4x256xf32>
    %188 = vector.shape_cast %185 : vector<4x256xf32> to vector<1x4x256xf32>
    tpu.vector_store %arg16[%c0_57, %c0_58, %c0_59], %188 {strides = array<i32>} : memref<2x4x256xf32, #tpu.memory_space<vmem>>, vector<1x4x256xf32>,
    %189 = vector.extract_strided_slice %184 {offsets = [0, 256], sizes = [4, 256], strides = [1, 1]} : vector<4x512xf32> to vector<4x256xf32>
    %c1 = arith.constant 1 : index
    %c0_60 = arith.constant 0 : index
    %c0_61 = arith.constant 0 : index
    %190 = vector.load %arg16[%c1, %c0_60, %c0_61] : memref<2x4x256xf32, #tpu.memory_space<vmem>>, vector<1x4x256xf32>
    %191 = vector.shape_cast %190 : vector<1x4x256xf32> to vector<4x256xf32>
    %192 = vector.shape_cast %189 : vector<4x256xf32> to vector<1x4x256xf32>
    tpu.vector_store %arg16[%c1, %c0_60, %c0_61], %192 {strides = array<i32>} : memref<2x4x256xf32, #tpu.memory_space<vmem>>, vector<1x4x256xf32>,
    %c0_62 = arith.constant 0 : index
    %c0_63 = arith.constant 0 : index
    %193 = vector.load %arg8[%c0_62, %c0_63] : memref<4x36xf32, #tpu.memory_space<vmem>>, vector<4x36xf32>
    %c17_i32_64 = arith.constant 17 : i32
    %194 = tpu.dynamic_rotate %184 by %c17_i32_64 dim 1 : vector<4x512xf32>, i32 -> vector<4x512xf32>
    %195 = vector.extract_strided_slice %0 {offsets = [0, 0, 0], sizes = [1, 1, 512], strides = [1, 1, 1]} : vector<9x1x512xf32> to vector<1x1x512xf32>
    %196 = vector.shape_cast %195 : vector<1x1x512xf32> to vector<1x512xf32>
    %197 = vector.broadcast %196 : vector<1x512xf32> to vector<4x512xf32>
    %198 = arith.mulf %194, %197 : vector<4x512xf32>
    %c16_i32_65 = arith.constant 16 : i32
    %199 = tpu.dynamic_rotate %184 by %c16_i32_65 dim 1 : vector<4x512xf32>, i32 -> vector<4x512xf32>
    %200 = vector.extract_strided_slice %0 {offsets = [1, 0, 0], sizes = [1, 1, 512], strides = [1, 1, 1]} : vector<9x1x512xf32> to vector<1x1x512xf32>
    %201 = vector.shape_cast %200 : vector<1x1x512xf32> to vector<1x512xf32>
    %202 = vector.broadcast %201 : vector<1x512xf32> to vector<4x512xf32>
    %203 = arith.mulf %199, %202 : vector<4x512xf32>
    %c15_i32_66 = arith.constant 15 : i32
    %204 = tpu.dynamic_rotate %184 by %c15_i32_66 dim 1 : vector<4x512xf32>, i32 -> vector<4x512xf32>
    %205 = vector.extract_strided_slice %0 {offsets = [2, 0, 0], sizes = [1, 1, 512], strides = [1, 1, 1]} : vector<9x1x512xf32> to vector<1x1x512xf32>
    %206 = vector.shape_cast %205 : vector<1x1x512xf32> to vector<1x512xf32>
    %207 = vector.broadcast %206 : vector<1x512xf32> to vector<4x512xf32>
    %208 = arith.mulf %204, %207 : vector<4x512xf32>
    %c1_i32_67 = arith.constant 1 : i32
    %209 = tpu.dynamic_rotate %184 by %c1_i32_67 dim 1 : vector<4x512xf32>, i32 -> vector<4x512xf32>
    %210 = vector.extract_strided_slice %0 {offsets = [3, 0, 0], sizes = [1, 1, 512], strides = [1, 1, 1]} : vector<9x1x512xf32> to vector<1x1x512xf32>
    %211 = vector.shape_cast %210 : vector<1x1x512xf32> to vector<1x512xf32>
    %212 = vector.broadcast %211 : vector<1x512xf32> to vector<4x512xf32>
    %213 = arith.mulf %209, %212 : vector<4x512xf32>
    %c511_i32_68 = arith.constant 511 : i32
    %214 = tpu.dynamic_rotate %184 by %c511_i32_68 dim 1 : vector<4x512xf32>, i32 -> vector<4x512xf32>
    %215 = vector.extract_strided_slice %0 {offsets = [5, 0, 0], sizes = [1, 1, 512], strides = [1, 1, 1]} : vector<9x1x512xf32> to vector<1x1x512xf32>
    %216 = vector.shape_cast %215 : vector<1x1x512xf32> to vector<1x512xf32>
    %217 = vector.broadcast %216 : vector<1x512xf32> to vector<4x512xf32>
    %218 = arith.mulf %214, %217 : vector<4x512xf32>
    %c497_i32_69 = arith.constant 497 : i32
    %219 = tpu.dynamic_rotate %184 by %c497_i32_69 dim 1 : vector<4x512xf32>, i32 -> vector<4x512xf32>
    %220 = vector.extract_strided_slice %0 {offsets = [6, 0, 0], sizes = [1, 1, 512], strides = [1, 1, 1]} : vector<9x1x512xf32> to vector<1x1x512xf32>
    %221 = vector.shape_cast %220 : vector<1x1x512xf32> to vector<1x512xf32>
    %222 = vector.broadcast %221 : vector<1x512xf32> to vector<4x512xf32>
    %223 = arith.mulf %219, %222 : vector<4x512xf32>
    %c496_i32_70 = arith.constant 496 : i32
    %224 = tpu.dynamic_rotate %184 by %c496_i32_70 dim 1 : vector<4x512xf32>, i32 -> vector<4x512xf32>
    %225 = vector.extract_strided_slice %0 {offsets = [7, 0, 0], sizes = [1, 1, 512], strides = [1, 1, 1]} : vector<9x1x512xf32> to vector<1x1x512xf32>
    %226 = vector.shape_cast %225 : vector<1x1x512xf32> to vector<1x512xf32>
    %227 = vector.broadcast %226 : vector<1x512xf32> to vector<4x512xf32>
    %228 = arith.mulf %224, %227 : vector<4x512xf32>
    %c495_i32_71 = arith.constant 495 : i32
    %229 = tpu.dynamic_rotate %184 by %c495_i32_71 dim 1 : vector<4x512xf32>, i32 -> vector<4x512xf32>
    %230 = vector.extract_strided_slice %0 {offsets = [8, 0, 0], sizes = [1, 1, 512], strides = [1, 1, 1]} : vector<9x1x512xf32> to vector<1x1x512xf32>
    %231 = vector.shape_cast %230 : vector<1x1x512xf32> to vector<1x512xf32>
    %232 = vector.broadcast %231 : vector<1x512xf32> to vector<4x512xf32>
    %233 = arith.mulf %229, %232 : vector<4x512xf32>
    %234 = tpu.concatenate %198, %203, %208, %213, %184, %218, %223, %228, %233 in 0 : vector<4x512xf32>, vector<4x512xf32>, vector<4x512xf32>, vector<4x512xf32>, vector<4x512xf32>, vector<4x512xf32>, vector<4x512xf32>, vector<4x512xf32>, vector<4x512xf32> -> vector<36x512xf32>
    %cst_72 = arith.constant dense<0.000000e+00> : vector<4x512xf32>
    %235 = tpu.matmul %193, %234, %cst_72 {dimension_numbers = #tpu.dot_dimension_numbers<[1], [0], [0], [1], [0, 0, 1, 1], [], []>} : vector<4x36xf32>, vector<36x512xf32>, vector<4x512xf32> -> vector<4x512xf32>
    %c0_73 = arith.constant 0 : index
    %c0_74 = arith.constant 0 : index
    %236 = vector.load %arg9[%c0_73, %c0_74] : memref<4x1xf32, #tpu.memory_space<vmem>>, vector<4x1xf32>
    %237 = vector.broadcast %236 : vector<4x1xf32> to vector<4x512xf32>
    %238 = arith.addf %235, %237 : vector<4x512xf32>
    %cst_75 = arith.constant 5.000000e-01 : f32
    %239 = vector.broadcast %cst_75 : f32 to vector<4x512xf32>
    %240 = arith.mulf %239, %238 : vector<4x512xf32>
    %cst_76 = arith.constant 0.707106769 : f32
    %241 = vector.broadcast %cst_76 : f32 to vector<4x512xf32>
    %242 = arith.mulf %238, %241 : vector<4x512xf32>
    %243 = math.absf %242 : vector<4x512xf32>
    %cst_77 = arith.constant 0.327591091 : f32
    %244 = vector.broadcast %cst_77 : f32 to vector<4x512xf32>
    %245 = arith.mulf %244, %243 : vector<4x512xf32>
    %cst_78 = arith.constant 1.000000e+00 : f32
    %246 = vector.broadcast %cst_78 : f32 to vector<4x512xf32>
    %247 = arith.addf %246, %245 : vector<4x512xf32>
    %cst_79 = arith.constant 1.000000e+00 : f32
    %248 = vector.broadcast %cst_79 : f32 to vector<4x512xf32>
    %249 = arith.divf %248, %247 : vector<4x512xf32>
    %cst_80 = arith.constant 1.06140542 : f32
    %250 = vector.broadcast %cst_80 : f32 to vector<4x512xf32>
    %251 = arith.mulf %249, %250 : vector<4x512xf32>
    %cst_81 = arith.constant -1.45315206 : f32
    %252 = vector.broadcast %cst_81 : f32 to vector<4x512xf32>
    %253 = arith.addf %252, %251 : vector<4x512xf32>
    %254 = arith.mulf %249, %253 : vector<4x512xf32>
    %cst_82 = arith.constant 1.42141378 : f32
    %255 = vector.broadcast %cst_82 : f32 to vector<4x512xf32>
    %256 = arith.addf %255, %254 : vector<4x512xf32>
    %257 = arith.mulf %249, %256 : vector<4x512xf32>
    %cst_83 = arith.constant -0.284496725 : f32
    %258 = vector.broadcast %cst_83 : f32 to vector<4x512xf32>
    %259 = arith.addf %258, %257 : vector<4x512xf32>
    %260 = arith.mulf %249, %259 : vector<4x512xf32>
    %cst_84 = arith.constant 0.254829586 : f32
    %261 = vector.broadcast %cst_84 : f32 to vector<4x512xf32>
    %262 = arith.addf %261, %260 : vector<4x512xf32>
    %263 = arith.mulf %249, %262 : vector<4x512xf32>
    %cst_85 = arith.constant 0.000000e+00 : f32
    %264 = vector.broadcast %cst_85 : f32 to vector<4x512xf32>
    %265 = arith.subf %264, %243 : vector<4x512xf32>
    %266 = arith.mulf %265, %243 : vector<4x512xf32>
    %267 = math.exp %266 : vector<4x512xf32>
    %268 = arith.mulf %263, %267 : vector<4x512xf32>
    %cst_86 = arith.constant 1.000000e+00 : f32
    %269 = vector.broadcast %cst_86 : f32 to vector<4x512xf32>
    %270 = arith.subf %269, %268 : vector<4x512xf32>
    %cst_87 = arith.constant 0.000000e+00 : f32
    %271 = vector.broadcast %cst_87 : f32 to vector<4x512xf32>
    %272 = arith.cmpf olt, %242, %271 : vector<4x512xf32>
    %cst_88 = arith.constant 0.000000e+00 : f32
    %273 = vector.broadcast %cst_88 : f32 to vector<4x512xf32>
    %274 = arith.subf %273, %270 : vector<4x512xf32>
    %275 = arith.select %272, %274, %270 : vector<4x512xi1>, vector<4x512xf32>
    %cst_89 = arith.constant 1.000000e+00 : f32
    %276 = vector.broadcast %cst_89 : f32 to vector<4x512xf32>
    %277 = arith.addf %276, %275 : vector<4x512xf32>
    %278 = arith.mulf %240, %277 : vector<4x512xf32>
    %c0_90 = arith.constant 0 : index
    %c0_91 = arith.constant 0 : index
    %279 = vector.load %arg10[%c0_90, %c0_91] : memref<1x4xf32, #tpu.memory_space<vmem>>, vector<1x4xf32>
    %cst_92 = arith.constant dense<0.000000e+00> : vector<1x512xf32>
    %280 = tpu.matmul %279, %278, %cst_92 {dimension_numbers = #tpu.dot_dimension_numbers<[1], [0], [0], [1], [0, 0, 1, 1], [], []>} : vector<1x4xf32>, vector<4x512xf32>, vector<1x512xf32> -> vector<1x512xf32>
    %c0_93 = arith.constant 0 : index
    %c0_94 = arith.constant 0 : index
    %281 = memref.load %arg11[%c0_93, %c0_94] : memref<1x1xf32, #tpu.memory_space<smem>>
    %282 = vector.broadcast %281 : f32 to vector<1x512xf32>
    %283 = arith.addf %280, %282 : vector<1x512xf32>
    %c0_95 = arith.constant 0 : index
    %c0_96 = arith.constant 0 : index
    %284 = vector.load %arg13[%c0_95, %c0_96] : memref<352x256xf32, #tpu.memory_space<vmem>>, vector<352x256xf32>
    %c0_97 = arith.constant 0 : index
    %c0_98 = arith.constant 0 : index
    %285 = vector.load %arg14[%c0_97, %c0_98] : memref<256x352xf32, #tpu.memory_space<vmem>>, vector<256x352xf32>
    %286 = vector.extract_strided_slice %283 {offsets = [0, 0], sizes = [1, 256], strides = [1, 1]} : vector<1x512xf32> to vector<1x256xf32>
    %287 = vector.broadcast %286 : vector<1x256xf32> to vector<352x256xf32>
    %288 = arith.mulf %284, %287 : vector<352x256xf32>
    %cst_99 = arith.constant dense<0.000000e+00> : vector<352x352xf32>
    %289 = tpu.matmul %288, %285, %cst_99 {dimension_numbers = #tpu.dot_dimension_numbers<[1], [0], [0], [1], [0, 0, 1, 1], [], []>} : vector<352x256xf32>, vector<256x352xf32>, vector<352x352xf32> -> vector<352x352xf32>
    %c0_100 = arith.constant 0 : index
    %c0_101 = arith.constant 0 : index
    %c0_102 = arith.constant 0 : index
    %290 = vector.load %arg15[%c0_100, %c0_101, %c0_102] : memref<2x352x352xf32, #tpu.memory_space<vmem>>, vector<1x352x352xf32>
    %291 = vector.shape_cast %290 : vector<1x352x352xf32> to vector<352x352xf32>
    %292 = vector.shape_cast %289 : vector<352x352xf32> to vector<1x352x352xf32>
    tpu.vector_store %arg15[%c0_100, %c0_101, %c0_102], %292 {strides = array<i32>} : memref<2x352x352xf32, #tpu.memory_space<vmem>>, vector<1x352x352xf32>,
    %293 = vector.extract_strided_slice %283 {offsets = [0, 256], sizes = [1, 256], strides = [1, 1]} : vector<1x512xf32> to vector<1x256xf32>
    %294 = vector.broadcast %293 : vector<1x256xf32> to vector<352x256xf32>
    %295 = arith.mulf %284, %294 : vector<352x256xf32>
    %cst_103 = arith.constant dense<0.000000e+00> : vector<352x352xf32>
    %296 = tpu.matmul %295, %285, %cst_103 {dimension_numbers = #tpu.dot_dimension_numbers<[1], [0], [0], [1], [0, 0, 1, 1], [], []>} : vector<352x256xf32>, vector<256x352xf32>, vector<352x352xf32> -> vector<352x352xf32>
    %c1_104 = arith.constant 1 : index
    %c0_105 = arith.constant 0 : index
    %c0_106 = arith.constant 0 : index
    %297 = vector.load %arg15[%c1_104, %c0_105, %c0_106] : memref<2x352x352xf32, #tpu.memory_space<vmem>>, vector<1x352x352xf32>
    %298 = vector.shape_cast %297 : vector<1x352x352xf32> to vector<352x352xf32>
    %299 = vector.shape_cast %296 : vector<352x352xf32> to vector<1x352x352xf32>
    tpu.vector_store %arg15[%c1_104, %c0_105, %c0_106], %299 {strides = array<i32>} : memref<2x352x352xf32, #tpu.memory_space<vmem>>, vector<1x352x352xf32>,
    return
  }
  func.func @transform_0(%arg0: i32) -> (i32, i32) {
    %c0_i32 = arith.constant 0 : i32
    %c0_i32_0 = arith.constant 0 : i32
    return %c0_i32, %arg0 : i32, i32
  }
  func.func @transform_1(%arg0: i32) -> (i32, i32) {
    %c0_i32 = arith.constant 0 : i32
    %c0_i32_0 = arith.constant 0 : i32
    return %c0_i32, %arg0 : i32, i32
  }
  func.func @transform_2(%arg0: i32) -> (i32, i32) {
    %c0_i32 = arith.constant 0 : i32
    %c0_i32_0 = arith.constant 0 : i32
    %c0_i32_1 = arith.constant 0 : i32
    return %c0_i32, %c0_i32_0 : i32, i32
  }
  func.func @transform_3(%arg0: i32) -> (i32, i32) {
    %c0_i32 = arith.constant 0 : i32
    %c0_i32_0 = arith.constant 0 : i32
    %c0_i32_1 = arith.constant 0 : i32
    return %c0_i32, %c0_i32_0 : i32, i32
  }
  func.func @transform_4(%arg0: i32) -> (i32, i32) {
    %c0_i32 = arith.constant 0 : i32
    %c0_i32_0 = arith.constant 0 : i32
    %c0_i32_1 = arith.constant 0 : i32
    return %c0_i32, %c0_i32_0 : i32, i32
  }
  func.func @transform_5(%arg0: i32) -> (i32, i32) {
    %c0_i32 = arith.constant 0 : i32
    %c0_i32_0 = arith.constant 0 : i32
    %c0_i32_1 = arith.constant 0 : i32
    return %c0_i32, %c0_i32_0 : i32, i32
  }
  func.func @transform_6(%arg0: i32) -> (i32, i32) {
    %c0_i32 = arith.constant 0 : i32
    %c0_i32_0 = arith.constant 0 : i32
    %c0_i32_1 = arith.constant 0 : i32
    return %c0_i32, %c0_i32_0 : i32, i32
  }
  func.func @transform_7(%arg0: i32) -> (i32, i32) {
    %c0_i32 = arith.constant 0 : i32
    %c0_i32_0 = arith.constant 0 : i32
    %c0_i32_1 = arith.constant 0 : i32
    return %c0_i32, %c0_i32_0 : i32, i32
  }
  func.func @transform_8(%arg0: i32) -> (i32, i32) {
    %c0_i32 = arith.constant 0 : i32
    %c0_i32_0 = arith.constant 0 : i32
    %c0_i32_1 = arith.constant 0 : i32
    return %c0_i32, %c0_i32_0 : i32, i32
  }
  func.func @transform_9(%arg0: i32) -> (i32, i32) {
    %c0_i32 = arith.constant 0 : i32
    %c0_i32_0 = arith.constant 0 : i32
    %c0_i32_1 = arith.constant 0 : i32
    return %c0_i32, %c0_i32_0 : i32, i32
  }
  func.func @transform_10(%arg0: i32) -> (i32, i32) {
    %c0_i32 = arith.constant 0 : i32
    %c0_i32_0 = arith.constant 0 : i32
    %c0_i32_1 = arith.constant 0 : i32
    return %c0_i32, %c0_i32_0 : i32, i32
  }
  func.func @transform_11(%arg0: i32) -> (i32, i32, i32) {
    %c0_i32 = arith.constant 0 : i32
    %c0_i32_0 = arith.constant 0 : i32
    %c0_i32_1 = arith.constant 0 : i32
    %c0_i32_2 = arith.constant 0 : i32
    return %c0_i32, %c0_i32_0, %c0_i32_1 : i32, i32, i32
  }
  func.func @transform_12(%arg0: i32) -> (i32, i32) {
    %c0_i32 = arith.constant 0 : i32
    %c0_i32_0 = arith.constant 0 : i32
    %c0_i32_1 = arith.constant 0 : i32
    return %c0_i32, %c0_i32_0 : i32, i32
  }
  func.func @transform_13(%arg0: i32) -> (i32, i32) {
    %c0_i32 = arith.constant 0 : i32
    %c0_i32_0 = arith.constant 0 : i32
    %c0_i32_1 = arith.constant 0 : i32
    return %c0_i32, %c0_i32_0 : i32, i32
  }
  func.func @transform_14(%arg0: i32) -> (i32, i32, i32) {
    %c0_i32 = arith.constant 0 : i32
    %c0_i32_0 = arith.constant 0 : i32
    %c0_i32_1 = arith.constant 0 : i32
    return %arg0, %c0_i32, %c0_i32_0 : i32, i32, i32
  }
  func.func @transform_15(%arg0: i32) -> (i32, i32, i32) {
    %c0_i32 = arith.constant 0 : i32
    %c0_i32_0 = arith.constant 0 : i32
    %c0_i32_1 = arith.constant 0 : i32
    return %arg0, %c0_i32, %c0_i32_0 : i32, i32, i32
  }
}

</mosaic_0001>

<llo_original>
// kernel: mcm_forward.1
$region0: #{mcm_forward.1}
  #allocation0 [shape = 'u32[]', space=smem, size = 0x4, offset = 0x4, fixed_abs, tag = 'smem constant byte address 0x4 - core index']
  #allocation1 [shape = 'u32[144,128]{1,0:T(1,128)}', space=vmem, size = 0x12000, scoped, tag = 'internal scratch']
  #allocation2 [shape = 'f32[1,1]{1,0:T(1,128)S(6)}', space=smem, size = 0x200, scoped, tag = 'scoped memory for mcm_forward.1']
  %s0 = inlined_call_operand.vmem [shape: f32[4,512], index: 0, kind: input, shape index: {}]
  %s1 = inlined_call_operand.vmem [shape: f32[8,128], index: 1, kind: input, shape index: {}]
  %s2 = inlined_call_operand.hbm [shape: f32[64,256], index: 2, kind: input, shape index: {}]
  %s3 = inlined_call_operand.hbm [shape: f32[4,72], index: 3, kind: input, shape index: {}]
  %s4 = inlined_call_operand.vmem [shape: f32[4,1], index: 4, kind: input, shape index: {}]
  %s5 = inlined_call_operand.hbm [shape: f32[4,72], index: 5, kind: input, shape index: {}]
  %s6 = inlined_call_operand.vmem [shape: f32[4,1], index: 6, kind: input, shape index: {}]
  %s7 = inlined_call_operand.hbm [shape: f32[4,36], index: 7, kind: input, shape index: {}]
  %s8 = inlined_call_operand.vmem [shape: f32[4,1], index: 8, kind: input, shape index: {}]
  %s9 = inlined_call_operand.hbm [shape: f32[1,4], index: 9, kind: input, shape index: {}]
  %s10 = inlined_call_operand.<no memory space> [shape: f32[1,1], index: 10, kind: input, shape index: {}]
  %s11 = inlined_call_operand.hbm [shape: f32[9,1,512], index: 11, kind: input, shape index: {}]
  %s12 = inlined_call_operand.hbm [shape: f32[352,256], index: 12, kind: input, shape index: {}]
  %s13 = inlined_call_operand.hbm [shape: f32[256,352], index: 13, kind: input, shape index: {}]
  %s14 = inlined_call_operand.hbm [shape: f32[2,352,352], index: 14, kind: output, shape index: {0}]
  %s15 = inlined_call_operand.vmem [shape: f32[2,4,256], index: 15, kind: output, shape index: {1}]
  %16 = xla_tuple %s14, %s15
  %s17 = sld [smem:[#allocation0]]
  $region106: #{mcm_forward.1} parent=0
    _
  %s19 = ssub.s32 1, %s17
  %s20 = scalar_select 0, %s19, %s17
  %21 = sst [smem:[#allocation2]] %s10
  $region1: #{mcm_forward.1} parent=0
    #allocation3 [shape = 'u8[65536]{0}', space=vmem, size = 0x10000, scoped, tag = 'input window, operand 2, single buffered']
    #allocation4 [shape = 's32[1]{0}', space=sflag, size = 0x4, scoped, tag = 'scoped memory for mcm_forward.1']
    #allocation5 [shape = 's32[1]{0}', space=sflag, size = 0x4, scoped, tag = 'scoped memory for mcm_forward.1']
    #allocation6 [shape = 'u8[2048]{0}', space=vmem, size = 0x800, scoped, tag = 'input window, operand 3, single buffered']
    #allocation7 [shape = 's32[1]{0}', space=sflag, size = 0x4, scoped, tag = 'scoped memory for mcm_forward.1']
    #allocation8 [shape = 'u8[2048]{0}', space=vmem, size = 0x800, scoped, tag = 'input window, operand 5, single buffered']
    #allocation9 [shape = 'u8[2048]{0}', space=vmem, size = 0x800, scoped, tag = 'input window, operand 7, single buffered']
    #allocation10 [shape = 's32[1]{0}', space=sflag, size = 0x4, scoped, tag = 'scoped memory for mcm_forward.1']
    #allocation11 [shape = 'u8[512]{0}', space=vmem, size = 0x400, scoped, tag = 'input window, operand 9, single buffered']
    #allocation12 [shape = 'u8[18432]{0}', space=vmem, size = 0x4800, scoped, tag = 'input window, operand 11, single buffered']
    #allocation13 [shape = 's32[1]{0}', space=sflag, size = 0x4, scoped, tag = 'scoped memory for mcm_forward.1']
    #allocation14 [shape = 'u8[360448]{0}', space=vmem, size = 0x58000, scoped, tag = 'input window, operand 12, single buffered']
    #allocation15 [shape = 'u8[393216]{0}', space=vmem, size = 0x60000, scoped, tag = 'input window, operand 13, single buffered']
    #allocation16 [shape = 's32[1]{0}', space=sflag, size = 0x4, scoped, tag = 'scoped memory for mcm_forward.1']
    #allocation17 [shape = 'u8[1081344]{0}', space=vmem, size = 0x108000, scoped, tag = 'output window, operand 0, single buffered']
    %22 = vsyncpa [#allocation4], 0
    %23 = vsyncpa [#allocation7], 0
    %24 = vsyncpa [#allocation10], 0
    %25 = vsyncpa [#allocation13], 0
    %26 = vsyncpa [#allocation16], 0
    %27 = vsyncpa [#allocation5], 0
    // Predicated region
    $region2: #{mcm_forward.1} parent=1 // pred_check
      _
    $region3: #{mcm_forward.1} parent=1 // pred_check_branch
      %29 = sbr.rel (0) target = $region5
    $region4: #{mcm_forward.1} parent=1 // pred_region
      _
    $region5: #{mcm_forward.1} parent=1 // pred_fallthru
      _
    // Predicated region
    $region6: #{mcm_forward.1} parent=1 // pred_check
      _
    $region7: #{mcm_forward.1} parent=1 // pred_check_branch
      %31 = sbr.rel (0) target = $region9
    $region8: #{mcm_forward.1} parent=1 // pred_region
      _
    $region9: #{mcm_forward.1} parent=1 // pred_fallthru
      _
    // Predicated region
    $region10: #{mcm_forward.1} parent=1 // pred_check
      _
    $region11: #{mcm_forward.1} parent=1 // pred_check_branch
      %33 = sbr.rel (0) target = $region13
    $region12: #{mcm_forward.1} parent=1 // pred_region
      %s35 = ssub.s32 2048, 2048
      %36 = vsyncadd [#allocation4], %s35
      %s37 = sshll.u32 [#allocation3], 4
      %s38 = int_to_ptr.vmem [resolvable:$true] %s37
      %43 = dma.hbm_to_vmem [thread:$0]  %s2, 2048, %s38, [#allocation4], 256, 256, 16
    $region13: #{mcm_forward.1} parent=1 // pred_fallthru
      _
    // Predicated region
    $region14: #{mcm_forward.1} parent=1 // pred_check
      _
    $region15: #{mcm_forward.1} parent=1 // pred_check_branch
      %45 = sbr.rel (0) target = $region17
    $region16: #{mcm_forward.1} parent=1 // pred_region
      %s47 = ssub.s32 64, 64
      %48 = vsyncadd [#allocation7], %s47
      %s50 = sshll.u32 [#allocation6], 4
      %s51 = int_to_ptr.vmem [resolvable:$true] %s50
      %53 = dma.hbm_to_vmem [thread:$0]  %s3, 64, %s51, [#allocation7]
    $region17: #{mcm_forward.1} parent=1 // pred_fallthru
      _
    // Predicated region
    $region18: #{mcm_forward.1} parent=1 // pred_check
      _
    $region19: #{mcm_forward.1} parent=1 // pred_check_branch
      %55 = sbr.rel (0) target = $region21
    $region20: #{mcm_forward.1} parent=1 // pred_region
      _
    $region21: #{mcm_forward.1} parent=1 // pred_fallthru
      _
    // Predicated region
    $region22: #{mcm_forward.1} parent=1 // pred_check
      _
    $region23: #{mcm_forward.1} parent=1 // pred_check_branch
      %57 = sbr.rel (0) target = $region25
    $region24: #{mcm_forward.1} parent=1 // pred_region
      %s59 = ssub.s32 64, 64
      %60 = vsyncadd [#allocation7], %s59
      %s62 = sshll.u32 [#allocation8], 4
      %s63 = int_to_ptr.vmem [resolvable:$true] %s62
      %65 = dma.hbm_to_vmem [thread:$0]  %s5, 64, %s63, [#allocation7]
    $region25: #{mcm_forward.1} parent=1 // pred_fallthru
      _
    // Predicated region
    $region26: #{mcm_forward.1} parent=1 // pred_check
      _
    $region27: #{mcm_forward.1} parent=1 // pred_check_branch
      %67 = sbr.rel (0) target = $region29
    $region28: #{mcm_forward.1} parent=1 // pred_region
      _
    $region29: #{mcm_forward.1} parent=1 // pred_fallthru
      _
    // Predicated region
    $region30: #{mcm_forward.1} parent=1 // pred_check
      _
    $region31: #{mcm_forward.1} parent=1 // pred_check_branch
      %69 = sbr.rel (0) target = $region33
    $region32: #{mcm_forward.1} parent=1 // pred_region
      %s71 = ssub.s32 64, 64
      %72 = vsyncadd [#allocation10], %s71
      %s74 = sshll.u32 [#allocation9], 4
      %s75 = int_to_ptr.vmem [resolvable:$true] %s74
      %77 = dma.hbm_to_vmem [thread:$0]  %s7, 64, %s75, [#allocation10]
    $region33: #{mcm_forward.1} parent=1 // pred_fallthru
      _
    // Predicated region
    $region34: #{mcm_forward.1} parent=1 // pred_check
      _
    $region35: #{mcm_forward.1} parent=1 // pred_check_branch
      %79 = sbr.rel (0) target = $region37
    $region36: #{mcm_forward.1} parent=1 // pred_region
      _
    $region37: #{mcm_forward.1} parent=1 // pred_fallthru
      _
    // Predicated region
    $region38: #{mcm_forward.1} parent=1 // pred_check
      _
    $region39: #{mcm_forward.1} parent=1 // pred_check_branch
      %81 = sbr.rel (0) target = $region41
    $region40: #{mcm_forward.1} parent=1 // pred_region
      %s83 = ssub.s32 16, 16
      %84 = vsyncadd [#allocation10], %s83
      %s86 = sshll.u32 [#allocation11], 4
      %s87 = int_to_ptr.vmem [resolvable:$true] %s86
      %89 = dma.hbm_to_vmem [thread:$0]  %s9, 16, %s87, [#allocation10]
    $region41: #{mcm_forward.1} parent=1 // pred_fallthru
      _
    // Predicated region
    $region42: #{mcm_forward.1} parent=1 // pred_check
      _
    $region43: #{mcm_forward.1} parent=1 // pred_check_branch
      %91 = sbr.rel (0) target = $region45
    $region44: #{mcm_forward.1} parent=1 // pred_region
      _
    $region45: #{mcm_forward.1} parent=1 // pred_fallthru
      _
    // Predicated region
    $region46: #{mcm_forward.1} parent=1 // pred_check
      _
    $region47: #{mcm_forward.1} parent=1 // pred_check_branch
      %93 = sbr.rel (0) target = $region49
    $region48: #{mcm_forward.1} parent=1 // pred_region
      %s95 = ssub.s32 576, 576
      %96 = vsyncadd [#allocation13], %s95
      %s97 = sshll.u32 [#allocation12], 4
      %s98 = int_to_ptr.vmem [resolvable:$true] %s97
      %103 = dma.hbm_to_vmem [thread:$0]  %s11, 576, %s98, [#allocation13], 64, 64, 4
    $region49: #{mcm_forward.1} parent=1 // pred_fallthru
      _
    // Predicated region
    $region50: #{mcm_forward.1} parent=1 // pred_check
      _
    $region51: #{mcm_forward.1} parent=1 // pred_check_branch
      %105 = sbr.rel (0) target = $region53
    $region52: #{mcm_forward.1} parent=1 // pred_region
      %s107 = ssub.s32 11264, 11264
      %108 = vsyncadd [#allocation13], %s107
      %s109 = sshll.u32 [#allocation14], 4
      %s110 = int_to_ptr.vmem [resolvable:$true] %s109
      %115 = dma.hbm_to_vmem [thread:$0]  %s12, 11264, %s110, [#allocation13], 256, 256, 16
    $region53: #{mcm_forward.1} parent=1 // pred_fallthru
      _
    // Predicated region
    $region54: #{mcm_forward.1} parent=1 // pred_check
      _
    $region55: #{mcm_forward.1} parent=1 // pred_check_branch
      %117 = sbr.rel (0) target = $region57
    $region56: #{mcm_forward.1} parent=1 // pred_region
      %s119 = ssub.s32 12288, 12288
      %120 = vsyncadd [#allocation16], %s119
      %s121 = sshll.u32 [#allocation15], 4
      %s122 = int_to_ptr.vmem [resolvable:$true] %s121
      %127 = dma.hbm_to_vmem [thread:$0]  %s13, 12288, %s122, [#allocation16], 384, 384, 24
    $region57: #{mcm_forward.1} parent=1 // pred_fallthru
      _
    // Predicated region
    $region58: #{mcm_forward.1} parent=1 // pred_check
      _
    $region59: #{mcm_forward.1} parent=1 // pred_check_branch
      %129 = sbr.rel (0) target = $region61
    $region60: #{mcm_forward.1} parent=1 // pred_region
      %130 = dma.done [#allocation4], 2048
    $region61: #{mcm_forward.1} parent=1 // pred_fallthru
      _
    // Predicated region
    $region62: #{mcm_forward.1} parent=1 // pred_check
      _
    $region63: #{mcm_forward.1} parent=1 // pred_check_branch
      %132 = sbr.rel (0) target = $region65
    $region64: #{mcm_forward.1} parent=1 // pred_region
      %133 = dma.done [#allocation7], 64
    $region65: #{mcm_forward.1} parent=1 // pred_fallthru
      _
    // Predicated region
    $region66: #{mcm_forward.1} parent=1 // pred_check
      _
    $region67: #{mcm_forward.1} parent=1 // pred_check_branch
      %135 = sbr.rel (0) target = $region69
    $region68: #{mcm_forward.1} parent=1 // pred_region
      %136 = dma.done [#allocation7], 64
    $region69: #{mcm_forward.1} parent=1 // pred_fallthru
      _
    // Predicated region
    $region70: #{mcm_forward.1} parent=1 // pred_check
      _
    $region71: #{mcm_forward.1} parent=1 // pred_check_branch
      %138 = sbr.rel (0) target = $region73
    $region72: #{mcm_forward.1} parent=1 // pred_region
      %139 = dma.done [#allocation10], 64
    $region73: #{mcm_forward.1} parent=1 // pred_fallthru
      _
    // Predicated region
    $region74: #{mcm_forward.1} parent=1 // pred_check
      _
    $region75: #{mcm_forward.1} parent=1 // pred_check_branch
      %141 = sbr.rel (0) target = $region77
    $region76: #{mcm_forward.1} parent=1 // pred_region
      %142 = dma.done [#allocation10], 16
    $region77: #{mcm_forward.1} parent=1 // pred_fallthru
      _
    // Predicated region
    $region78: #{mcm_forward.1} parent=1 // pred_check
      _
    $region79: #{mcm_forward.1} parent=1 // pred_check_branch
      %144 = sbr.rel (0) target = $region81
    $region80: #{mcm_forward.1} parent=1 // pred_region
      %145 = dma.done [#allocation13], 576
    $region81: #{mcm_forward.1} parent=1 // pred_fallthru
      _
    // Predicated region
    $region82: #{mcm_forward.1} parent=1 // pred_check
      _
    $region83: #{mcm_forward.1} parent=1 // pred_check_branch
      %147 = sbr.rel (0) target = $region85
    $region84: #{mcm_forward.1} parent=1 // pred_region
      %148 = dma.done [#allocation13], 11264
    $region85: #{mcm_forward.1} parent=1 // pred_fallthru
      _
    // Predicated region
    $region86: #{mcm_forward.1} parent=1 // pred_check
      _
    $region87: #{mcm_forward.1} parent=1 // pred_check_branch
      %150 = sbr.rel (0) target = $region89
    $region88: #{mcm_forward.1} parent=1 // pred_region
      %151 = dma.done [#allocation16], 12288
    $region89: #{mcm_forward.1} parent=1 // pred_fallthru
      _
    %v152 = vld [vmem:[#allocation12] sm:$0xf]
    %v153 = vld [vmem:[#allocation12 + $0x4] sm:$0xf]
    %v154 = vld [vmem:[#allocation12 + $0x8] sm:$0xf]
    %v155 = vld [vmem:[#allocation12 + $0xc] sm:$0xf]
    %v156 = vld [vmem:[#allocation12 + $0x14] sm:$0xf]
    %v157 = vld [vmem:[#allocation12 + $0x18] sm:$0xf]
    %v158 = vld [vmem:[#allocation12 + $0x1c] sm:$0xf]
    %v159 = vld [vmem:[#allocation12 + $0x20] sm:$0xf]
    %v160 = vld [vmem:[%s0] sm:$0xff]
    %v161 = vld [vmem:[%s0 + $0x8] sm:$0xff]
    %v162 = vld [vmem:[#allocation3] sm:$0xff]
    %v163 = vld [vmem:[#allocation3 + $0x8] sm:$0xff]
    %v164 = vld [vmem:[#allocation3 + $0x10] sm:$0xff]
    %v165 = vld [vmem:[#allocation3 + $0x18] sm:$0xff]
    %v166 = vld [vmem:[#allocation3 + $0x20] sm:$0xff]
    %v167 = vld [vmem:[#allocation3 + $0x28] sm:$0xff]
    %v168 = vld [vmem:[#allocation3 + $0x30] sm:$0xff]
    %v169 = vld [vmem:[#allocation3 + $0x38] sm:$0xff]
    %v170 = vld [vmem:[#allocation3 + $0x40] sm:$0xff]
    %v171 = vld [vmem:[#allocation3 + $0x48] sm:$0xff]
    %v172 = vld [vmem:[#allocation3 + $0x50] sm:$0xff]
    %v173 = vld [vmem:[#allocation3 + $0x58] sm:$0xff]
    %v174 = vld [vmem:[#allocation3 + $0x60] sm:$0xff]
    %v175 = vld [vmem:[#allocation3 + $0x68] sm:$0xff]
    %v176 = vld [vmem:[#allocation3 + $0x70] sm:$0xff]
    %v177 = vld [vmem:[#allocation3 + $0x78] sm:$0xff]
    %v178 = vld [vmem:[%s1] sm:$0xff]
    %vm179 = vcmask 523264
    %v181 = vsel %vm179, %v178, 0
    %183 = vmatprep.subr.mxu0 0.0
    %184 = vmatpush1.msra.mxu0 0.0
    %185 = vmatprep.subr.mxu0 0.0
    %186 = vmatpush1.msra.mxu0 0.0
    %187 = vmatprep.subr.mxu0 0.0
    %188 = vmatpush1.msra.mxu0 0.0
    %189 = vmatprep.subr.mxu0 0.0
    %190 = vmatpush1.msra.mxu0 0.0
    %191 = vmatprep.subr.mxu0 0.0
    %192 = vmatpush1.msra.mxu0 0.0
    %193 = vmatprep.subr.mxu0 0.0
    %194 = vmatpush1.msra.mxu0 0.0
    %195 = vmatprep.subr.mxu0 0.0
    %196 = vmatpush1.msra.mxu0 0.0
    %197 = vmatprep.subr.mxu0 0.0
    %198 = vmatpush1.msra.mxu0 0.0
    %199 = vmatprep.subr.mxu0 %v177
    %200 = vmatpush1.msra.mxu0 %v176
    %201 = vmatprep.subr.mxu0 %v175
    %202 = vmatpush1.msra.mxu0 %v174
    %203 = vmatprep.subr.mxu0 %v173
    %204 = vmatpush1.msra.mxu0 %v172
    %205 = vmatprep.subr.mxu0 %v171
    %206 = vmatpush1.msra.mxu0 %v170
    %207 = vmatprep.subr.mxu0 %v169
    %208 = vmatpush1.msra.mxu0 %v168
    %209 = vmatprep.subr.mxu0 %v167
    %210 = vmatpush1.msra.mxu0 %v166
    %211 = vmatprep.subr.mxu0 %v165
    %212 = vmatpush1.msra.mxu0 %v164
    %213 = vmatprep.subr.mxu0 %v163
    %214 = vmatpush1.msra.mxu0 %v162
    %215 = vmatprep.subr.mxu0 0.0
    %216 = vmatpush2.msra.mxu0 0.0
    %217 = vmatprep.subr.mxu0 0.0
    %218 = vmatpush2.msra.mxu0 0.0
    %219 = vmatprep.subr.mxu0 0.0
    %220 = vmatpush2.msra.mxu0 0.0
    %221 = vmatprep.subr.mxu0 0.0
    %222 = vmatpush2.msra.mxu0 0.0
    %223 = vmatprep.subr.mxu0 0.0
    %224 = vmatpush2.msra.mxu0 0.0
    %225 = vmatprep.subr.mxu0 0.0
    %226 = vmatpush2.msra.mxu0 0.0
    %227 = vmatprep.subr.mxu0 0.0
    %228 = vmatpush2.msra.mxu0 0.0
    %229 = vmatprep.subr.mxu0 0.0
    %230 = vmatpush2.msra.mxu0 0.0
    %231 = vmatprep.subr.mxu0 0.0
    %232 = vmatpush2.msra.mxu0 0.0
    %233 = vmatprep.subr.mxu0 0.0
    %234 = vmatpush2.msra.mxu0 0.0
    %235 = vmatprep.subr.mxu0 0.0
    %236 = vmatpush2.msra.mxu0 0.0
    %237 = vmatprep.subr.mxu0 0.0
    %238 = vmatpush2.msra.mxu0 0.0
    %239 = vmatprep.subr.mxu0 0.0
    %240 = vmatpush2.msra.mxu0 0.0
    %241 = vmatprep.subr.mxu0 0.0
    %242 = vmatpush2.msra.mxu0 0.0
    %243 = vmatprep.subr.mxu0 0.0
    %244 = vmatpush2.msra.mxu0 0.0
    %245 = vmatprep.subr.mxu0 0.0
    %246 = vmatpush2.msra.mxu0 0.0
    %247 = vmatprep.mubr.f32.mxu0 0.0
    %248 = vmatmul.mubr.f32.gmra.mxu0 %v181
    %v249 = vpop.f32.mrf.mxu0
    %v250 = vadd.f32 0.0, %v249
    %v251 = vpop.f32.mrf.mxu0
    %v252 = vadd.f32 0.0, %v251
    %253 = vdwg.mxu0
    %254 = vrot.lane.b32.xlu0 %v178, 64
    %v255 = vpop.permute.xlu0 %254
    %v256 = vsel %vm179, %v255, 0
    %258 = vmatprep.subr.mxu0 0.0
    %259 = vmatpush1.msra.mxu0 0.0
    %260 = vmatprep.subr.mxu0 0.0
    %261 = vmatpush1.msra.mxu0 0.0
    %262 = vmatprep.subr.mxu0 0.0
    %263 = vmatpush1.msra.mxu0 0.0
    %264 = vmatprep.subr.mxu0 0.0
    %265 = vmatpush1.msra.mxu0 0.0
    %266 = vmatprep.subr.mxu0 0.0
    %267 = vmatpush1.msra.mxu0 0.0
    %268 = vmatprep.subr.mxu0 0.0
    %269 = vmatpush1.msra.mxu0 0.0
    %270 = vmatprep.subr.mxu0 0.0
    %271 = vmatpush1.msra.mxu0 0.0
    %272 = vmatprep.subr.mxu0 0.0
    %273 = vmatpush1.msra.mxu0 0.0
    %274 = vmatprep.subr.mxu0 %v177
    %275 = vmatpush1.msra.mxu0 %v176
    %276 = vmatprep.subr.mxu0 %v175
    %277 = vmatpush1.msra.mxu0 %v174
    %278 = vmatprep.subr.mxu0 %v173
    %279 = vmatpush1.msra.mxu0 %v172
    %280 = vmatprep.subr.mxu0 %v171
    %281 = vmatpush1.msra.mxu0 %v170
    %282 = vmatprep.subr.mxu0 %v169
    %283 = vmatpush1.msra.mxu0 %v168
    %284 = vmatprep.subr.mxu0 %v167
    %285 = vmatpush1.msra.mxu0 %v166
    %286 = vmatprep.subr.mxu0 %v165
    %287 = vmatpush1.msra.mxu0 %v164
    %288 = vmatprep.subr.mxu0 %v163
    %289 = vmatpush1.msra.mxu0 %v162
    %290 = vmatprep.subr.mxu0 0.0
    %291 = vmatpush2.msra.mxu0 0.0
    %292 = vmatprep.subr.mxu0 0.0
    %293 = vmatpush2.msra.mxu0 0.0
    %294 = vmatprep.subr.mxu0 0.0
    %295 = vmatpush2.msra.mxu0 0.0
    %296 = vmatprep.subr.mxu0 0.0
    %297 = vmatpush2.msra.mxu0 0.0
    %298 = vmatprep.subr.mxu0 0.0
    %299 = vmatpush2.msra.mxu0 0.0
    %300 = vmatprep.subr.mxu0 0.0
    %301 = vmatpush2.msra.mxu0 0.0
    %302 = vmatprep.subr.mxu0 0.0
    %303 = vmatpush2.msra.mxu0 0.0
    %304 = vmatprep.subr.mxu0 0.0
    %305 = vmatpush2.msra.mxu0 0.0
    %306 = vmatprep.subr.mxu0 0.0
    %307 = vmatpush2.msra.mxu0 0.0
    %308 = vmatprep.subr.mxu0 0.0
    %309 = vmatpush2.msra.mxu0 0.0
    %310 = vmatprep.subr.mxu0 0.0
    %311 = vmatpush2.msra.mxu0 0.0
    %312 = vmatprep.subr.mxu0 0.0
    %313 = vmatpush2.msra.mxu0 0.0
    %314 = vmatprep.subr.mxu0 0.0
    %315 = vmatpush2.msra.mxu0 0.0
    %316 = vmatprep.subr.mxu0 0.0
    %317 = vmatpush2.msra.mxu0 0.0
    %318 = vmatprep.subr.mxu0 0.0
    %319 = vmatpush2.msra.mxu0 0.0
    %320 = vmatprep.subr.mxu0 0.0
    %321 = vmatpush2.msra.mxu0 0.0
    %322 = vmatprep.mubr.f32.mxu0 0.0
    %323 = vmatmul.mubr.f32.gmra.mxu0 %v256
    %v324 = vpop.f32.mrf.mxu0
    %v325 = vadd.f32 0.0, %v324
    %v326 = vpop.f32.mrf.mxu0
    %v327 = vadd.f32 0.0, %v326
    %328 = vdwg.mxu0
    %v329 = vld [vmem:[#allocation6] sm:$0xf]
    %330 = vrot.lane.b32.xlu0 %v250, 17
    %v331 = vpop.permute.xlu0 %330
    %332 = vrot.lane.b32.xlu0 %v252, 17
    %v333 = vpop.permute.xlu0 %332
    %334 = vrot.lane.b32.xlu0 %v325, 17
    %v335 = vpop.permute.xlu0 %334
    %336 = vrot.lane.b32.xlu0 %v327, 17
    %v337 = vpop.permute.xlu0 %336
    %v338 = vlaneseq
    %v339 = vand.u32 %v338, 127
    %vm340 = vcmp.lt.s32.totalorder %v339, 17
    %v341 = vsel %vm340, %v335, %v337
    %v342 = vsel %vm340, %v333, %v335
    %v343 = vsel %vm340, %v331, %v333
    %v344 = vsel %vm340, %v337, %v331
    %v346 = vlaneseq
    %v347 = vshrl.u32 %v346, 7
    %v348 = vsub.s32 0, %v347
    %v349 = vrot.slane %v152, %v348
    %v350 = vlaneseq
    %v351 = vshrl.u32 %v350, 7
    %v352 = vsub.s32 1, %v351
    %v353 = vrot.slane %v152, %v352
    %v354 = vlaneseq
    %v355 = vshrl.u32 %v354, 7
    %v356 = vsub.s32 2, %v355
    %v357 = vrot.slane %v152, %v356
    %v358 = vlaneseq
    %v359 = vshrl.u32 %v358, 7
    %v360 = vsub.s32 3, %v359
    %v361 = vrot.slane %v152, %v360
    %v366 = vmul.f32 %v344, %v349
    %v367 = vmul.f32 %v343, %v353
    %v368 = vmul.f32 %v342, %v357
    %v369 = vmul.f32 %v341, %v361
    %370 = vrot.lane.b32.xlu0 %v250, 16
    %v371 = vpop.permute.xlu0 %370
    %372 = vrot.lane.b32.xlu0 %v252, 16
    %v373 = vpop.permute.xlu0 %372
    %374 = vrot.lane.b32.xlu0 %v325, 16
    %v375 = vpop.permute.xlu0 %374
    %376 = vrot.lane.b32.xlu0 %v327, 16
    %v377 = vpop.permute.xlu0 %376
    %vm378 = vcmp.lt.s32.totalorder %v339, 16
    %v379 = vsel %vm378, %v375, %v377
    %v380 = vsel %vm378, %v373, %v375
    %v381 = vsel %vm378, %v371, %v373
    %v382 = vsel %vm378, %v377, %v371
    %v384 = vlaneseq
    %v385 = vshrl.u32 %v384, 7
    %v386 = vsub.s32 0, %v385
    %v387 = vrot.slane %v153, %v386
    %v388 = vlaneseq
    %v389 = vshrl.u32 %v388, 7
    %v390 = vsub.s32 1, %v389
    %v391 = vrot.slane %v153, %v390
    %v392 = vlaneseq
    %v393 = vshrl.u32 %v392, 7
    %v394 = vsub.s32 2, %v393
    %v395 = vrot.slane %v153, %v394
    %v396 = vlaneseq
    %v397 = vshrl.u32 %v396, 7
    %v398 = vsub.s32 3, %v397
    %v399 = vrot.slane %v153, %v398
    %v404 = vmul.f32 %v382, %v387
    %v405 = vmul.f32 %v381, %v391
    %v406 = vmul.f32 %v380, %v395
    %v407 = vmul.f32 %v379, %v399
    %408 = vrot.lane.b32.xlu0 %v250, 15
    %v409 = vpop.permute.xlu0 %408
    %410 = vrot.lane.b32.xlu0 %v252, 15
    %v411 = vpop.permute.xlu0 %410
    %412 = vrot.lane.b32.xlu0 %v325, 15
    %v413 = vpop.permute.xlu0 %412
    %414 = vrot.lane.b32.xlu0 %v327, 15
    %v415 = vpop.permute.xlu0 %414
    %vm416 = vcmp.lt.s32.totalorder %v339, 15
    %v417 = vsel %vm416, %v413, %v415
    %v418 = vsel %vm416, %v411, %v413
    %v419 = vsel %vm416, %v409, %v411
    %v420 = vsel %vm416, %v415, %v409
    %v422 = vlaneseq
    %v423 = vshrl.u32 %v422, 7
    %v424 = vsub.s32 0, %v423
    %v425 = vrot.slane %v154, %v424
    %v426 = vlaneseq
    %v427 = vshrl.u32 %v426, 7
    %v428 = vsub.s32 1, %v427
    %v429 = vrot.slane %v154, %v428
    %v430 = vlaneseq
    %v431 = vshrl.u32 %v430, 7
    %v432 = vsub.s32 2, %v431
    %v433 = vrot.slane %v154, %v432
    %v434 = vlaneseq
    %v435 = vshrl.u32 %v434, 7
    %v436 = vsub.s32 3, %v435
    %v437 = vrot.slane %v154, %v436
    %v442 = vmul.f32 %v420, %v425
    %v443 = vmul.f32 %v419, %v429
    %v444 = vmul.f32 %v418, %v433
    %v445 = vmul.f32 %v417, %v437
    %446 = vrot.lane.b32.xlu0 %v250, 1
    %v447 = vpop.permute.xlu0 %446
    %448 = vrot.lane.b32.xlu0 %v252, 1
    %v449 = vpop.permute.xlu0 %448
    %450 = vrot.lane.b32.xlu0 %v325, 1
    %v451 = vpop.permute.xlu0 %450
    %452 = vrot.lane.b32.xlu0 %v327, 1
    %v453 = vpop.permute.xlu0 %452
    %vm454 = vcmp.lt.s32.totalorder %v339, 1
    %v455 = vsel %vm454, %v451, %v453
    %v456 = vsel %vm454, %v449, %v451
    %v457 = vsel %vm454, %v447, %v449
    %v458 = vsel %vm454, %v453, %v447
    %v460 = vlaneseq
    %v461 = vshrl.u32 %v460, 7
    %v462 = vsub.s32 0, %v461
    %v463 = vrot.slane %v155, %v462
    %v464 = vlaneseq
    %v465 = vshrl.u32 %v464, 7
    %v466 = vsub.s32 1, %v465
    %v467 = vrot.slane %v155, %v466
    %v468 = vlaneseq
    %v469 = vshrl.u32 %v468, 7
    %v470 = vsub.s32 2, %v469
    %v471 = vrot.slane %v155, %v470
    %v472 = vlaneseq
    %v473 = vshrl.u32 %v472, 7
    %v474 = vsub.s32 3, %v473
    %v475 = vrot.slane %v155, %v474
    %v480 = vmul.f32 %v458, %v463
    %v481 = vmul.f32 %v457, %v467
    %v482 = vmul.f32 %v456, %v471
    %v483 = vmul.f32 %v455, %v475
    %484 = vrot.lane.b32.xlu0 %v250, 127
    %v485 = vpop.permute.xlu0 %484
    %486 = vrot.lane.b32.xlu0 %v252, 127
    %v487 = vpop.permute.xlu0 %486
    %488 = vrot.lane.b32.xlu0 %v325, 127
    %v489 = vpop.permute.xlu0 %488
    %490 = vrot.lane.b32.xlu0 %v327, 127
    %v491 = vpop.permute.xlu0 %490
    %vm492 = vcmp.lt.s32.totalorder %v339, 127
    %v493 = vsel %vm492, %v489, %v491
    %v494 = vsel %vm492, %v487, %v489
    %v495 = vsel %vm492, %v485, %v487
    %v496 = vsel %vm492, %v491, %v485
    %v498 = vlaneseq
    %v499 = vshrl.u32 %v498, 7
    %v500 = vsub.s32 0, %v499
    %v501 = vrot.slane %v156, %v500
    %v502 = vlaneseq
    %v503 = vshrl.u32 %v502, 7
    %v504 = vsub.s32 1, %v503
    %v505 = vrot.slane %v156, %v504
    %v506 = vlaneseq
    %v507 = vshrl.u32 %v506, 7
    %v508 = vsub.s32 2, %v507
    %v509 = vrot.slane %v156, %v508
    %v510 = vlaneseq
    %v511 = vshrl.u32 %v510, 7
    %v512 = vsub.s32 3, %v511
    %v513 = vrot.slane %v156, %v512
    %v518 = vmul.f32 %v495, %v501
    %v519 = vmul.f32 %v494, %v505
    %v520 = vmul.f32 %v493, %v509
    %v521 = vmul.f32 %v496, %v513
    %522 = vrot.lane.b32.xlu0 %v250, 113
    %v523 = vpop.permute.xlu0 %522
    %524 = vrot.lane.b32.xlu0 %v252, 113
    %v525 = vpop.permute.xlu0 %524
    %526 = vrot.lane.b32.xlu0 %v325, 113
    %v527 = vpop.permute.xlu0 %526
    %528 = vrot.lane.b32.xlu0 %v327, 113
    %v529 = vpop.permute.xlu0 %528
    %vm530 = vcmp.lt.s32.totalorder %v339, 113
    %v531 = vsel %vm530, %v527, %v529
    %v532 = vsel %vm530, %v525, %v527
    %v533 = vsel %vm530, %v523, %v525
    %v534 = vsel %vm530, %v529, %v523
    %v536 = vlaneseq
    %v537 = vshrl.u32 %v536, 7
    %v538 = vsub.s32 0, %v537
    %v539 = vrot.slane %v157, %v538
    %v540 = vlaneseq
    %v541 = vshrl.u32 %v540, 7
    %v542 = vsub.s32 1, %v541
    %v543 = vrot.slane %v157, %v542
    %v544 = vlaneseq
    %v545 = vshrl.u32 %v544, 7
    %v546 = vsub.s32 2, %v545
    %v547 = vrot.slane %v157, %v546
    %v548 = vlaneseq
    %v549 = vshrl.u32 %v548, 7
    %v550 = vsub.s32 3, %v549
    %v551 = vrot.slane %v157, %v550
    %v556 = vmul.f32 %v533, %v539
    %v557 = vmul.f32 %v532, %v543
    %v558 = vmul.f32 %v531, %v547
    %v559 = vmul.f32 %v534, %v551
    %560 = vrot.lane.b32.xlu0 %v250, 112
    %v561 = vpop.permute.xlu0 %560
    %562 = vrot.lane.b32.xlu0 %v252, 112
    %v563 = vpop.permute.xlu0 %562
    %564 = vrot.lane.b32.xlu0 %v325, 112
    %v565 = vpop.permute.xlu0 %564
    %566 = vrot.lane.b32.xlu0 %v327, 112
    %v567 = vpop.permute.xlu0 %566
    %vm568 = vcmp.lt.s32.totalorder %v339, 112
    %v569 = vsel %vm568, %v565, %v567
    %v570 = vsel %vm568, %v563, %v565
    %v571 = vsel %vm568, %v561, %v563
    %v572 = vsel %vm568, %v567, %v561
    %v574 = vlaneseq
    %v575 = vshrl.u32 %v574, 7
    %v576 = vsub.s32 0, %v575
    %v577 = vrot.slane %v158, %v576
    %v578 = vlaneseq
    %v579 = vshrl.u32 %v578, 7
    %v580 = vsub.s32 1, %v579
    %v581 = vrot.slane %v158, %v580
    %v582 = vlaneseq
    %v583 = vshrl.u32 %v582, 7
    %v584 = vsub.s32 2, %v583
    %v585 = vrot.slane %v158, %v584
    %v586 = vlaneseq
    %v587 = vshrl.u32 %v586, 7
    %v588 = vsub.s32 3, %v587
    %v589 = vrot.slane %v158, %v588
    %v594 = vmul.f32 %v571, %v577
    %v595 = vmul.f32 %v570, %v581
    %v596 = vmul.f32 %v569, %v585
    %v597 = vmul.f32 %v572, %v589
    %598 = vrot.lane.b32.xlu0 %v250, 111
    %v599 = vpop.permute.xlu0 %598
    %600 = vrot.lane.b32.xlu0 %v252, 111
    %v601 = vpop.permute.xlu0 %600
    %602 = vrot.lane.b32.xlu0 %v325, 111
    %v603 = vpop.permute.xlu0 %602
    %604 = vrot.lane.b32.xlu0 %v327, 111
    %v605 = vpop.permute.xlu0 %604
    %vm606 = vcmp.lt.s32.totalorder %v339, 111
    %v607 = vsel %vm606, %v603, %v605
    %v608 = vsel %vm606, %v601, %v603
    %v609 = vsel %vm606, %v599, %v601
    %v610 = vsel %vm606, %v605, %v599
    %v612 = vlaneseq
    %v613 = vshrl.u32 %v612, 7
    %v614 = vsub.s32 0, %v613
    %v615 = vrot.slane %v159, %v614
    %v616 = vlaneseq
    %v617 = vshrl.u32 %v616, 7
    %v618 = vsub.s32 1, %v617
    %v619 = vrot.slane %v159, %v618
    %v620 = vlaneseq
    %v621 = vshrl.u32 %v620, 7
    %v622 = vsub.s32 2, %v621
    %v623 = vrot.slane %v159, %v622
    %v624 = vlaneseq
    %v625 = vshrl.u32 %v624, 7
    %v626 = vsub.s32 3, %v625
    %v627 = vrot.slane %v159, %v626
    %v632 = vmul.f32 %v609, %v615
    %v633 = vmul.f32 %v608, %v619
    %v634 = vmul.f32 %v607, %v623
    %v635 = vmul.f32 %v610, %v627
    %v636 = vld [vmem:[%s4] sm:$0xf]
    %638 = vset.pattern.permute.xlu0 0
    %639 = vperm.xlu0 %638, %v636
    %v640 = vpop.permute.xlu0 %639
    %vm642 = vcmask 588800
    %v644 = vsel %vm642, %v329, 0
    %646 = vmatprep.subr.mxu0 0.0
    %647 = vmatpush1.msra.mxu0 0.0
    %648 = vmatprep.subr.mxu0 0.0
    %649 = vmatpush1.msra.mxu0 0.0
    %650 = vmatprep.subr.mxu0 0.0
    %651 = vmatpush1.msra.mxu0 0.0
    %652 = vmatprep.subr.mxu0 0.0
    %653 = vmatpush1.msra.mxu0 0.0
    %654 = vmatprep.subr.mxu0 0.0
    %655 = vmatpush1.msra.mxu0 0.0
    %656 = vmatprep.subr.mxu0 0.0
    %657 = vmatpush1.msra.mxu0 0.0
    %658 = vmatprep.subr.mxu0 0.0
    %659 = vmatpush1.msra.mxu0 0.0
    %660 = vmatprep.subr.mxu0 %v633
    %661 = vmatpush1.msra.mxu0 %v632
    %662 = vmatprep.subr.mxu0 %v595
    %663 = vmatpush1.msra.mxu0 %v594
    %664 = vmatprep.subr.mxu0 %v557
    %665 = vmatpush1.msra.mxu0 %v556
    %666 = vmatprep.subr.mxu0 %v519
    %667 = vmatpush1.msra.mxu0 %v518
    %668 = vmatprep.subr.mxu0 %v252
    %669 = vmatpush1.msra.mxu0 %v250
    %670 = vmatprep.subr.mxu0 %v481
    %671 = vmatpush1.msra.mxu0 %v480
    %672 = vmatprep.subr.mxu0 %v443
    %673 = vmatpush1.msra.mxu0 %v442
    %674 = vmatprep.subr.mxu0 %v405
    %675 = vmatpush1.msra.mxu0 %v404
    %676 = vmatprep.subr.mxu0 %v367
    %677 = vmatpush1.msra.mxu0 %v366
    %678 = vmatprep.subr.mxu0 0.0
    %679 = vmatpush2.msra.mxu0 0.0
    %680 = vmatprep.subr.mxu0 0.0
    %681 = vmatpush2.msra.mxu0 0.0
    %682 = vmatprep.subr.mxu0 0.0
    %683 = vmatpush2.msra.mxu0 0.0
    %684 = vmatprep.subr.mxu0 0.0
    %685 = vmatpush2.msra.mxu0 0.0
    %686 = vmatprep.subr.mxu0 0.0
    %687 = vmatpush2.msra.mxu0 0.0
    %688 = vmatprep.subr.mxu0 0.0
    %689 = vmatpush2.msra.mxu0 0.0
    %690 = vmatprep.subr.mxu0 0.0
    %691 = vmatpush2.msra.mxu0 0.0
    %692 = vmatprep.subr.mxu0 0.0
    %693 = vmatpush2.msra.mxu0 0.0
    %694 = vmatprep.subr.mxu0 0.0
    %695 = vmatpush2.msra.mxu0 0.0
    %696 = vmatprep.subr.mxu0 0.0
    %697 = vmatpush2.msra.mxu0 0.0
    %698 = vmatprep.subr.mxu0 0.0
    %699 = vmatpush2.msra.mxu0 0.0
    %700 = vmatprep.subr.mxu0 0.0
    %701 = vmatpush2.msra.mxu0 0.0
    %702 = vmatprep.subr.mxu0 0.0
    %703 = vmatpush2.msra.mxu0 0.0
    %704 = vmatprep.subr.mxu0 0.0
    %705 = vmatpush2.msra.mxu0 0.0
    %706 = vmatprep.subr.mxu0 0.0
    %707 = vmatpush2.msra.mxu0 0.0
    %708 = vmatprep.subr.mxu0 0.0
    %709 = vmatpush2.msra.mxu0 0.0
    %710 = vmatprep.mubr.f32.mxu0 0.0
    %711 = vmatmul.mubr.f32.gmra.mxu0 %v644
    %v712 = vpop.f32.mrf.mxu0
    %v713 = vadd.f32 %v640, %v712
    %v714 = vpop.f32.mrf.mxu0
    %v715 = vadd.f32 %v640, %v714
    %716 = vdwg.mxu0
    %717 = vmatprep.subr.mxu0 0.0
    %718 = vmatpush1.msra.mxu0 0.0
    %719 = vmatprep.subr.mxu0 0.0
    %720 = vmatpush1.msra.mxu0 0.0
    %721 = vmatprep.subr.mxu0 0.0
    %722 = vmatpush1.msra.mxu0 0.0
    %723 = vmatprep.subr.mxu0 0.0
    %724 = vmatpush1.msra.mxu0 0.0
    %725 = vmatprep.subr.mxu0 0.0
    %726 = vmatpush1.msra.mxu0 0.0
    %727 = vmatprep.subr.mxu0 0.0
    %728 = vmatpush1.msra.mxu0 0.0
    %729 = vmatprep.subr.mxu0 0.0
    %730 = vmatpush1.msra.mxu0 0.0
    %731 = vmatprep.subr.mxu0 %v635
    %732 = vmatpush1.msra.mxu0 %v634
    %733 = vmatprep.subr.mxu0 %v597
    %734 = vmatpush1.msra.mxu0 %v596
    %735 = vmatprep.subr.mxu0 %v559
    %736 = vmatpush1.msra.mxu0 %v558
    %737 = vmatprep.subr.mxu0 %v521
    %738 = vmatpush1.msra.mxu0 %v520
    %739 = vmatprep.subr.mxu0 %v327
    %740 = vmatpush1.msra.mxu0 %v325
    %741 = vmatprep.subr.mxu0 %v483
    %742 = vmatpush1.msra.mxu0 %v482
    %743 = vmatprep.subr.mxu0 %v445
    %744 = vmatpush1.msra.mxu0 %v444
    %745 = vmatprep.subr.mxu0 %v407
    %746 = vmatpush1.msra.mxu0 %v406
    %747 = vmatprep.subr.mxu0 %v369
    %748 = vmatpush1.msra.mxu0 %v368
    %749 = vmatprep.subr.mxu0 0.0
    %750 = vmatpush2.msra.mxu0 0.0
    %751 = vmatprep.subr.mxu0 0.0
    %752 = vmatpush2.msra.mxu0 0.0
    %753 = vmatprep.subr.mxu0 0.0
    %754 = vmatpush2.msra.mxu0 0.0
    %755 = vmatprep.subr.mxu0 0.0
    %756 = vmatpush2.msra.mxu0 0.0
    %757 = vmatprep.subr.mxu0 0.0
    %758 = vmatpush2.msra.mxu0 0.0
    %759 = vmatprep.subr.mxu0 0.0
    %760 = vmatpush2.msra.mxu0 0.0
    %761 = vmatprep.subr.mxu0 0.0
    %762 = vmatpush2.msra.mxu0 0.0
    %763 = vmatprep.subr.mxu0 0.0
    %764 = vmatpush2.msra.mxu0 0.0
    %765 = vmatprep.subr.mxu0 0.0
    %766 = vmatpush2.msra.mxu0 0.0
    %767 = vmatprep.subr.mxu0 0.0
    %768 = vmatpush2.msra.mxu0 0.0
    %769 = vmatprep.subr.mxu0 0.0
    %770 = vmatpush2.msra.mxu0 0.0
    %771 = vmatprep.subr.mxu0 0.0
    %772 = vmatpush2.msra.mxu0 0.0
    %773 = vmatprep.subr.mxu0 0.0
    %774 = vmatpush2.msra.mxu0 0.0
    %775 = vmatprep.subr.mxu0 0.0
    %776 = vmatpush2.msra.mxu0 0.0
    %777 = vmatprep.subr.mxu0 0.0
    %778 = vmatpush2.msra.mxu0 0.0
    %779 = vmatprep.subr.mxu0 0.0
    %780 = vmatpush2.msra.mxu0 0.0
    %781 = vmatprep.mubr.f32.mxu0 0.0
    %782 = vmatmul.mubr.f32.gmra.mxu0 %v644
    %v783 = vpop.f32.mrf.mxu0
    %v784 = vadd.f32 %v640, %v783
    %v785 = vpop.f32.mrf.mxu0
    %v786 = vadd.f32 %v640, %v785
    %787 = vdwg.mxu0
    %v788 = vmul.f32 %v713, 0.5
    %v789 = vmul.f32 %v715, 0.5
    %v790 = vmul.f32 %v784, 0.5
    %v791 = vmul.f32 %v786, 0.5
    %v792 = vmul.f32 %v713, 0.70710677
    %v793 = vmul.f32 %v715, 0.70710677
    %v794 = vmul.f32 %v784, 0.70710677
    %v795 = vmul.f32 %v786, 0.70710677
    %v796 = vand.u32 2147483647, %v792
    %v797 = vand.u32 2147483647, %v793
    %v798 = vand.u32 2147483647, %v794
    %v799 = vand.u32 2147483647, %v795
    %v800 = vmul.f32 %v796, 0.3275911
    %v801 = vmul.f32 %v797, 0.3275911
    %v802 = vmul.f32 %v798, 0.3275911
    %v803 = vmul.f32 %v799, 0.3275911
    %v804 = vadd.f32 %v800, 1.0
    %v805 = vadd.f32 %v801, 1.0
    %v806 = vadd.f32 %v802, 1.0
    %v807 = vadd.f32 %v803, 1.0
    %v808 = vrcp.pop %v804
    %v809 = vmul.f32 1.0, %v808
    %v810 = vrcp.pop %v805
    %v811 = vmul.f32 1.0, %v810
    %v812 = vrcp.pop %v806
    %v813 = vmul.f32 1.0, %v812
    %v814 = vrcp.pop %v807
    %v815 = vmul.f32 1.0, %v814
    %v816 = vmul.f32 %v809, 1.0614054
    %v817 = vmul.f32 %v811, 1.0614054
    %v818 = vmul.f32 %v813, 1.0614054
    %v819 = vmul.f32 %v815, 1.0614054
    %v820 = vadd.f32 %v816, -1.4531521
    %v821 = vadd.f32 %v817, -1.4531521
    %v822 = vadd.f32 %v818, -1.4531521
    %v823 = vadd.f32 %v819, -1.4531521
    %v824 = vmul.f32 %v809, %v820
    %v825 = vmul.f32 %v811, %v821
    %v826 = vmul.f32 %v813, %v822
    %v827 = vmul.f32 %v815, %v823
    %v828 = vadd.f32 %v824, 1.4214138
    %v829 = vadd.f32 %v825, 1.4214138
    %v830 = vadd.f32 %v826, 1.4214138
    %v831 = vadd.f32 %v827, 1.4214138
    %v832 = vmul.f32 %v809, %v828
    %v833 = vmul.f32 %v811, %v829
    %v834 = vmul.f32 %v813, %v830
    %v835 = vmul.f32 %v815, %v831
    %v836 = vadd.f32 %v832, -0.28449672
    %v837 = vadd.f32 %v833, -0.28449672
    %v838 = vadd.f32 %v834, -0.28449672
    %v839 = vadd.f32 %v835, -0.28449672
    %v840 = vmul.f32 %v809, %v836
    %v841 = vmul.f32 %v811, %v837
    %v842 = vmul.f32 %v813, %v838
    %v843 = vmul.f32 %v815, %v839
    %v844 = vadd.f32 %v840, 0.2548296
    %v845 = vadd.f32 %v841, 0.2548296
    %v846 = vadd.f32 %v842, 0.2548296
    %v847 = vadd.f32 %v843, 0.2548296
    %v848 = vmul.f32 %v809, %v844
    %v849 = vmul.f32 %v811, %v845
    %v850 = vmul.f32 %v813, %v846
    %v851 = vmul.f32 %v815, %v847
    %v852 = vsub.f32 0.0, %v796
    %v853 = vsub.f32 0.0, %v797
    %v854 = vsub.f32 0.0, %v798
    %v855 = vsub.f32 0.0, %v799
    %v856 = vmul.f32 %v852, %v796
    %v857 = vmul.f32 %v853, %v797
    %v858 = vmul.f32 %v854, %v798
    %v859 = vmul.f32 %v855, %v799
    %v860 = vmul.f32 %v856, 1.442695
    %v861 = vpow.pop %v860
    %v862 = vmul.f32 %v857, 1.442695
    %v863 = vpow.pop %v862
    %v864 = vmul.f32 %v858, 1.442695
    %v865 = vpow.pop %v864
    %v866 = vmul.f32 %v859, 1.442695
    %v867 = vpow.pop %v866
    %v868 = vmul.f32 %v848, %v861
    %v869 = vmul.f32 %v849, %v863
    %v870 = vmul.f32 %v850, %v865
    %v871 = vmul.f32 %v851, %v867
    %v872 = vsub.f32 1.0, %v868
    %v873 = vsub.f32 1.0, %v869
    %v874 = vsub.f32 1.0, %v870
    %v875 = vsub.f32 1.0, %v871
    %vm876 = vcmp.lt.f32.partialorder %v792, 0.0
    %vm877 = vcmp.lt.f32.partialorder %v793, 0.0
    %vm878 = vcmp.lt.f32.partialorder %v794, 0.0
    %vm879 = vcmp.lt.f32.partialorder %v795, 0.0
    %v880 = vsub.f32 0.0, %v872
    %v881 = vsub.f32 0.0, %v873
    %v882 = vsub.f32 0.0, %v874
    %v883 = vsub.f32 0.0, %v875
    %v884 = vsel %vm876, %v880, %v872
    %v885 = vsel %vm877, %v881, %v873
    %v886 = vsel %vm878, %v882, %v874
    %v887 = vsel %vm879, %v883, %v875
    %v888 = vadd.f32 %v884, 1.0
    %v889 = vadd.f32 %v885, 1.0
    %v890 = vadd.f32 %v886, 1.0
    %v891 = vadd.f32 %v887, 1.0
    %v892 = vmul.f32 %v788, %v888
    %v893 = vmul.f32 %v789, %v889
    %v894 = vmul.f32 %v790, %v890
    %v895 = vmul.f32 %v791, %v891
    %v898 = vcombine.high %v160, %v160
    %v899 = vcombine.high %v161, %v161
    %v906 = vrot.slane %v892, 4
    %v907 = vrot.slane %v893, 4
    %v908 = vrot.slane %v894, 4
    %v909 = vrot.slane %v895, 4
    %vm914 = vcmask 1043456
    %v915 = vsel %vm914, %v160, %v906
    %v916 = vsel %vm914, %v898, %v907
    %v917 = vsel %vm914, %v161, %v908
    %v918 = vsel %vm914, %v899, %v909
    %v919 = vld [vmem:[#allocation8] sm:$0xf]
    %920 = vrot.lane.b32.xlu0 %v915, 17
    %v921 = vpop.permute.xlu0 %920
    %922 = vrot.lane.b32.xlu0 %v916, 17
    %v923 = vpop.permute.xlu0 %922
    %924 = vrot.lane.b32.xlu0 %v917, 17
    %v925 = vpop.permute.xlu0 %924
    %926 = vrot.lane.b32.xlu0 %v918, 17
    %v927 = vpop.permute.xlu0 %926
    %v928 = vsel %vm340, %v925, %v927
    %v929 = vsel %vm340, %v923, %v925
    %v930 = vsel %vm340, %v921, %v923
    %v931 = vsel %vm340, %v927, %v921
    %v932 = vmul.f32 %v931, %v349
    %v933 = vmul.f32 %v930, %v353
    %v934 = vmul.f32 %v929, %v357
    %v935 = vmul.f32 %v928, %v361
    %936 = vrot.lane.b32.xlu0 %v915, 16
    %v937 = vpop.permute.xlu0 %936
    %938 = vrot.lane.b32.xlu0 %v916, 16
    %v939 = vpop.permute.xlu0 %938
    %940 = vrot.lane.b32.xlu0 %v917, 16
    %v941 = vpop.permute.xlu0 %940
    %942 = vrot.lane.b32.xlu0 %v918, 16
    %v943 = vpop.permute.xlu0 %942
    %v944 = vsel %vm378, %v941, %v943
    %v945 = vsel %vm378, %v939, %v941
    %v946 = vsel %vm378, %v937, %v939
    %v947 = vsel %vm378, %v943, %v937
    %v948 = vmul.f32 %v947, %v387
    %v949 = vmul.f32 %v946, %v391
    %v950 = vmul.f32 %v945, %v395
    %v951 = vmul.f32 %v944, %v399
    %952 = vrot.lane.b32.xlu0 %v915, 15
    %v953 = vpop.permute.xlu0 %952
    %954 = vrot.lane.b32.xlu0 %v916, 15
    %v955 = vpop.permute.xlu0 %954
    %956 = vrot.lane.b32.xlu0 %v917, 15
    %v957 = vpop.permute.xlu0 %956
    %958 = vrot.lane.b32.xlu0 %v918, 15
    %v959 = vpop.permute.xlu0 %958
    %v960 = vsel %vm416, %v957, %v959
    %v961 = vsel %vm416, %v955, %v957
    %v962 = vsel %vm416, %v953, %v955
    %v963 = vsel %vm416, %v959, %v953
    %v964 = vmul.f32 %v963, %v425
    %v965 = vmul.f32 %v962, %v429
    %v966 = vmul.f32 %v961, %v433
    %v967 = vmul.f32 %v960, %v437
    %968 = vrot.lane.b32.xlu0 %v915, 1
    %v969 = vpop.permute.xlu0 %968
    %970 = vrot.lane.b32.xlu0 %v916, 1
    %v971 = vpop.permute.xlu0 %970
    %972 = vrot.lane.b32.xlu0 %v917, 1
    %v973 = vpop.permute.xlu0 %972
    %974 = vrot.lane.b32.xlu0 %v918, 1
    %v975 = vpop.permute.xlu0 %974
    %v976 = vsel %vm454, %v973, %v975
    %v977 = vsel %vm454, %v971, %v973
    %v978 = vsel %vm454, %v969, %v971
    %v979 = vsel %vm454, %v975, %v969
    %v980 = vmul.f32 %v979, %v463
    %v981 = vmul.f32 %v978, %v467
    %v982 = vmul.f32 %v977, %v471
    %v983 = vmul.f32 %v976, %v475
    %984 = vrot.lane.b32.xlu0 %v915, 127
    %v985 = vpop.permute.xlu0 %984
    %986 = vrot.lane.b32.xlu0 %v916, 127
    %v987 = vpop.permute.xlu0 %986
    %988 = vrot.lane.b32.xlu0 %v917, 127
    %v989 = vpop.permute.xlu0 %988
    %990 = vrot.lane.b32.xlu0 %v918, 127
    %v991 = vpop.permute.xlu0 %990
    %v992 = vsel %vm492, %v989, %v991
    %v993 = vsel %vm492, %v987, %v989
    %v994 = vsel %vm492, %v985, %v987
    %v995 = vsel %vm492, %v991, %v985
    %v996 = vmul.f32 %v994, %v501
    %v997 = vmul.f32 %v993, %v505
    %v998 = vmul.f32 %v992, %v509
    %v999 = vmul.f32 %v995, %v513
    %1000 = vrot.lane.b32.xlu0 %v915, 113
    %v1001 = vpop.permute.xlu0 %1000
    %1002 = vrot.lane.b32.xlu0 %v916, 113
    %v1003 = vpop.permute.xlu0 %1002
    %1004 = vrot.lane.b32.xlu0 %v917, 113
    %v1005 = vpop.permute.xlu0 %1004
    %1006 = vrot.lane.b32.xlu0 %v918, 113
    %v1007 = vpop.permute.xlu0 %1006
    %v1008 = vsel %vm530, %v1005, %v1007
    %v1009 = vsel %vm530, %v1003, %v1005
    %v1010 = vsel %vm530, %v1001, %v1003
    %v1011 = vsel %vm530, %v1007, %v1001
    %v1012 = vmul.f32 %v1010, %v539
    %v1013 = vmul.f32 %v1009, %v543
    %v1014 = vmul.f32 %v1008, %v547
    %v1015 = vmul.f32 %v1011, %v551
    %1016 = vrot.lane.b32.xlu0 %v915, 112
    %v1017 = vpop.permute.xlu0 %1016
    %1018 = vrot.lane.b32.xlu0 %v916, 112
    %v1019 = vpop.permute.xlu0 %1018
    %1020 = vrot.lane.b32.xlu0 %v917, 112
    %v1021 = vpop.permute.xlu0 %1020
    %1022 = vrot.lane.b32.xlu0 %v918, 112
    %v1023 = vpop.permute.xlu0 %1022
    %v1024 = vsel %vm568, %v1021, %v1023
    %v1025 = vsel %vm568, %v1019, %v1021
    %v1026 = vsel %vm568, %v1017, %v1019
    %v1027 = vsel %vm568, %v1023, %v1017
    %v1028 = vmul.f32 %v1026, %v577
    %v1029 = vmul.f32 %v1025, %v581
    %v1030 = vmul.f32 %v1024, %v585
    %v1031 = vmul.f32 %v1027, %v589
    %1032 = vrot.lane.b32.xlu0 %v915, 111
    %v1033 = vpop.permute.xlu0 %1032
    %1034 = vrot.lane.b32.xlu0 %v916, 111
    %v1035 = vpop.permute.xlu0 %1034
    %1036 = vrot.lane.b32.xlu0 %v917, 111
    %v1037 = vpop.permute.xlu0 %1036
    %1038 = vrot.lane.b32.xlu0 %v918, 111
    %v1039 = vpop.permute.xlu0 %1038
    %v1040 = vsel %vm606, %v1037, %v1039
    %v1041 = vsel %vm606, %v1035, %v1037
    %v1042 = vsel %vm606, %v1033, %v1035
    %v1043 = vsel %vm606, %v1039, %v1033
    %v1044 = vmul.f32 %v1042, %v615
    %v1045 = vmul.f32 %v1041, %v619
    %v1046 = vmul.f32 %v1040, %v623
    %v1047 = vmul.f32 %v1043, %v627
    %v1048 = vld [vmem:[%s6] sm:$0xf]
    %1050 = vset.pattern.permute.xlu0 0
    %1051 = vperm.xlu0 %1050, %v1048
    %v1052 = vpop.permute.xlu0 %1051
    %v1055 = vsel %vm642, %v919, 0
    %1057 = vmatprep.subr.mxu0 0.0
    %1058 = vmatpush1.msra.mxu0 0.0
    %1059 = vmatprep.subr.mxu0 0.0
    %1060 = vmatpush1.msra.mxu0 0.0
    %1061 = vmatprep.subr.mxu0 0.0
    %1062 = vmatpush1.msra.mxu0 0.0
    %1063 = vmatprep.subr.mxu0 0.0
    %1064 = vmatpush1.msra.mxu0 0.0
    %1065 = vmatprep.subr.mxu0 0.0
    %1066 = vmatpush1.msra.mxu0 0.0
    %1067 = vmatprep.subr.mxu0 0.0
    %1068 = vmatpush1.msra.mxu0 0.0
    %1069 = vmatprep.subr.mxu0 0.0
    %1070 = vmatpush1.msra.mxu0 0.0
    %1071 = vmatprep.subr.mxu0 %v1045
    %1072 = vmatpush1.msra.mxu0 %v1044
    %1073 = vmatprep.subr.mxu0 %v1029
    %1074 = vmatpush1.msra.mxu0 %v1028
    %1075 = vmatprep.subr.mxu0 %v1013
    %1076 = vmatpush1.msra.mxu0 %v1012
    %1077 = vmatprep.subr.mxu0 %v997
    %1078 = vmatpush1.msra.mxu0 %v996
    %1079 = vmatprep.subr.mxu0 %v916
    %1080 = vmatpush1.msra.mxu0 %v915
    %1081 = vmatprep.subr.mxu0 %v981
    %1082 = vmatpush1.msra.mxu0 %v980
    %1083 = vmatprep.subr.mxu0 %v965
    %1084 = vmatpush1.msra.mxu0 %v964
    %1085 = vmatprep.subr.mxu0 %v949
    %1086 = vmatpush1.msra.mxu0 %v948
    %1087 = vmatprep.subr.mxu0 %v933
    %1088 = vmatpush1.msra.mxu0 %v932
    %1089 = vmatprep.subr.mxu0 0.0
    %1090 = vmatpush2.msra.mxu0 0.0
    %1091 = vmatprep.subr.mxu0 0.0
    %1092 = vmatpush2.msra.mxu0 0.0
    %1093 = vmatprep.subr.mxu0 0.0
    %1094 = vmatpush2.msra.mxu0 0.0
    %1095 = vmatprep.subr.mxu0 0.0
    %1096 = vmatpush2.msra.mxu0 0.0
    %1097 = vmatprep.subr.mxu0 0.0
    %1098 = vmatpush2.msra.mxu0 0.0
    %1099 = vmatprep.subr.mxu0 0.0
    %1100 = vmatpush2.msra.mxu0 0.0
    %1101 = vmatprep.subr.mxu0 0.0
    %1102 = vmatpush2.msra.mxu0 0.0
    %1103 = vmatprep.subr.mxu0 0.0
    %1104 = vmatpush2.msra.mxu0 0.0
    %1105 = vmatprep.subr.mxu0 0.0
    %1106 = vmatpush2.msra.mxu0 0.0
    %1107 = vmatprep.subr.mxu0 0.0
    %1108 = vmatpush2.msra.mxu0 0.0
    %1109 = vmatprep.subr.mxu0 0.0
    %1110 = vmatpush2.msra.mxu0 0.0
    %1111 = vmatprep.subr.mxu0 0.0
    %1112 = vmatpush2.msra.mxu0 0.0
    %1113 = vmatprep.subr.mxu0 0.0
    %1114 = vmatpush2.msra.mxu0 0.0
    %1115 = vmatprep.subr.mxu0 0.0
    %1116 = vmatpush2.msra.mxu0 0.0
    %1117 = vmatprep.subr.mxu0 0.0
    %1118 = vmatpush2.msra.mxu0 0.0
    %1119 = vmatprep.subr.mxu0 0.0
    %1120 = vmatpush2.msra.mxu0 0.0
    %1121 = vmatprep.mubr.f32.mxu0 0.0
    %1122 = vmatmul.mubr.f32.gmra.mxu0 %v1055
    %v1123 = vpop.f32.mrf.mxu0
    %v1124 = vadd.f32 %v1052, %v1123
    %v1125 = vpop.f32.mrf.mxu0
    %v1126 = vadd.f32 %v1052, %v1125
    %1127 = vdwg.mxu0
    %1128 = vmatprep.subr.mxu0 0.0
    %1129 = vmatpush1.msra.mxu0 0.0
    %1130 = vmatprep.subr.mxu0 0.0
    %1131 = vmatpush1.msra.mxu0 0.0
    %1132 = vmatprep.subr.mxu0 0.0
    %1133 = vmatpush1.msra.mxu0 0.0
    %1134 = vmatprep.subr.mxu0 0.0
    %1135 = vmatpush1.msra.mxu0 0.0
    %1136 = vmatprep.subr.mxu0 0.0
    %1137 = vmatpush1.msra.mxu0 0.0
    %1138 = vmatprep.subr.mxu0 0.0
    %1139 = vmatpush1.msra.mxu0 0.0
    %1140 = vmatprep.subr.mxu0 0.0
    %1141 = vmatpush1.msra.mxu0 0.0
    %1142 = vmatprep.subr.mxu0 %v1047
    %1143 = vmatpush1.msra.mxu0 %v1046
    %1144 = vmatprep.subr.mxu0 %v1031
    %1145 = vmatpush1.msra.mxu0 %v1030
    %1146 = vmatprep.subr.mxu0 %v1015
    %1147 = vmatpush1.msra.mxu0 %v1014
    %1148 = vmatprep.subr.mxu0 %v999
    %1149 = vmatpush1.msra.mxu0 %v998
    %1150 = vmatprep.subr.mxu0 %v918
    %1151 = vmatpush1.msra.mxu0 %v917
    %1152 = vmatprep.subr.mxu0 %v983
    %1153 = vmatpush1.msra.mxu0 %v982
    %1154 = vmatprep.subr.mxu0 %v967
    %1155 = vmatpush1.msra.mxu0 %v966
    %1156 = vmatprep.subr.mxu0 %v951
    %1157 = vmatpush1.msra.mxu0 %v950
    %1158 = vmatprep.subr.mxu0 %v935
    %1159 = vmatpush1.msra.mxu0 %v934
    %1160 = vmatprep.subr.mxu0 0.0
    %1161 = vmatpush2.msra.mxu0 0.0
    %1162 = vmatprep.subr.mxu0 0.0
    %1163 = vmatpush2.msra.mxu0 0.0
    %1164 = vmatprep.subr.mxu0 0.0
    %1165 = vmatpush2.msra.mxu0 0.0
    %1166 = vmatprep.subr.mxu0 0.0
    %1167 = vmatpush2.msra.mxu0 0.0
    %1168 = vmatprep.subr.mxu0 0.0
    %1169 = vmatpush2.msra.mxu0 0.0
    %1170 = vmatprep.subr.mxu0 0.0
    %1171 = vmatpush2.msra.mxu0 0.0
    %1172 = vmatprep.subr.mxu0 0.0
    %1173 = vmatpush2.msra.mxu0 0.0
    %1174 = vmatprep.subr.mxu0 0.0
    %1175 = vmatpush2.msra.mxu0 0.0
    %1176 = vmatprep.subr.mxu0 0.0
    %1177 = vmatpush2.msra.mxu0 0.0
    %1178 = vmatprep.subr.mxu0 0.0
    %1179 = vmatpush2.msra.mxu0 0.0
    %1180 = vmatprep.subr.mxu0 0.0
    %1181 = vmatpush2.msra.mxu0 0.0
    %1182 = vmatprep.subr.mxu0 0.0
    %1183 = vmatpush2.msra.mxu0 0.0
    %1184 = vmatprep.subr.mxu0 0.0
    %1185 = vmatpush2.msra.mxu0 0.0
    %1186 = vmatprep.subr.mxu0 0.0
    %1187 = vmatpush2.msra.mxu0 0.0
    %1188 = vmatprep.subr.mxu0 0.0
    %1189 = vmatpush2.msra.mxu0 0.0
    %1190 = vmatprep.subr.mxu0 0.0
    %1191 = vmatpush2.msra.mxu0 0.0
    %1192 = vmatprep.mubr.f32.mxu0 0.0
    %1193 = vmatmul.mubr.f32.gmra.mxu0 %v1055
    %v1194 = vpop.f32.mrf.mxu0
    %v1195 = vadd.f32 %v1052, %v1194
    %v1196 = vpop.f32.mrf.mxu0
    %v1197 = vadd.f32 %v1052, %v1196
    %1198 = vdwg.mxu0
    %v1199 = vmul.f32 %v1124, 0.5
    %v1200 = vmul.f32 %v1126, 0.5
    %v1201 = vmul.f32 %v1195, 0.5
    %v1202 = vmul.f32 %v1197, 0.5
    %v1203 = vmul.f32 %v1124, 0.70710677
    %v1204 = vmul.f32 %v1126, 0.70710677
    %v1205 = vmul.f32 %v1195, 0.70710677
    %v1206 = vmul.f32 %v1197, 0.70710677
    %v1207 = vand.u32 2147483647, %v1203
    %v1208 = vand.u32 2147483647, %v1204
    %v1209 = vand.u32 2147483647, %v1205
    %v1210 = vand.u32 2147483647, %v1206
    %v1211 = vmul.f32 %v1207, 0.3275911
    %v1212 = vmul.f32 %v1208, 0.3275911
    %v1213 = vmul.f32 %v1209, 0.3275911
    %v1214 = vmul.f32 %v1210, 0.3275911
    %v1215 = vadd.f32 %v1211, 1.0
    %v1216 = vadd.f32 %v1212, 1.0
    %v1217 = vadd.f32 %v1213, 1.0
    %v1218 = vadd.f32 %v1214, 1.0
    %v1219 = vrcp.pop %v1215
    %v1220 = vmul.f32 1.0, %v1219
    %v1221 = vrcp.pop %v1216
    %v1222 = vmul.f32 1.0, %v1221
    %v1223 = vrcp.pop %v1217
    %v1224 = vmul.f32 1.0, %v1223
    %v1225 = vrcp.pop %v1218
    %v1226 = vmul.f32 1.0, %v1225
    %v1227 = vmul.f32 %v1220, 1.0614054
    %v1228 = vmul.f32 %v1222, 1.0614054
    %v1229 = vmul.f32 %v1224, 1.0614054
    %v1230 = vmul.f32 %v1226, 1.0614054
    %v1231 = vadd.f32 %v1227, -1.4531521
    %v1232 = vadd.f32 %v1228, -1.4531521
    %v1233 = vadd.f32 %v1229, -1.4531521
    %v1234 = vadd.f32 %v1230, -1.4531521
    %v1235 = vmul.f32 %v1220, %v1231
    %v1236 = vmul.f32 %v1222, %v1232
    %v1237 = vmul.f32 %v1224, %v1233
    %v1238 = vmul.f32 %v1226, %v1234
    %v1239 = vadd.f32 %v1235, 1.4214138
    %v1240 = vadd.f32 %v1236, 1.4214138
    %v1241 = vadd.f32 %v1237, 1.4214138
    %v1242 = vadd.f32 %v1238, 1.4214138
    %v1243 = vmul.f32 %v1220, %v1239
    %v1244 = vmul.f32 %v1222, %v1240
    %v1245 = vmul.f32 %v1224, %v1241
    %v1246 = vmul.f32 %v1226, %v1242
    %v1247 = vadd.f32 %v1243, -0.28449672
    %v1248 = vadd.f32 %v1244, -0.28449672
    %v1249 = vadd.f32 %v1245, -0.28449672
    %v1250 = vadd.f32 %v1246, -0.28449672
    %v1251 = vmul.f32 %v1220, %v1247
    %v1252 = vmul.f32 %v1222, %v1248
    %v1253 = vmul.f32 %v1224, %v1249
    %v1254 = vmul.f32 %v1226, %v1250
    %v1255 = vadd.f32 %v1251, 0.2548296
    %v1256 = vadd.f32 %v1252, 0.2548296
    %v1257 = vadd.f32 %v1253, 0.2548296
    %v1258 = vadd.f32 %v1254, 0.2548296
    %v1259 = vmul.f32 %v1220, %v1255
    %v1260 = vmul.f32 %v1222, %v1256
    %v1261 = vmul.f32 %v1224, %v1257
    %v1262 = vmul.f32 %v1226, %v1258
    %v1263 = vsub.f32 0.0, %v1207
    %v1264 = vsub.f32 0.0, %v1208
    %v1265 = vsub.f32 0.0, %v1209
    %v1266 = vsub.f32 0.0, %v1210
    %v1267 = vmul.f32 %v1263, %v1207
    %v1268 = vmul.f32 %v1264, %v1208
    %v1269 = vmul.f32 %v1265, %v1209
    %v1270 = vmul.f32 %v1266, %v1210
    %v1271 = vmul.f32 %v1267, 1.442695
    %v1272 = vpow.pop %v1271
    %v1273 = vmul.f32 %v1268, 1.442695
    %v1274 = vpow.pop %v1273
    %v1275 = vmul.f32 %v1269, 1.442695
    %v1276 = vpow.pop %v1275
    %v1277 = vmul.f32 %v1270, 1.442695
    %v1278 = vpow.pop %v1277
    %v1279 = vmul.f32 %v1259, %v1272
    %v1280 = vmul.f32 %v1260, %v1274
    %v1281 = vmul.f32 %v1261, %v1276
    %v1282 = vmul.f32 %v1262, %v1278
    %v1283 = vsub.f32 1.0, %v1279
    %v1284 = vsub.f32 1.0, %v1280
    %v1285 = vsub.f32 1.0, %v1281
    %v1286 = vsub.f32 1.0, %v1282
    %vm1287 = vcmp.lt.f32.partialorder %v1203, 0.0
    %vm1288 = vcmp.lt.f32.partialorder %v1204, 0.0
    %vm1289 = vcmp.lt.f32.partialorder %v1205, 0.0
    %vm1290 = vcmp.lt.f32.partialorder %v1206, 0.0
    %v1291 = vsub.f32 0.0, %v1283
    %v1292 = vsub.f32 0.0, %v1284
    %v1293 = vsub.f32 0.0, %v1285
    %v1294 = vsub.f32 0.0, %v1286
    %v1295 = vsel %vm1287, %v1291, %v1283
    %v1296 = vsel %vm1288, %v1292, %v1284
    %v1297 = vsel %vm1289, %v1293, %v1285
    %v1298 = vsel %vm1290, %v1294, %v1286
    %v1299 = vadd.f32 %v1295, 1.0
    %v1300 = vadd.f32 %v1296, 1.0
    %v1301 = vadd.f32 %v1297, 1.0
    %v1302 = vadd.f32 %v1298, 1.0
    %v1303 = vmul.f32 %v1199, %v1299
    %v1304 = vmul.f32 %v1200, %v1300
    %v1305 = vmul.f32 %v1201, %v1301
    %v1306 = vmul.f32 %v1202, %v1302
    %v1307 = vadd.f32 %v1303, %v892
    %v1308 = vadd.f32 %v1304, %v893
    %v1309 = vadd.f32 %v1305, %v894
    %v1310 = vadd.f32 %v1306, %v895
    %v1311 = vcombine.low %v892, %v893
    %v1312 = vcombine.low %v894, %v895
    %v1315 = vmul.f32 %v160, %v1311
    %v1316 = vmul.f32 %v161, %v1312
    %v1319 = vcombine.high %v1315, %v1315
    %v1320 = vcombine.high %v1316, %v1316
    %v1323 = vadd.f32 %v1307, %v1315
    %v1324 = vadd.f32 %v1308, %v1319
    %v1325 = vadd.f32 %v1309, %v1316
    %v1326 = vadd.f32 %v1310, %v1320
    %v1329 = vcombine.low %v1323, %v1324
    %1331 = vst [vmem:[%s15] sm:$0xff] %v1329
    %v1334 = vcombine.low %v1325, %v1326
    %s1336 = scalar_lea.vmem %s15, 8
    %1337 = vst [vmem:[%s1336] sm:$0xff] %v1334
    %v1338 = vld [vmem:[#allocation9] sm:$0xf]
    %1339 = vrot.lane.b32.xlu0 %v1323, 17
    %v1340 = vpop.permute.xlu0 %1339
    %1341 = vrot.lane.b32.xlu0 %v1324, 17
    %v1342 = vpop.permute.xlu0 %1341
    %1343 = vrot.lane.b32.xlu0 %v1325, 17
    %v1344 = vpop.permute.xlu0 %1343
    %1345 = vrot.lane.b32.xlu0 %v1326, 17
    %v1346 = vpop.permute.xlu0 %1345
    %v1347 = vsel %vm340, %v1344, %v1346
    %v1348 = vsel %vm340, %v1342, %v1344
    %v1349 = vsel %vm340, %v1340, %v1342
    %v1350 = vsel %vm340, %v1346, %v1340
    %v1351 = vmul.f32 %v1350, %v349
    %v1352 = vmul.f32 %v1349, %v353
    %v1353 = vmul.f32 %v1348, %v357
    %v1354 = vmul.f32 %v1347, %v361
    %1355 = vrot.lane.b32.xlu0 %v1323, 16
    %v1356 = vpop.permute.xlu0 %1355
    %1357 = vrot.lane.b32.xlu0 %v1324, 16
    %v1358 = vpop.permute.xlu0 %1357
    %1359 = vrot.lane.b32.xlu0 %v1325, 16
    %v1360 = vpop.permute.xlu0 %1359
    %1361 = vrot.lane.b32.xlu0 %v1326, 16
    %v1362 = vpop.permute.xlu0 %1361
    %v1363 = vsel %vm378, %v1360, %v1362
    %v1364 = vsel %vm378, %v1358, %v1360
    %v1365 = vsel %vm378, %v1356, %v1358
    %v1366 = vsel %vm378, %v1362, %v1356
    %v1367 = vmul.f32 %v1366, %v387
    %v1368 = vmul.f32 %v1365, %v391
    %v1369 = vmul.f32 %v1364, %v395
    %v1370 = vmul.f32 %v1363, %v399
    %1371 = vrot.lane.b32.xlu0 %v1323, 15
    %v1372 = vpop.permute.xlu0 %1371
    %1373 = vrot.lane.b32.xlu0 %v1324, 15
    %v1374 = vpop.permute.xlu0 %1373
    %1375 = vrot.lane.b32.xlu0 %v1325, 15
    %v1376 = vpop.permute.xlu0 %1375
    %1377 = vrot.lane.b32.xlu0 %v1326, 15
    %v1378 = vpop.permute.xlu0 %1377
    %v1379 = vsel %vm416, %v1376, %v1378
    %v1380 = vsel %vm416, %v1374, %v1376
    %v1381 = vsel %vm416, %v1372, %v1374
    %v1382 = vsel %vm416, %v1378, %v1372
    %v1383 = vmul.f32 %v1382, %v425
    %v1384 = vmul.f32 %v1381, %v429
    %v1385 = vmul.f32 %v1380, %v433
    %v1386 = vmul.f32 %v1379, %v437
    %1387 = vrot.lane.b32.xlu0 %v1323, 1
    %v1388 = vpop.permute.xlu0 %1387
    %1389 = vrot.lane.b32.xlu0 %v1324, 1
    %v1390 = vpop.permute.xlu0 %1389
    %1391 = vrot.lane.b32.xlu0 %v1325, 1
    %v1392 = vpop.permute.xlu0 %1391
    %1393 = vrot.lane.b32.xlu0 %v1326, 1
    %v1394 = vpop.permute.xlu0 %1393
    %v1395 = vsel %vm454, %v1392, %v1394
    %v1396 = vsel %vm454, %v1390, %v1392
    %v1397 = vsel %vm454, %v1388, %v1390
    %v1398 = vsel %vm454, %v1394, %v1388
    %v1399 = vmul.f32 %v1398, %v463
    %v1400 = vmul.f32 %v1397, %v467
    %v1401 = vmul.f32 %v1396, %v471
    %v1402 = vmul.f32 %v1395, %v475
    %1403 = vrot.lane.b32.xlu0 %v1323, 127
    %v1404 = vpop.permute.xlu0 %1403
    %1405 = vrot.lane.b32.xlu0 %v1324, 127
    %v1406 = vpop.permute.xlu0 %1405
    %1407 = vrot.lane.b32.xlu0 %v1325, 127
    %v1408 = vpop.permute.xlu0 %1407
    %1409 = vrot.lane.b32.xlu0 %v1326, 127
    %v1410 = vpop.permute.xlu0 %1409
    %v1411 = vsel %vm492, %v1408, %v1410
    %v1412 = vsel %vm492, %v1406, %v1408
    %v1413 = vsel %vm492, %v1404, %v1406
    %v1414 = vsel %vm492, %v1410, %v1404
    %v1415 = vmul.f32 %v1413, %v501
    %v1416 = vmul.f32 %v1412, %v505
    %v1417 = vmul.f32 %v1411, %v509
    %v1418 = vmul.f32 %v1414, %v513
    %1419 = vrot.lane.b32.xlu0 %v1323, 113
    %v1420 = vpop.permute.xlu0 %1419
    %1421 = vrot.lane.b32.xlu0 %v1324, 113
    %v1422 = vpop.permute.xlu0 %1421
    %1423 = vrot.lane.b32.xlu0 %v1325, 113
    %v1424 = vpop.permute.xlu0 %1423
    %1425 = vrot.lane.b32.xlu0 %v1326, 113
    %v1426 = vpop.permute.xlu0 %1425
    %v1427 = vsel %vm530, %v1424, %v1426
    %v1428 = vsel %vm530, %v1422, %v1424
    %v1429 = vsel %vm530, %v1420, %v1422
    %v1430 = vsel %vm530, %v1426, %v1420
    %v1431 = vmul.f32 %v1429, %v539
    %v1432 = vmul.f32 %v1428, %v543
    %v1433 = vmul.f32 %v1427, %v547
    %v1434 = vmul.f32 %v1430, %v551
    %1435 = vrot.lane.b32.xlu0 %v1323, 112
    %v1436 = vpop.permute.xlu0 %1435
    %1437 = vrot.lane.b32.xlu0 %v1324, 112
    %v1438 = vpop.permute.xlu0 %1437
    %1439 = vrot.lane.b32.xlu0 %v1325, 112
    %v1440 = vpop.permute.xlu0 %1439
    %1441 = vrot.lane.b32.xlu0 %v1326, 112
    %v1442 = vpop.permute.xlu0 %1441
    %v1443 = vsel %vm568, %v1440, %v1442
    %v1444 = vsel %vm568, %v1438, %v1440
    %v1445 = vsel %vm568, %v1436, %v1438
    %v1446 = vsel %vm568, %v1442, %v1436
    %v1447 = vmul.f32 %v1445, %v577
    %v1448 = vmul.f32 %v1444, %v581
    %v1449 = vmul.f32 %v1443, %v585
    %v1450 = vmul.f32 %v1446, %v589
    %1451 = vrot.lane.b32.xlu0 %v1323, 111
    %v1452 = vpop.permute.xlu0 %1451
    %1453 = vrot.lane.b32.xlu0 %v1324, 111
    %v1454 = vpop.permute.xlu0 %1453
    %1455 = vrot.lane.b32.xlu0 %v1325, 111
    %v1456 = vpop.permute.xlu0 %1455
    %1457 = vrot.lane.b32.xlu0 %v1326, 111
    %v1458 = vpop.permute.xlu0 %1457
    %v1459 = vsel %vm606, %v1456, %v1458
    %v1460 = vsel %vm606, %v1454, %v1456
    %v1461 = vsel %vm606, %v1452, %v1454
    %v1462 = vsel %vm606, %v1458, %v1452
    %v1463 = vmul.f32 %v1461, %v615
    %v1464 = vmul.f32 %v1460, %v619
    %v1465 = vmul.f32 %v1459, %v623
    %v1466 = vmul.f32 %v1462, %v627
    %v1471 = vrot.slane %v1367, 4
    %v1472 = vrot.slane %v1368, 4
    %v1473 = vrot.slane %v1369, 4
    %v1474 = vrot.slane %v1370, 4
    %v1483 = vrot.slane %v1399, 4
    %v1484 = vrot.slane %v1400, 4
    %v1485 = vrot.slane %v1401, 4
    %v1486 = vrot.slane %v1402, 4
    %v1495 = vrot.slane %v1415, 4
    %v1496 = vrot.slane %v1416, 4
    %v1497 = vrot.slane %v1417, 4
    %v1498 = vrot.slane %v1418, 4
    %v1507 = vrot.slane %v1447, 4
    %v1508 = vrot.slane %v1448, 4
    %v1509 = vrot.slane %v1449, 4
    %v1510 = vrot.slane %v1450, 4
    %v1515 = vsel %vm914, %v1351, %v1471
    %v1516 = vsel %vm914, %v1352, %v1472
    %v1517 = vsel %vm914, %v1353, %v1473
    %v1518 = vsel %vm914, %v1354, %v1474
    %v1519 = vsel %vm914, %v1383, %v1483
    %v1520 = vsel %vm914, %v1384, %v1484
    %v1521 = vsel %vm914, %v1385, %v1485
    %v1522 = vsel %vm914, %v1386, %v1486
    %v1523 = vsel %vm914, %v1323, %v1495
    %v1524 = vsel %vm914, %v1324, %v1496
    %v1525 = vsel %vm914, %v1325, %v1497
    %v1526 = vsel %vm914, %v1326, %v1498
    %v1527 = vsel %vm914, %v1431, %v1507
    %v1528 = vsel %vm914, %v1432, %v1508
    %v1529 = vsel %vm914, %v1433, %v1509
    %v1530 = vsel %vm914, %v1434, %v1510
    %v1531 = vld [vmem:[%s8] sm:$0xf]
    %1533 = vset.pattern.permute.xlu0 0
    %1534 = vperm.xlu0 %1533, %v1531
    %v1535 = vpop.permute.xlu0 %1534
    %vm1537 = vcmask 293888
    %v1539 = vsel %vm1537, %v1338, 0
    %v1542 = vsel %vm914, %v1463, 0
    %v1545 = vsel %vm914, %v1464, 0
    %v1548 = vsel %vm914, %v1465, 0
    %v1551 = vsel %vm914, %v1466, 0
    %1553 = vmatprep.subr.mxu0 0.0
    %1554 = vmatpush1.msra.mxu0 0.0
    %1555 = vmatprep.subr.mxu0 0.0
    %1556 = vmatpush1.msra.mxu0 0.0
    %1557 = vmatprep.subr.mxu0 0.0
    %1558 = vmatpush1.msra.mxu0 0.0
    %1559 = vmatprep.subr.mxu0 0.0
    %1560 = vmatpush1.msra.mxu0 0.0
    %1561 = vmatprep.subr.mxu0 0.0
    %1562 = vmatpush1.msra.mxu0 0.0
    %1563 = vmatprep.subr.mxu0 0.0
    %1564 = vmatpush1.msra.mxu0 0.0
    %1565 = vmatprep.subr.mxu0 0.0
    %1566 = vmatpush1.msra.mxu0 0.0
    %1567 = vmatprep.subr.mxu0 0.0
    %1568 = vmatpush1.msra.mxu0 0.0
    %1569 = vmatprep.subr.mxu0 0.0
    %1570 = vmatpush1.msra.mxu0 0.0
    %1571 = vmatprep.subr.mxu0 0.0
    %1572 = vmatpush1.msra.mxu0 0.0
    %1573 = vmatprep.subr.mxu0 0.0
    %1574 = vmatpush1.msra.mxu0 0.0
    %1575 = vmatprep.subr.mxu0 %v1545
    %1576 = vmatpush1.msra.mxu0 %v1542
    %1577 = vmatprep.subr.mxu0 %v1528
    %1578 = vmatpush1.msra.mxu0 %v1527
    %1579 = vmatprep.subr.mxu0 %v1524
    %1580 = vmatpush1.msra.mxu0 %v1523
    %1581 = vmatprep.subr.mxu0 %v1520
    %1582 = vmatpush1.msra.mxu0 %v1519
    %1583 = vmatprep.subr.mxu0 %v1516
    %1584 = vmatpush1.msra.mxu0 %v1515
    %1585 = vmatprep.subr.mxu0 0.0
    %1586 = vmatpush2.msra.mxu0 0.0
    %1587 = vmatprep.subr.mxu0 0.0
    %1588 = vmatpush2.msra.mxu0 0.0
    %1589 = vmatprep.subr.mxu0 0.0
    %1590 = vmatpush2.msra.mxu0 0.0
    %1591 = vmatprep.subr.mxu0 0.0
    %1592 = vmatpush2.msra.mxu0 0.0
    %1593 = vmatprep.subr.mxu0 0.0
    %1594 = vmatpush2.msra.mxu0 0.0
    %1595 = vmatprep.subr.mxu0 0.0
    %1596 = vmatpush2.msra.mxu0 0.0
    %1597 = vmatprep.subr.mxu0 0.0
    %1598 = vmatpush2.msra.mxu0 0.0
    %1599 = vmatprep.subr.mxu0 0.0
    %1600 = vmatpush2.msra.mxu0 0.0
    %1601 = vmatprep.subr.mxu0 0.0
    %1602 = vmatpush2.msra.mxu0 0.0
    %1603 = vmatprep.subr.mxu0 0.0
    %1604 = vmatpush2.msra.mxu0 0.0
    %1605 = vmatprep.subr.mxu0 0.0
    %1606 = vmatpush2.msra.mxu0 0.0
    %1607 = vmatprep.subr.mxu0 0.0
    %1608 = vmatpush2.msra.mxu0 0.0
    %1609 = vmatprep.subr.mxu0 0.0
    %1610 = vmatpush2.msra.mxu0 0.0
    %1611 = vmatprep.subr.mxu0 0.0
    %1612 = vmatpush2.msra.mxu0 0.0
    %1613 = vmatprep.subr.mxu0 0.0
    %1614 = vmatpush2.msra.mxu0 0.0
    %1615 = vmatprep.subr.mxu0 0.0
    %1616 = vmatpush2.msra.mxu0 0.0
    %1617 = vmatprep.mubr.f32.mxu0 0.0
    %1618 = vmatmul.mubr.f32.gmra.mxu0 %v1539
    %v1619 = vpop.f32.mrf.mxu0
    %v1620 = vadd.f32 %v1535, %v1619
    %v1621 = vpop.f32.mrf.mxu0
    %v1622 = vadd.f32 %v1535, %v1621
    %1623 = vdwg.mxu0
    %1624 = vmatprep.subr.mxu0 0.0
    %1625 = vmatpush1.msra.mxu0 0.0
    %1626 = vmatprep.subr.mxu0 0.0
    %1627 = vmatpush1.msra.mxu0 0.0
    %1628 = vmatprep.subr.mxu0 0.0
    %1629 = vmatpush1.msra.mxu0 0.0
    %1630 = vmatprep.subr.mxu0 0.0
    %1631 = vmatpush1.msra.mxu0 0.0
    %1632 = vmatprep.subr.mxu0 0.0
    %1633 = vmatpush1.msra.mxu0 0.0
    %1634 = vmatprep.subr.mxu0 0.0
    %1635 = vmatpush1.msra.mxu0 0.0
    %1636 = vmatprep.subr.mxu0 0.0
    %1637 = vmatpush1.msra.mxu0 0.0
    %1638 = vmatprep.subr.mxu0 0.0
    %1639 = vmatpush1.msra.mxu0 0.0
    %1640 = vmatprep.subr.mxu0 0.0
    %1641 = vmatpush1.msra.mxu0 0.0
    %1642 = vmatprep.subr.mxu0 0.0
    %1643 = vmatpush1.msra.mxu0 0.0
    %1644 = vmatprep.subr.mxu0 0.0
    %1645 = vmatpush1.msra.mxu0 0.0
    %1646 = vmatprep.subr.mxu0 %v1551
    %1647 = vmatpush1.msra.mxu0 %v1548
    %1648 = vmatprep.subr.mxu0 %v1530
    %1649 = vmatpush1.msra.mxu0 %v1529
    %1650 = vmatprep.subr.mxu0 %v1526
    %1651 = vmatpush1.msra.mxu0 %v1525
    %1652 = vmatprep.subr.mxu0 %v1522
    %1653 = vmatpush1.msra.mxu0 %v1521
    %1654 = vmatprep.subr.mxu0 %v1518
    %1655 = vmatpush1.msra.mxu0 %v1517
    %1656 = vmatprep.subr.mxu0 0.0
    %1657 = vmatpush2.msra.mxu0 0.0
    %1658 = vmatprep.subr.mxu0 0.0
    %1659 = vmatpush2.msra.mxu0 0.0
    %1660 = vmatprep.subr.mxu0 0.0
    %1661 = vmatpush2.msra.mxu0 0.0
    %1662 = vmatprep.subr.mxu0 0.0
    %1663 = vmatpush2.msra.mxu0 0.0
    %1664 = vmatprep.subr.mxu0 0.0
    %1665 = vmatpush2.msra.mxu0 0.0
    %1666 = vmatprep.subr.mxu0 0.0
    %1667 = vmatpush2.msra.mxu0 0.0
    %1668 = vmatprep.subr.mxu0 0.0
    %1669 = vmatpush2.msra.mxu0 0.0
    %1670 = vmatprep.subr.mxu0 0.0
    %1671 = vmatpush2.msra.mxu0 0.0
    %1672 = vmatprep.subr.mxu0 0.0
    %1673 = vmatpush2.msra.mxu0 0.0
    %1674 = vmatprep.subr.mxu0 0.0
    %1675 = vmatpush2.msra.mxu0 0.0
    %1676 = vmatprep.subr.mxu0 0.0
    %1677 = vmatpush2.msra.mxu0 0.0
    %1678 = vmatprep.subr.mxu0 0.0
    %1679 = vmatpush2.msra.mxu0 0.0
    %1680 = vmatprep.subr.mxu0 0.0
    %1681 = vmatpush2.msra.mxu0 0.0
    %1682 = vmatprep.subr.mxu0 0.0
    %1683 = vmatpush2.msra.mxu0 0.0
    %1684 = vmatprep.subr.mxu0 0.0
    %1685 = vmatpush2.msra.mxu0 0.0
    %1686 = vmatprep.subr.mxu0 0.0
    %1687 = vmatpush2.msra.mxu0 0.0
    %1688 = vmatprep.mubr.f32.mxu0 0.0
    %1689 = vmatmul.mubr.f32.gmra.mxu0 %v1539
    %v1690 = vpop.f32.mrf.mxu0
    %v1691 = vadd.f32 %v1535, %v1690
    %v1692 = vpop.f32.mrf.mxu0
    %v1693 = vadd.f32 %v1535, %v1692
    %1694 = vdwg.mxu0
    %v1695 = vmul.f32 %v1620, 0.5
    %v1696 = vmul.f32 %v1622, 0.5
    %v1697 = vmul.f32 %v1691, 0.5
    %v1698 = vmul.f32 %v1693, 0.5
    %v1699 = vmul.f32 %v1620, 0.70710677
    %v1700 = vmul.f32 %v1622, 0.70710677
    %v1701 = vmul.f32 %v1691, 0.70710677
    %v1702 = vmul.f32 %v1693, 0.70710677
    %v1703 = vand.u32 2147483647, %v1699
    %v1704 = vand.u32 2147483647, %v1700
    %v1705 = vand.u32 2147483647, %v1701
    %v1706 = vand.u32 2147483647, %v1702
    %v1707 = vmul.f32 %v1703, 0.3275911
    %v1708 = vmul.f32 %v1704, 0.3275911
    %v1709 = vmul.f32 %v1705, 0.3275911
    %v1710 = vmul.f32 %v1706, 0.3275911
    %v1711 = vadd.f32 %v1707, 1.0
    %v1712 = vadd.f32 %v1708, 1.0
    %v1713 = vadd.f32 %v1709, 1.0
    %v1714 = vadd.f32 %v1710, 1.0
    %v1715 = vrcp.pop %v1711
    %v1716 = vmul.f32 1.0, %v1715
    %v1717 = vrcp.pop %v1712
    %v1718 = vmul.f32 1.0, %v1717
    %v1719 = vrcp.pop %v1713
    %v1720 = vmul.f32 1.0, %v1719
    %v1721 = vrcp.pop %v1714
    %v1722 = vmul.f32 1.0, %v1721
    %v1723 = vmul.f32 %v1716, 1.0614054
    %v1724 = vmul.f32 %v1718, 1.0614054
    %v1725 = vmul.f32 %v1720, 1.0614054
    %v1726 = vmul.f32 %v1722, 1.0614054
    %v1727 = vadd.f32 %v1723, -1.4531521
    %v1728 = vadd.f32 %v1724, -1.4531521
    %v1729 = vadd.f32 %v1725, -1.4531521
    %v1730 = vadd.f32 %v1726, -1.4531521
    %v1731 = vmul.f32 %v1716, %v1727
    %v1732 = vmul.f32 %v1718, %v1728
    %v1733 = vmul.f32 %v1720, %v1729
    %v1734 = vmul.f32 %v1722, %v1730
    %v1735 = vadd.f32 %v1731, 1.4214138
    %v1736 = vadd.f32 %v1732, 1.4214138
    %v1737 = vadd.f32 %v1733, 1.4214138
    %v1738 = vadd.f32 %v1734, 1.4214138
    %v1739 = vmul.f32 %v1716, %v1735
    %v1740 = vmul.f32 %v1718, %v1736
    %v1741 = vmul.f32 %v1720, %v1737
    %v1742 = vmul.f32 %v1722, %v1738
    %v1743 = vadd.f32 %v1739, -0.28449672
    %v1744 = vadd.f32 %v1740, -0.28449672
    %v1745 = vadd.f32 %v1741, -0.28449672
    %v1746 = vadd.f32 %v1742, -0.28449672
    %v1747 = vmul.f32 %v1716, %v1743
    %v1748 = vmul.f32 %v1718, %v1744
    %v1749 = vmul.f32 %v1720, %v1745
    %v1750 = vmul.f32 %v1722, %v1746
    %v1751 = vadd.f32 %v1747, 0.2548296
    %v1752 = vadd.f32 %v1748, 0.2548296
    %v1753 = vadd.f32 %v1749, 0.2548296
    %v1754 = vadd.f32 %v1750, 0.2548296
    %v1755 = vmul.f32 %v1716, %v1751
    %v1756 = vmul.f32 %v1718, %v1752
    %v1757 = vmul.f32 %v1720, %v1753
    %v1758 = vmul.f32 %v1722, %v1754
    %v1759 = vsub.f32 0.0, %v1703
    %v1760 = vsub.f32 0.0, %v1704
    %v1761 = vsub.f32 0.0, %v1705
    %v1762 = vsub.f32 0.0, %v1706
    %v1763 = vmul.f32 %v1759, %v1703
    %v1764 = vmul.f32 %v1760, %v1704
    %v1765 = vmul.f32 %v1761, %v1705
    %v1766 = vmul.f32 %v1762, %v1706
    %v1767 = vmul.f32 %v1763, 1.442695
    %v1768 = vpow.pop %v1767
    %v1769 = vmul.f32 %v1764, 1.442695
    %v1770 = vpow.pop %v1769
    %v1771 = vmul.f32 %v1765, 1.442695
    %v1772 = vpow.pop %v1771
    %v1773 = vmul.f32 %v1766, 1.442695
    %v1774 = vpow.pop %v1773
    %v1775 = vmul.f32 %v1755, %v1768
    %v1776 = vmul.f32 %v1756, %v1770
    %v1777 = vmul.f32 %v1757, %v1772
    %v1778 = vmul.f32 %v1758, %v1774
    %v1779 = vsub.f32 1.0, %v1775
    %v1780 = vsub.f32 1.0, %v1776
    %v1781 = vsub.f32 1.0, %v1777
    %v1782 = vsub.f32 1.0, %v1778
    %vm1783 = vcmp.lt.f32.partialorder %v1699, 0.0
    %vm1784 = vcmp.lt.f32.partialorder %v1700, 0.0
    %vm1785 = vcmp.lt.f32.partialorder %v1701, 0.0
    %vm1786 = vcmp.lt.f32.partialorder %v1702, 0.0
    %v1787 = vsub.f32 0.0, %v1779
    %v1788 = vsub.f32 0.0, %v1780
    %v1789 = vsub.f32 0.0, %v1781
    %v1790 = vsub.f32 0.0, %v1782
    %v1791 = vsel %vm1783, %v1787, %v1779
    %v1792 = vsel %vm1784, %v1788, %v1780
    %v1793 = vsel %vm1785, %v1789, %v1781
    %v1794 = vsel %vm1786, %v1790, %v1782
    %v1795 = vadd.f32 %v1791, 1.0
    %v1796 = vadd.f32 %v1792, 1.0
    %v1797 = vadd.f32 %v1793, 1.0
    %v1798 = vadd.f32 %v1794, 1.0
    %v1799 = vmul.f32 %v1695, %v1795
    %v1800 = vmul.f32 %v1696, %v1796
    %v1801 = vmul.f32 %v1697, %v1797
    %v1802 = vmul.f32 %v1698, %v1798
    %v1803 = vld [vmem:[#allocation11] sm:$0x1]
    %s1804 = sld [smem:[#allocation2]]
    %v1805 = vstv %s1804
    %vm1806 = vcmask 31744
    %v1808 = vsel %vm1806, %v1803, 0
    %v1811 = vsel %vm914, %v1799, 0
    %v1814 = vsel %vm914, %v1800, 0
    %v1817 = vsel %vm914, %v1801, 0
    %v1820 = vsel %vm914, %v1802, 0
    %1822 = vmatprep.subr.mxu0 0.0
    %1823 = vmatpush1.msra.mxu0 0.0
    %1824 = vmatprep.subr.mxu0 0.0
    %1825 = vmatpush1.msra.mxu0 0.0
    %1826 = vmatprep.subr.mxu0 0.0
    %1827 = vmatpush1.msra.mxu0 0.0
    %1828 = vmatprep.subr.mxu0 0.0
    %1829 = vmatpush1.msra.mxu0 0.0
    %1830 = vmatprep.subr.mxu0 0.0
    %1831 = vmatpush1.msra.mxu0 0.0
    %1832 = vmatprep.subr.mxu0 0.0
    %1833 = vmatpush1.msra.mxu0 0.0
    %1834 = vmatprep.subr.mxu0 0.0
    %1835 = vmatpush1.msra.mxu0 0.0
    %1836 = vmatprep.subr.mxu0 0.0
    %1837 = vmatpush1.msra.mxu0 0.0
    %1838 = vmatprep.subr.mxu0 0.0
    %1839 = vmatpush1.msra.mxu0 0.0
    %1840 = vmatprep.subr.mxu0 0.0
    %1841 = vmatpush1.msra.mxu0 0.0
    %1842 = vmatprep.subr.mxu0 0.0
    %1843 = vmatpush1.msra.mxu0 0.0
    %1844 = vmatprep.subr.mxu0 0.0
    %1845 = vmatpush1.msra.mxu0 0.0
    %1846 = vmatprep.subr.mxu0 0.0
    %1847 = vmatpush1.msra.mxu0 0.0
    %1848 = vmatprep.subr.mxu0 0.0
    %1849 = vmatpush1.msra.mxu0 0.0
    %1850 = vmatprep.subr.mxu0 0.0
    %1851 = vmatpush1.msra.mxu0 0.0
    %1852 = vmatprep.subr.mxu0 %v1814
    %1853 = vmatpush1.msra.mxu0 %v1811
    %1854 = vmatprep.subr.mxu0 0.0
    %1855 = vmatpush2.msra.mxu0 0.0
    %1856 = vmatprep.subr.mxu0 0.0
    %1857 = vmatpush2.msra.mxu0 0.0
    %1858 = vmatprep.subr.mxu0 0.0
    %1859 = vmatpush2.msra.mxu0 0.0
    %1860 = vmatprep.subr.mxu0 0.0
    %1861 = vmatpush2.msra.mxu0 0.0
    %1862 = vmatprep.subr.mxu0 0.0
    %1863 = vmatpush2.msra.mxu0 0.0
    %1864 = vmatprep.subr.mxu0 0.0
    %1865 = vmatpush2.msra.mxu0 0.0
    %1866 = vmatprep.subr.mxu0 0.0
    %1867 = vmatpush2.msra.mxu0 0.0
    %1868 = vmatprep.subr.mxu0 0.0
    %1869 = vmatpush2.msra.mxu0 0.0
    %1870 = vmatprep.subr.mxu0 0.0
    %1871 = vmatpush2.msra.mxu0 0.0
    %1872 = vmatprep.subr.mxu0 0.0
    %1873 = vmatpush2.msra.mxu0 0.0
    %1874 = vmatprep.subr.mxu0 0.0
    %1875 = vmatpush2.msra.mxu0 0.0
    %1876 = vmatprep.subr.mxu0 0.0
    %1877 = vmatpush2.msra.mxu0 0.0
    %1878 = vmatprep.subr.mxu0 0.0
    %1879 = vmatpush2.msra.mxu0 0.0
    %1880 = vmatprep.subr.mxu0 0.0
    %1881 = vmatpush2.msra.mxu0 0.0
    %1882 = vmatprep.subr.mxu0 0.0
    %1883 = vmatpush2.msra.mxu0 0.0
    %1884 = vmatprep.subr.mxu0 0.0
    %1885 = vmatpush2.msra.mxu0 0.0
    %1886 = vmatprep.mubr.f32.mxu0 0.0
    %1887 = vmatmul.mubr.f32.gmra.mxu0 %v1808
    %v1888 = vpop.f32.mrf.mxu0
    %v1889 = vadd.f32 %v1805, %v1888
    %v1890 = vpop.f32.mrf.mxu0
    %v1891 = vadd.f32 %v1805, %v1890
    %1892 = vdwg.mxu0
    %1893 = vmatprep.subr.mxu0 0.0
    %1894 = vmatpush1.msra.mxu0 0.0
    %1895 = vmatprep.subr.mxu0 0.0
    %1896 = vmatpush1.msra.mxu0 0.0
    %1897 = vmatprep.subr.mxu0 0.0
    %1898 = vmatpush1.msra.mxu0 0.0
    %1899 = vmatprep.subr.mxu0 0.0
    %1900 = vmatpush1.msra.mxu0 0.0
    %1901 = vmatprep.subr.mxu0 0.0
    %1902 = vmatpush1.msra.mxu0 0.0
    %1903 = vmatprep.subr.mxu0 0.0
    %1904 = vmatpush1.msra.mxu0 0.0
    %1905 = vmatprep.subr.mxu0 0.0
    %1906 = vmatpush1.msra.mxu0 0.0
    %1907 = vmatprep.subr.mxu0 0.0
    %1908 = vmatpush1.msra.mxu0 0.0
    %1909 = vmatprep.subr.mxu0 0.0
    %1910 = vmatpush1.msra.mxu0 0.0
    %1911 = vmatprep.subr.mxu0 0.0
    %1912 = vmatpush1.msra.mxu0 0.0
    %1913 = vmatprep.subr.mxu0 0.0
    %1914 = vmatpush1.msra.mxu0 0.0
    %1915 = vmatprep.subr.mxu0 0.0
    %1916 = vmatpush1.msra.mxu0 0.0
    %1917 = vmatprep.subr.mxu0 0.0
    %1918 = vmatpush1.msra.mxu0 0.0
    %1919 = vmatprep.subr.mxu0 0.0
    %1920 = vmatpush1.msra.mxu0 0.0
    %1921 = vmatprep.subr.mxu0 0.0
    %1922 = vmatpush1.msra.mxu0 0.0
    %1923 = vmatprep.subr.mxu0 %v1820
    %1924 = vmatpush1.msra.mxu0 %v1817
    %1925 = vmatprep.subr.mxu0 0.0
    %1926 = vmatpush2.msra.mxu0 0.0
    %1927 = vmatprep.subr.mxu0 0.0
    %1928 = vmatpush2.msra.mxu0 0.0
    %1929 = vmatprep.subr.mxu0 0.0
    %1930 = vmatpush2.msra.mxu0 0.0
    %1931 = vmatprep.subr.mxu0 0.0
    %1932 = vmatpush2.msra.mxu0 0.0
    %1933 = vmatprep.subr.mxu0 0.0
    %1934 = vmatpush2.msra.mxu0 0.0
    %1935 = vmatprep.subr.mxu0 0.0
    %1936 = vmatpush2.msra.mxu0 0.0
    %1937 = vmatprep.subr.mxu0 0.0
    %1938 = vmatpush2.msra.mxu0 0.0
    %1939 = vmatprep.subr.mxu0 0.0
    %1940 = vmatpush2.msra.mxu0 0.0
    %1941 = vmatprep.subr.mxu0 0.0
    %1942 = vmatpush2.msra.mxu0 0.0
    %1943 = vmatprep.subr.mxu0 0.0
    %1944 = vmatpush2.msra.mxu0 0.0
    %1945 = vmatprep.subr.mxu0 0.0
    %1946 = vmatpush2.msra.mxu0 0.0
    %1947 = vmatprep.subr.mxu0 0.0
    %1948 = vmatpush2.msra.mxu0 0.0
    %1949 = vmatprep.subr.mxu0 0.0
    %1950 = vmatpush2.msra.mxu0 0.0
    %1951 = vmatprep.subr.mxu0 0.0
    %1952 = vmatpush2.msra.mxu0 0.0
    %1953 = vmatprep.subr.mxu0 0.0
    %1954 = vmatpush2.msra.mxu0 0.0
    %1955 = vmatprep.subr.mxu0 0.0
    %1956 = vmatpush2.msra.mxu0 0.0
    %1957 = vmatprep.mubr.f32.mxu0 0.0
    %1958 = vmatmul.mubr.f32.gmra.mxu0 %v1808
    %v1959 = vpop.f32.mrf.mxu0
    %v1960 = vadd.f32 %v1805, %v1959
    %v1961 = vpop.f32.mrf.mxu0
    %v1962 = vadd.f32 %v1805, %v1961
    %1963 = vdwg.mxu0
    %v1964 = vld [vmem:[#allocation14] sm:$0xff]
    %v1965 = vld [vmem:[#allocation14 + $0x8] sm:$0xff]
    %v1966 = vld [vmem:[#allocation14 + $0x10] sm:$0xff]
    %v1967 = vld [vmem:[#allocation14 + $0x18] sm:$0xff]
    %v1968 = vld [vmem:[#allocation14 + $0x20] sm:$0xff]
    %v1969 = vld [vmem:[#allocation14 + $0x28] sm:$0xff]
    %v1970 = vld [vmem:[#allocation14 + $0x30] sm:$0xff]
    %v1971 = vld [vmem:[#allocation14 + $0x38] sm:$0xff]
    %v1972 = vld [vmem:[#allocation14 + $0x40] sm:$0xff]
    %v1973 = vld [vmem:[#allocation14 + $0x48] sm:$0xff]
    %v1974 = vld [vmem:[#allocation14 + $0x50] sm:$0xff]
    %v1975 = vld [vmem:[#allocation14 + $0x58] sm:$0xff]
    %v1976 = vld [vmem:[#allocation14 + $0x60] sm:$0xff]
    %v1977 = vld [vmem:[#allocation14 + $0x68] sm:$0xff]
    %v1978 = vld [vmem:[#allocation14 + $0x70] sm:$0xff]
    %v1979 = vld [vmem:[#allocation14 + $0x78] sm:$0xff]
    %v1980 = vld [vmem:[#allocation14 + $0x80] sm:$0xff]
    %v1981 = vld [vmem:[#allocation14 + $0x88] sm:$0xff]
    %v1982 = vld [vmem:[#allocation14 + $0x90] sm:$0xff]
    %v1983 = vld [vmem:[#allocation14 + $0x98] sm:$0xff]
    %v1984 = vld [vmem:[#allocation14 + $0xa0] sm:$0xff]
    %v1985 = vld [vmem:[#allocation14 + $0xa8] sm:$0xff]
    %v1986 = vld [vmem:[#allocation14 + $0xb0] sm:$0xff]
    %v1987 = vld [vmem:[#allocation14 + $0xb8] sm:$0xff]
    %v1988 = vld [vmem:[#allocation14 + $0xc0] sm:$0xff]
    %v1989 = vld [vmem:[#allocation14 + $0xc8] sm:$0xff]
    %v1990 = vld [vmem:[#allocation14 + $0xd0] sm:$0xff]
    %v1991 = vld [vmem:[#allocation14 + $0xd8] sm:$0xff]
    %v1992 = vld [vmem:[#allocation14 + $0xe0] sm:$0xff]
    %v1993 = vld [vmem:[#allocation14 + $0xe8] sm:$0xff]
    %v1994 = vld [vmem:[#allocation14 + $0xf0] sm:$0xff]
    %v1995 = vld [vmem:[#allocation14 + $0xf8] sm:$0xff]
    %v1996 = vld [vmem:[#allocation14 + $0x100] sm:$0xff]
    %v1997 = vld [vmem:[#allocation14 + $0x108] sm:$0xff]
    %v1998 = vld [vmem:[#allocation14 + $0x110] sm:$0xff]
    %v1999 = vld [vmem:[#allocation14 + $0x118] sm:$0xff]
    %v2000 = vld [vmem:[#allocation14 + $0x120] sm:$0xff]
    %v2001 = vld [vmem:[#allocation14 + $0x128] sm:$0xff]
    %v2002 = vld [vmem:[#allocation14 + $0x130] sm:$0xff]
    %v2003 = vld [vmem:[#allocation14 + $0x138] sm:$0xff]
    %v2004 = vld [vmem:[#allocation14 + $0x140] sm:$0xff]
    %v2005 = vld [vmem:[#allocation14 + $0x148] sm:$0xff]
    %v2006 = vld [vmem:[#allocation14 + $0x150] sm:$0xff]
    %v2007 = vld [vmem:[#allocation14 + $0x158] sm:$0xff]
    %v2008 = vld [vmem:[#allocation14 + $0x160] sm:$0xff]
    %v2009 = vld [vmem:[#allocation14 + $0x168] sm:$0xff]
    %v2010 = vld [vmem:[#allocation14 + $0x170] sm:$0xff]
    %v2011 = vld [vmem:[#allocation14 + $0x178] sm:$0xff]
    %v2012 = vld [vmem:[#allocation14 + $0x180] sm:$0xff]
    %v2013 = vld [vmem:[#allocation14 + $0x188] sm:$0xff]
    %v2014 = vld [vmem:[#allocation14 + $0x190] sm:$0xff]
    %v2015 = vld [vmem:[#allocation14 + $0x198] sm:$0xff]
    %v2016 = vld [vmem:[#allocation14 + $0x1a0] sm:$0xff]
    %v2017 = vld [vmem:[#allocation14 + $0x1a8] sm:$0xff]
    %v2018 = vld [vmem:[#allocation14 + $0x1b0] sm:$0xff]
    %v2019 = vld [vmem:[#allocation14 + $0x1b8] sm:$0xff]
    %v2020 = vld [vmem:[#allocation14 + $0x1c0] sm:$0xff]
    %v2021 = vld [vmem:[#allocation14 + $0x1c8] sm:$0xff]
    %v2022 = vld [vmem:[#allocation14 + $0x1d0] sm:$0xff]
    %v2023 = vld [vmem:[#allocation14 + $0x1d8] sm:$0xff]
    %v2024 = vld [vmem:[#allocation14 + $0x1e0] sm:$0xff]
    %v2025 = vld [vmem:[#allocation14 + $0x1e8] sm:$0xff]
    %v2026 = vld [vmem:[#allocation14 + $0x1f0] sm:$0xff]
    %v2027 = vld [vmem:[#allocation14 + $0x1f8] sm:$0xff]
    %v2028 = vld [vmem:[#allocation14 + $0x200] sm:$0xff]
    %v2029 = vld [vmem:[#allocation14 + $0x208] sm:$0xff]
    %v2030 = vld [vmem:[#allocation14 + $0x210] sm:$0xff]
    %v2031 = vld [vmem:[#allocation14 + $0x218] sm:$0xff]
    %v2032 = vld [vmem:[#allocation14 + $0x220] sm:$0xff]
    %v2033 = vld [vmem:[#allocation14 + $0x228] sm:$0xff]
    %v2034 = vld [vmem:[#allocation14 + $0x230] sm:$0xff]
    %v2035 = vld [vmem:[#allocation14 + $0x238] sm:$0xff]
    %v2036 = vld [vmem:[#allocation14 + $0x240] sm:$0xff]
    %v2037 = vld [vmem:[#allocation14 + $0x248] sm:$0xff]
    %v2038 = vld [vmem:[#allocation14 + $0x250] sm:$0xff]
    %v2039 = vld [vmem:[#allocation14 + $0x258] sm:$0xff]
    %v2040 = vld [vmem:[#allocation14 + $0x260] sm:$0xff]
    %v2041 = vld [vmem:[#allocation14 + $0x268] sm:$0xff]
    %v2042 = vld [vmem:[#allocation14 + $0x270] sm:$0xff]
    %v2043 = vld [vmem:[#allocation14 + $0x278] sm:$0xff]
    %v2044 = vld [vmem:[#allocation14 + $0x280] sm:$0xff]
    %v2045 = vld [vmem:[#allocation14 + $0x288] sm:$0xff]
    %v2046 = vld [vmem:[#allocation14 + $0x290] sm:$0xff]
    %v2047 = vld [vmem:[#allocation14 + $0x298] sm:$0xff]
    %v2048 = vld [vmem:[#allocation14 + $0x2a0] sm:$0xff]
    %v2049 = vld [vmem:[#allocation14 + $0x2a8] sm:$0xff]
    %v2050 = vld [vmem:[#allocation14 + $0x2b0] sm:$0xff]
    %v2051 = vld [vmem:[#allocation14 + $0x2b8] sm:$0xff]
    %v2052 = vld [vmem:[#allocation15] sm:$0xff]
    %v2053 = vld [vmem:[#allocation15 + $0x8] sm:$0xff]
    %v2054 = vld [vmem:[#allocation15 + $0x10] sm:$0xff]
    %v2055 = vld [vmem:[#allocation15 + $0x18] sm:$0xff]
    %v2056 = vld [vmem:[#allocation15 + $0x20] sm:$0xff]
    %v2057 = vld [vmem:[#allocation15 + $0x28] sm:$0xff]
    %v2058 = vld [vmem:[#allocation15 + $0x30] sm:$0xff]
    %v2059 = vld [vmem:[#allocation15 + $0x38] sm:$0xff]
    %v2060 = vld [vmem:[#allocation15 + $0x40] sm:$0xff]
    %v2061 = vld [vmem:[#allocation15 + $0x48] sm:$0xff]
    %v2062 = vld [vmem:[#allocation15 + $0x50] sm:$0xff]
    %v2063 = vld [vmem:[#allocation15 + $0x58] sm:$0xff]
    %v2064 = vld [vmem:[#allocation15 + $0x60] sm:$0xff]
    %v2065 = vld [vmem:[#allocation15 + $0x68] sm:$0xff]
    %v2066 = vld [vmem:[#allocation15 + $0x70] sm:$0xff]
    %v2067 = vld [vmem:[#allocation15 + $0x78] sm:$0xff]
    %v2068 = vld [vmem:[#allocation15 + $0x80] sm:$0xff]
    %v2069 = vld [vmem:[#allocation15 + $0x88] sm:$0xff]
    %v2070 = vld [vmem:[#allocation15 + $0x90] sm:$0xff]
    %v2071 = vld [vmem:[#allocation15 + $0x98] sm:$0xff]
    %v2072 = vld [vmem:[#allocation15 + $0xa0] sm:$0xff]
    %v2073 = vld [vmem:[#allocation15 + $0xa8] sm:$0xff]
    %v2074 = vld [vmem:[#allocation15 + $0xb0] sm:$0xff]
    %v2075 = vld [vmem:[#allocation15 + $0xb8] sm:$0xff]
    %v2076 = vld [vmem:[#allocation15 + $0xc0] sm:$0xff]
    %v2077 = vld [vmem:[#allocation15 + $0xc8] sm:$0xff]
    %v2078 = vld [vmem:[#allocation15 + $0xd0] sm:$0xff]
    %v2079 = vld [vmem:[#allocation15 + $0xd8] sm:$0xff]
    %v2080 = vld [vmem:[#allocation15 + $0xe0] sm:$0xff]
    %v2081 = vld [vmem:[#allocation15 + $0xe8] sm:$0xff]
    %v2082 = vld [vmem:[#allocation15 + $0xf0] sm:$0xff]
    %v2083 = vld [vmem:[#allocation15 + $0xf8] sm:$0xff]
    %v2084 = vld [vmem:[#allocation15 + $0x100] sm:$0xff]
    %v2085 = vld [vmem:[#allocation15 + $0x108] sm:$0xff]
    %v2086 = vld [vmem:[#allocation15 + $0x110] sm:$0xff]
    %v2087 = vld [vmem:[#allocation15 + $0x118] sm:$0xff]
    %v2088 = vld [vmem:[#allocation15 + $0x120] sm:$0xff]
    %v2089 = vld [vmem:[#allocation15 + $0x128] sm:$0xff]
    %v2090 = vld [vmem:[#allocation15 + $0x130] sm:$0xff]
    %v2091 = vld [vmem:[#allocation15 + $0x138] sm:$0xff]
    %v2092 = vld [vmem:[#allocation15 + $0x140] sm:$0xff]
    %v2093 = vld [vmem:[#allocation15 + $0x148] sm:$0xff]
    %v2094 = vld [vmem:[#allocation15 + $0x150] sm:$0xff]
    %v2095 = vld [vmem:[#allocation15 + $0x158] sm:$0xff]
    %v2096 = vld [vmem:[#allocation15 + $0x160] sm:$0xff]
    %v2097 = vld [vmem:[#allocation15 + $0x168] sm:$0xff]
    %v2098 = vld [vmem:[#allocation15 + $0x170] sm:$0xff]
    %v2099 = vld [vmem:[#allocation15 + $0x178] sm:$0xff]
    %v2100 = vld [vmem:[#allocation15 + $0x180] sm:$0xff]
    %v2101 = vld [vmem:[#allocation15 + $0x188] sm:$0xff]
    %v2102 = vld [vmem:[#allocation15 + $0x190] sm:$0xff]
    %v2103 = vld [vmem:[#allocation15 + $0x198] sm:$0xff]
    %v2104 = vld [vmem:[#allocation15 + $0x1a0] sm:$0xff]
    %v2105 = vld [vmem:[#allocation15 + $0x1a8] sm:$0xff]
    %v2106 = vld [vmem:[#allocation15 + $0x1b0] sm:$0xff]
    %v2107 = vld [vmem:[#allocation15 + $0x1b8] sm:$0xff]
    %v2108 = vld [vmem:[#allocation15 + $0x1c0] sm:$0xff]
    %v2109 = vld [vmem:[#allocation15 + $0x1c8] sm:$0xff]
    %v2110 = vld [vmem:[#allocation15 + $0x1d0] sm:$0xff]
    %v2111 = vld [vmem:[#allocation15 + $0x1d8] sm:$0xff]
    %v2112 = vld [vmem:[#allocation15 + $0x1e0] sm:$0xff]
    %v2113 = vld [vmem:[#allocation15 + $0x1e8] sm:$0xff]
    %v2114 = vld [vmem:[#allocation15 + $0x1f0] sm:$0xff]
    %v2115 = vld [vmem:[#allocation15 + $0x1f8] sm:$0xff]
    %v2116 = vld [vmem:[#allocation15 + $0x200] sm:$0xff]
    %v2117 = vld [vmem:[#allocation15 + $0x208] sm:$0xff]
    %v2118 = vld [vmem:[#allocation15 + $0x210] sm:$0xff]
    %v2119 = vld [vmem:[#allocation15 + $0x218] sm:$0xff]
    %v2120 = vld [vmem:[#allocation15 + $0x220] sm:$0xff]
    %v2121 = vld [vmem:[#allocation15 + $0x228] sm:$0xff]
    %v2122 = vld [vmem:[#allocation15 + $0x230] sm:$0xff]
    %v2123 = vld [vmem:[#allocation15 + $0x238] sm:$0xff]
    %v2124 = vld [vmem:[#allocation15 + $0x240] sm:$0xff]
    %v2125 = vld [vmem:[#allocation15 + $0x248] sm:$0xff]
    %v2126 = vld [vmem:[#allocation15 + $0x250] sm:$0xff]
    %v2127 = vld [vmem:[#allocation15 + $0x258] sm:$0xff]
    %v2128 = vld [vmem:[#allocation15 + $0x260] sm:$0xff]
    %v2129 = vld [vmem:[#allocation15 + $0x268] sm:$0xff]
    %v2130 = vld [vmem:[#allocation15 + $0x270] sm:$0xff]
    %v2131 = vld [vmem:[#allocation15 + $0x278] sm:$0xff]
    %v2132 = vld [vmem:[#allocation15 + $0x280] sm:$0xff]
    %v2133 = vld [vmem:[#allocation15 + $0x288] sm:$0xff]
    %v2134 = vld [vmem:[#allocation15 + $0x290] sm:$0xff]
    %v2135 = vld [vmem:[#allocation15 + $0x298] sm:$0xff]
    %v2136 = vld [vmem:[#allocation15 + $0x2a0] sm:$0xff]
    %v2137 = vld [vmem:[#allocation15 + $0x2a8] sm:$0xff]
    %v2138 = vld [vmem:[#allocation15 + $0x2b0] sm:$0xff]
    %v2139 = vld [vmem:[#allocation15 + $0x2b8] sm:$0xff]
    %v2140 = vld [vmem:[#allocation15 + $0x2c0] sm:$0xff]
    %v2141 = vld [vmem:[#allocation15 + $0x2c8] sm:$0xff]
    %v2142 = vld [vmem:[#allocation15 + $0x2d0] sm:$0xff]
    %v2143 = vld [vmem:[#allocation15 + $0x2d8] sm:$0xff]
    %v2144 = vld [vmem:[#allocation15 + $0x2e0] sm:$0xff]
    %v2145 = vld [vmem:[#allocation15 + $0x2e8] sm:$0xff]
    %v2146 = vld [vmem:[#allocation15 + $0x2f0] sm:$0xff]
    %v2147 = vld [vmem:[#allocation15 + $0x2f8] sm:$0xff]
    %v2148 = vlaneseq
    %v2149 = vshrl.u32 %v2148, 7
    %v2150 = vsub.s32 0, %v2149
    %v2151 = vrot.slane %v1889, %v2150
    %v2152 = vlaneseq
    %v2153 = vshrl.u32 %v2152, 7
    %v2154 = vsub.s32 0, %v2153
    %v2155 = vrot.slane %v1891, %v2154
    %v2156 = vmul.f32 %v1964, %v2151
    %v2157 = vmul.f32 %v1965, %v2155
    %v2158 = vmul.f32 %v1966, %v2151
    %v2159 = vmul.f32 %v1967, %v2155
    %v2160 = vmul.f32 %v1968, %v2151
    %v2161 = vmul.f32 %v1969, %v2155
    %v2162 = vmul.f32 %v1970, %v2151
    %v2163 = vmul.f32 %v1971, %v2155
    %v2164 = vmul.f32 %v1972, %v2151
    %v2165 = vmul.f32 %v1973, %v2155
    %v2166 = vmul.f32 %v1974, %v2151
    %v2167 = vmul.f32 %v1975, %v2155
    %v2168 = vmul.f32 %v1976, %v2151
    %v2169 = vmul.f32 %v1977, %v2155
    %v2170 = vmul.f32 %v1978, %v2151
    %v2171 = vmul.f32 %v1979, %v2155
    %v2172 = vmul.f32 %v1980, %v2151
    %v2173 = vmul.f32 %v1981, %v2155
    %v2174 = vmul.f32 %v1982, %v2151
    %v2175 = vmul.f32 %v1983, %v2155
    %v2176 = vmul.f32 %v1984, %v2151
    %v2177 = vmul.f32 %v1985, %v2155
    %v2178 = vmul.f32 %v1986, %v2151
    %v2179 = vmul.f32 %v1987, %v2155
    %v2180 = vmul.f32 %v1988, %v2151
    %v2181 = vmul.f32 %v1989, %v2155
    %v2182 = vmul.f32 %v1990, %v2151
    %v2183 = vmul.f32 %v1991, %v2155
    %v2184 = vmul.f32 %v1992, %v2151
    %v2185 = vmul.f32 %v1993, %v2155
    %v2186 = vmul.f32 %v1994, %v2151
    %v2187 = vmul.f32 %v1995, %v2155
    %v2188 = vmul.f32 %v1996, %v2151
    %v2189 = vmul.f32 %v1997, %v2155
    %v2190 = vmul.f32 %v1998, %v2151
    %v2191 = vmul.f32 %v1999, %v2155
    %v2192 = vmul.f32 %v2000, %v2151
    %v2193 = vmul.f32 %v2001, %v2155
    %v2194 = vmul.f32 %v2002, %v2151
    %v2195 = vmul.f32 %v2003, %v2155
    %v2196 = vmul.f32 %v2004, %v2151
    %v2197 = vmul.f32 %v2005, %v2155
    %v2198 = vmul.f32 %v2006, %v2151
    %v2199 = vmul.f32 %v2007, %v2155
    %v2200 = vmul.f32 %v2008, %v2151
    %v2201 = vmul.f32 %v2009, %v2155
    %v2202 = vmul.f32 %v2010, %v2151
    %v2203 = vmul.f32 %v2011, %v2155
    %v2204 = vmul.f32 %v2012, %v2151
    %v2205 = vmul.f32 %v2013, %v2155
    %v2206 = vmul.f32 %v2014, %v2151
    %v2207 = vmul.f32 %v2015, %v2155
    %v2208 = vmul.f32 %v2016, %v2151
    %v2209 = vmul.f32 %v2017, %v2155
    %v2210 = vmul.f32 %v2018, %v2151
    %v2211 = vmul.f32 %v2019, %v2155
    %v2212 = vmul.f32 %v2020, %v2151
    %v2213 = vmul.f32 %v2021, %v2155
    %v2214 = vmul.f32 %v2022, %v2151
    %v2215 = vmul.f32 %v2023, %v2155
    %v2216 = vmul.f32 %v2024, %v2151
    %v2217 = vmul.f32 %v2025, %v2155
    %v2218 = vmul.f32 %v2026, %v2151
    %v2219 = vmul.f32 %v2027, %v2155
    %v2220 = vmul.f32 %v2028, %v2151
    %v2221 = vmul.f32 %v2029, %v2155
    %v2222 = vmul.f32 %v2030, %v2151
    %v2223 = vmul.f32 %v2031, %v2155
    %v2224 = vmul.f32 %v2032, %v2151
    %v2225 = vmul.f32 %v2033, %v2155
    %v2226 = vmul.f32 %v2034, %v2151
    %v2227 = vmul.f32 %v2035, %v2155
    %v2228 = vmul.f32 %v2036, %v2151
    %v2229 = vmul.f32 %v2037, %v2155
    %v2230 = vmul.f32 %v2038, %v2151
    %v2231 = vmul.f32 %v2039, %v2155
    %v2232 = vmul.f32 %v2040, %v2151
    %v2233 = vmul.f32 %v2041, %v2155
    %v2234 = vmul.f32 %v2042, %v2151
    %v2235 = vmul.f32 %v2043, %v2155
    %v2236 = vmul.f32 %v2044, %v2151
    %v2237 = vmul.f32 %v2045, %v2155
    %v2238 = vmul.f32 %v2046, %v2151
    %v2239 = vmul.f32 %v2047, %v2155
    %v2240 = vmul.f32 %v2048, %v2151
    %v2241 = vmul.f32 %v2049, %v2155
    %v2242 = vmul.f32 %v2050, %v2151
    %v2243 = vmul.f32 %v2051, %v2155
    %2244 = vmatprep.subr.mxu0 %v2098
    %2245 = vmatpush1.msra.mxu0 %v2097
    %2246 = vmatprep.subr.mxu0 %v2095
    %2247 = vmatpush1.msra.mxu0 %v2094
    %2248 = vmatprep.subr.mxu0 %v2092
    %2249 = vmatpush1.msra.mxu0 %v2091
    %2250 = vmatprep.subr.mxu0 %v2089
    %2251 = vmatpush1.msra.mxu0 %v2088
    %2252 = vmatprep.subr.mxu0 %v2086
    %2253 = vmatpush1.msra.mxu0 %v2085
    %2254 = vmatprep.subr.mxu0 %v2083
    %2255 = vmatpush1.msra.mxu0 %v2082
    %2256 = vmatprep.subr.mxu0 %v2080
    %2257 = vmatpush1.msra.mxu0 %v2079
    %2258 = vmatprep.subr.mxu0 %v2077
    %2259 = vmatpush1.msra.mxu0 %v2076
    %2260 = vmatprep.subr.mxu0 %v2074
    %2261 = vmatpush1.msra.mxu0 %v2073
    %2262 = vmatprep.subr.mxu0 %v2071
    %2263 = vmatpush1.msra.mxu0 %v2070
    %2264 = vmatprep.subr.mxu0 %v2068
    %2265 = vmatpush1.msra.mxu0 %v2067
    %2266 = vmatprep.subr.mxu0 %v2065
    %2267 = vmatpush1.msra.mxu0 %v2064
    %2268 = vmatprep.subr.mxu0 %v2062
    %2269 = vmatpush1.msra.mxu0 %v2061
    %2270 = vmatprep.subr.mxu0 %v2059
    %2271 = vmatpush1.msra.mxu0 %v2058
    %2272 = vmatprep.subr.mxu0 %v2056
    %2273 = vmatpush1.msra.mxu0 %v2055
    %2274 = vmatprep.subr.mxu0 %v2053
    %2275 = vmatpush1.msra.mxu0 %v2052
    %2276 = vmatprep.subr.mxu0 %v2146
    %2277 = vmatpush2.msra.mxu0 %v2145
    %2278 = vmatprep.subr.mxu0 %v2143
    %2279 = vmatpush2.msra.mxu0 %v2142
    %2280 = vmatprep.subr.mxu0 %v2140
    %2281 = vmatpush2.msra.mxu0 %v2139
    %2282 = vmatprep.subr.mxu0 %v2137
    %2283 = vmatpush2.msra.mxu0 %v2136
    %2284 = vmatprep.subr.mxu0 %v2134
    %2285 = vmatpush2.msra.mxu0 %v2133
    %2286 = vmatprep.subr.mxu0 %v2131
    %2287 = vmatpush2.msra.mxu0 %v2130
    %2288 = vmatprep.subr.mxu0 %v2128
    %2289 = vmatpush2.msra.mxu0 %v2127
    %2290 = vmatprep.subr.mxu0 %v2125
    %2291 = vmatpush2.msra.mxu0 %v2124
    %2292 = vmatprep.subr.mxu0 %v2122
    %2293 = vmatpush2.msra.mxu0 %v2121
    %2294 = vmatprep.subr.mxu0 %v2119
    %2295 = vmatpush2.msra.mxu0 %v2118
    %2296 = vmatprep.subr.mxu0 %v2116
    %2297 = vmatpush2.msra.mxu0 %v2115
    %2298 = vmatprep.subr.mxu0 %v2113
    %2299 = vmatpush2.msra.mxu0 %v2112
    %2300 = vmatprep.subr.mxu0 %v2110
    %2301 = vmatpush2.msra.mxu0 %v2109
    %2302 = vmatprep.subr.mxu0 %v2107
    %2303 = vmatpush2.msra.mxu0 %v2106
    %2304 = vmatprep.subr.mxu0 %v2104
    %2305 = vmatpush2.msra.mxu0 %v2103
    %2306 = vmatprep.subr.mxu0 %v2101
    %2307 = vmatpush2.msra.mxu0 %v2100
    %2308 = vmatprep.mubr.f32.mxu0 %v2157
    %2309 = vmatmul.mubr.f32.gmra.mxu0 %v2156
    %v2310 = vpop.f32.mrf.mxu0
    %v2311 = vadd.f32 0.0, %v2310
    %v2312 = vpop.f32.mrf.mxu0
    %v2313 = vadd.f32 0.0, %v2312
    %2314 = vmatprep.mubr.f32.mxu0 %v2159
    %2315 = vmatmul.mubr.f32.gmra.mxu0 %v2158
    %v2316 = vpop.f32.mrf.mxu0
    %v2317 = vadd.f32 0.0, %v2316
    %v2318 = vpop.f32.mrf.mxu0
    %v2319 = vadd.f32 0.0, %v2318
    %2320 = vmatprep.mubr.f32.mxu0 %v2161
    %2321 = vmatmul.mubr.f32.gmra.mxu0 %v2160
    %v2322 = vpop.f32.mrf.mxu0
    %v2323 = vadd.f32 0.0, %v2322
    %v2324 = vpop.f32.mrf.mxu0
    %v2325 = vadd.f32 0.0, %v2324
    %2326 = vmatprep.mubr.f32.mxu0 %v2163
    %2327 = vmatmul.mubr.f32.gmra.mxu0 %v2162
    %v2328 = vpop.f32.mrf.mxu0
    %v2329 = vadd.f32 0.0, %v2328
    %v2330 = vpop.f32.mrf.mxu0
    %v2331 = vadd.f32 0.0, %v2330
    %2332 = vmatprep.mubr.f32.mxu0 %v2165
    %2333 = vmatmul.mubr.f32.gmra.mxu0 %v2164
    %v2334 = vpop.f32.mrf.mxu0
    %v2335 = vadd.f32 0.0, %v2334
    %v2336 = vpop.f32.mrf.mxu0
    %v2337 = vadd.f32 0.0, %v2336
    %2338 = vmatprep.mubr.f32.mxu0 %v2167
    %2339 = vmatmul.mubr.f32.gmra.mxu0 %v2166
    %v2340 = vpop.f32.mrf.mxu0
    %v2341 = vadd.f32 0.0, %v2340
    %v2342 = vpop.f32.mrf.mxu0
    %v2343 = vadd.f32 0.0, %v2342
    %2344 = vmatprep.mubr.f32.mxu0 %v2169
    %2345 = vmatmul.mubr.f32.gmra.mxu0 %v2168
    %v2346 = vpop.f32.mrf.mxu0
    %v2347 = vadd.f32 0.0, %v2346
    %v2348 = vpop.f32.mrf.mxu0
    %v2349 = vadd.f32 0.0, %v2348
    %2350 = vmatprep.mubr.f32.mxu0 %v2171
    %2351 = vmatmul.mubr.f32.gmra.mxu0 %v2170
    %v2352 = vpop.f32.mrf.mxu0
    %v2353 = vadd.f32 0.0, %v2352
    %v2354 = vpop.f32.mrf.mxu0
    %v2355 = vadd.f32 0.0, %v2354
    %2356 = vmatprep.mubr.f32.mxu0 %v2173
    %2357 = vmatmul.mubr.f32.gmra.mxu0 %v2172
    %v2358 = vpop.f32.mrf.mxu0
    %v2359 = vadd.f32 0.0, %v2358
    %v2360 = vpop.f32.mrf.mxu0
    %v2361 = vadd.f32 0.0, %v2360
    %2362 = vmatprep.mubr.f32.mxu0 %v2175
    %2363 = vmatmul.mubr.f32.gmra.mxu0 %v2174
    %v2364 = vpop.f32.mrf.mxu0
    %v2365 = vadd.f32 0.0, %v2364
    %v2366 = vpop.f32.mrf.mxu0
    %v2367 = vadd.f32 0.0, %v2366
    %2368 = vmatprep.mubr.f32.mxu0 %v2177
    %2369 = vmatmul.mubr.f32.gmra.mxu0 %v2176
    %v2370 = vpop.f32.mrf.mxu0
    %v2371 = vadd.f32 0.0, %v2370
    %v2372 = vpop.f32.mrf.mxu0
    %v2373 = vadd.f32 0.0, %v2372
    %2374 = vmatprep.mubr.f32.mxu0 %v2179
    %2375 = vmatmul.mubr.f32.gmra.mxu0 %v2178
    %v2376 = vpop.f32.mrf.mxu0
    %v2377 = vadd.f32 0.0, %v2376
    %v2378 = vpop.f32.mrf.mxu0
    %v2379 = vadd.f32 0.0, %v2378
    %2380 = vmatprep.mubr.f32.mxu0 %v2181
    %2381 = vmatmul.mubr.f32.gmra.mxu0 %v2180
    %v2382 = vpop.f32.mrf.mxu0
    %v2383 = vadd.f32 0.0, %v2382
    %v2384 = vpop.f32.mrf.mxu0
    %v2385 = vadd.f32 0.0, %v2384
    %2386 = vmatprep.mubr.f32.mxu0 %v2183
    %2387 = vmatmul.mubr.f32.gmra.mxu0 %v2182
    %v2388 = vpop.f32.mrf.mxu0
    %v2389 = vadd.f32 0.0, %v2388
    %v2390 = vpop.f32.mrf.mxu0
    %v2391 = vadd.f32 0.0, %v2390
    %2392 = vmatprep.mubr.f32.mxu0 %v2185
    %2393 = vmatmul.mubr.f32.gmra.mxu0 %v2184
    %v2394 = vpop.f32.mrf.mxu0
    %v2395 = vadd.f32 0.0, %v2394
    %v2396 = vpop.f32.mrf.mxu0
    %v2397 = vadd.f32 0.0, %v2396
    %2398 = vmatprep.mubr.f32.mxu0 %v2187
    %2399 = vmatmul.mubr.f32.gmra.mxu0 %v2186
    %v2400 = vpop.f32.mrf.mxu0
    %v2401 = vadd.f32 0.0, %v2400
    %v2402 = vpop.f32.mrf.mxu0
    %v2403 = vadd.f32 0.0, %v2402
    %2404 = vmatprep.mubr.f32.mxu0 %v2189
    %2405 = vmatmul.mubr.f32.gmra.mxu0 %v2188
    %v2406 = vpop.f32.mrf.mxu0
    %v2407 = vadd.f32 0.0, %v2406
    %v2408 = vpop.f32.mrf.mxu0
    %v2409 = vadd.f32 0.0, %v2408
    %2410 = vmatprep.mubr.f32.mxu0 %v2191
    %2411 = vmatmul.mubr.f32.gmra.mxu0 %v2190
    %v2412 = vpop.f32.mrf.mxu0
    %v2413 = vadd.f32 0.0, %v2412
    %v2414 = vpop.f32.mrf.mxu0
    %v2415 = vadd.f32 0.0, %v2414
    %2416 = vmatprep.mubr.f32.mxu0 %v2193
    %2417 = vmatmul.mubr.f32.gmra.mxu0 %v2192
    %v2418 = vpop.f32.mrf.mxu0
    %v2419 = vadd.f32 0.0, %v2418
    %v2420 = vpop.f32.mrf.mxu0
    %v2421 = vadd.f32 0.0, %v2420
    %2422 = vmatprep.mubr.f32.mxu0 %v2195
    %2423 = vmatmul.mubr.f32.gmra.mxu0 %v2194
    %v2424 = vpop.f32.mrf.mxu0
    %v2425 = vadd.f32 0.0, %v2424
    %v2426 = vpop.f32.mrf.mxu0
    %v2427 = vadd.f32 0.0, %v2426
    %2428 = vmatprep.mubr.f32.mxu0 %v2197
    %2429 = vmatmul.mubr.f32.gmra.mxu0 %v2196
    %v2430 = vpop.f32.mrf.mxu0
    %v2431 = vadd.f32 0.0, %v2430
    %v2432 = vpop.f32.mrf.mxu0
    %v2433 = vadd.f32 0.0, %v2432
    %2434 = vmatprep.mubr.f32.mxu0 %v2199
    %2435 = vmatmul.mubr.f32.gmra.mxu0 %v2198
    %v2436 = vpop.f32.mrf.mxu0
    %v2437 = vadd.f32 0.0, %v2436
    %v2438 = vpop.f32.mrf.mxu0
    %v2439 = vadd.f32 0.0, %v2438
    %2440 = vmatprep.mubr.f32.mxu0 %v2201
    %2441 = vmatmul.mubr.f32.gmra.mxu0 %v2200
    %v2442 = vpop.f32.mrf.mxu0
    %v2443 = vadd.f32 0.0, %v2442
    %v2444 = vpop.f32.mrf.mxu0
    %v2445 = vadd.f32 0.0, %v2444
    %2446 = vmatprep.mubr.f32.mxu0 %v2203
    %2447 = vmatmul.mubr.f32.gmra.mxu0 %v2202
    %v2448 = vpop.f32.mrf.mxu0
    %v2449 = vadd.f32 0.0, %v2448
    %v2450 = vpop.f32.mrf.mxu0
    %v2451 = vadd.f32 0.0, %v2450
    %2452 = vmatprep.mubr.f32.mxu0 %v2205
    %2453 = vmatmul.mubr.f32.gmra.mxu0 %v2204
    %v2454 = vpop.f32.mrf.mxu0
    %v2455 = vadd.f32 0.0, %v2454
    %v2456 = vpop.f32.mrf.mxu0
    %v2457 = vadd.f32 0.0, %v2456
    %2458 = vmatprep.mubr.f32.mxu0 %v2207
    %2459 = vmatmul.mubr.f32.gmra.mxu0 %v2206
    %v2460 = vpop.f32.mrf.mxu0
    %v2461 = vadd.f32 0.0, %v2460
    %v2462 = vpop.f32.mrf.mxu0
    %v2463 = vadd.f32 0.0, %v2462
    %2464 = vmatprep.mubr.f32.mxu0 %v2209
    %2465 = vmatmul.mubr.f32.gmra.mxu0 %v2208
    %v2466 = vpop.f32.mrf.mxu0
    %v2467 = vadd.f32 0.0, %v2466
    %v2468 = vpop.f32.mrf.mxu0
    %v2469 = vadd.f32 0.0, %v2468
    %2470 = vmatprep.mubr.f32.mxu0 %v2211
    %2471 = vmatmul.mubr.f32.gmra.mxu0 %v2210
    %v2472 = vpop.f32.mrf.mxu0
    %v2473 = vadd.f32 0.0, %v2472
    %v2474 = vpop.f32.mrf.mxu0
    %v2475 = vadd.f32 0.0, %v2474
    %2476 = vmatprep.mubr.f32.mxu0 %v2213
    %2477 = vmatmul.mubr.f32.gmra.mxu0 %v2212
    %v2478 = vpop.f32.mrf.mxu0
    %v2479 = vadd.f32 0.0, %v2478
    %v2480 = vpop.f32.mrf.mxu0
    %v2481 = vadd.f32 0.0, %v2480
    %2482 = vmatprep.mubr.f32.mxu0 %v2215
    %2483 = vmatmul.mubr.f32.gmra.mxu0 %v2214
    %v2484 = vpop.f32.mrf.mxu0
    %v2485 = vadd.f32 0.0, %v2484
    %v2486 = vpop.f32.mrf.mxu0
    %v2487 = vadd.f32 0.0, %v2486
    %2488 = vmatprep.mubr.f32.mxu0 %v2217
    %2489 = vmatmul.mubr.f32.gmra.mxu0 %v2216
    %v2490 = vpop.f32.mrf.mxu0
    %v2491 = vadd.f32 0.0, %v2490
    %v2492 = vpop.f32.mrf.mxu0
    %v2493 = vadd.f32 0.0, %v2492
    %2494 = vmatprep.mubr.f32.mxu0 %v2219
    %2495 = vmatmul.mubr.f32.gmra.mxu0 %v2218
    %v2496 = vpop.f32.mrf.mxu0
    %v2497 = vadd.f32 0.0, %v2496
    %v2498 = vpop.f32.mrf.mxu0
    %v2499 = vadd.f32 0.0, %v2498
    %2500 = vmatprep.mubr.f32.mxu0 %v2221
    %2501 = vmatmul.mubr.f32.gmra.mxu0 %v2220
    %v2502 = vpop.f32.mrf.mxu0
    %v2503 = vadd.f32 0.0, %v2502
    %v2504 = vpop.f32.mrf.mxu0
    %v2505 = vadd.f32 0.0, %v2504
    %2506 = vmatprep.mubr.f32.mxu0 %v2223
    %2507 = vmatmul.mubr.f32.gmra.mxu0 %v2222
    %v2508 = vpop.f32.mrf.mxu0
    %v2509 = vadd.f32 0.0, %v2508
    %v2510 = vpop.f32.mrf.mxu0
    %v2511 = vadd.f32 0.0, %v2510
    %2512 = vmatprep.mubr.f32.mxu0 %v2225
    %2513 = vmatmul.mubr.f32.gmra.mxu0 %v2224
    %v2514 = vpop.f32.mrf.mxu0
    %v2515 = vadd.f32 0.0, %v2514
    %v2516 = vpop.f32.mrf.mxu0
    %v2517 = vadd.f32 0.0, %v2516
    %2518 = vmatprep.mubr.f32.mxu0 %v2227
    %2519 = vmatmul.mubr.f32.gmra.mxu0 %v2226
    %v2520 = vpop.f32.mrf.mxu0
    %v2521 = vadd.f32 0.0, %v2520
    %v2522 = vpop.f32.mrf.mxu0
    %v2523 = vadd.f32 0.0, %v2522
    %2524 = vmatprep.mubr.f32.mxu0 %v2229
    %2525 = vmatmul.mubr.f32.gmra.mxu0 %v2228
    %v2526 = vpop.f32.mrf.mxu0
    %v2527 = vadd.f32 0.0, %v2526
    %v2528 = vpop.f32.mrf.mxu0
    %v2529 = vadd.f32 0.0, %v2528
    %2530 = vmatprep.mubr.f32.mxu0 %v2231
    %2531 = vmatmul.mubr.f32.gmra.mxu0 %v2230
    %v2532 = vpop.f32.mrf.mxu0
    %v2533 = vadd.f32 0.0, %v2532
    %v2534 = vpop.f32.mrf.mxu0
    %v2535 = vadd.f32 0.0, %v2534
    %2536 = vmatprep.mubr.f32.mxu0 %v2233
    %2537 = vmatmul.mubr.f32.gmra.mxu0 %v2232
    %v2538 = vpop.f32.mrf.mxu0
    %v2539 = vadd.f32 0.0, %v2538
    %v2540 = vpop.f32.mrf.mxu0
    %v2541 = vadd.f32 0.0, %v2540
    %2542 = vmatprep.mubr.f32.mxu0 %v2235
    %2543 = vmatmul.mubr.f32.gmra.mxu0 %v2234
    %v2544 = vpop.f32.mrf.mxu0
    %v2545 = vadd.f32 0.0, %v2544
    %v2546 = vpop.f32.mrf.mxu0
    %v2547 = vadd.f32 0.0, %v2546
    %2548 = vmatprep.mubr.f32.mxu0 %v2237
    %2549 = vmatmul.mubr.f32.gmra.mxu0 %v2236
    %v2550 = vpop.f32.mrf.mxu0
    %v2551 = vadd.f32 0.0, %v2550
    %v2552 = vpop.f32.mrf.mxu0
    %v2553 = vadd.f32 0.0, %v2552
    %2554 = vmatprep.mubr.f32.mxu0 %v2239
    %2555 = vmatmul.mubr.f32.gmra.mxu0 %v2238
    %v2556 = vpop.f32.mrf.mxu0
    %v2557 = vadd.f32 0.0, %v2556
    %v2558 = vpop.f32.mrf.mxu0
    %v2559 = vadd.f32 0.0, %v2558
    %2560 = vmatprep.mubr.f32.mxu0 %v2241
    %2561 = vmatmul.mubr.f32.gmra.mxu0 %v2240
    %v2562 = vpop.f32.mrf.mxu0
    %v2563 = vadd.f32 0.0, %v2562
    %v2564 = vpop.f32.mrf.mxu0
    %v2565 = vadd.f32 0.0, %v2564
    %2566 = vmatprep.mubr.f32.mxu0 %v2243
    %2567 = vmatmul.mubr.f32.gmra.mxu0 %v2242
    %v2568 = vpop.f32.mrf.mxu0
    %v2569 = vadd.f32 0.0, %v2568
    %v2570 = vpop.f32.mrf.mxu0
    %v2571 = vadd.f32 0.0, %v2570
    %2572 = vdwg.mxu0
    %2573 = vmatprep.subr.mxu0 0.0
    %2574 = vmatpush1.msra.mxu0 %v2099
    %2575 = vmatprep.subr.mxu0 0.0
    %2576 = vmatpush1.msra.mxu0 %v2096
    %2577 = vmatprep.subr.mxu0 0.0
    %2578 = vmatpush1.msra.mxu0 %v2093
    %2579 = vmatprep.subr.mxu0 0.0
    %2580 = vmatpush1.msra.mxu0 %v2090
    %2581 = vmatprep.subr.mxu0 0.0
    %2582 = vmatpush1.msra.mxu0 %v2087
    %2583 = vmatprep.subr.mxu0 0.0
    %2584 = vmatpush1.msra.mxu0 %v2084
    %2585 = vmatprep.subr.mxu0 0.0
    %2586 = vmatpush1.msra.mxu0 %v2081
    %2587 = vmatprep.subr.mxu0 0.0
    %2588 = vmatpush1.msra.mxu0 %v2078
    %2589 = vmatprep.subr.mxu0 0.0
    %2590 = vmatpush1.msra.mxu0 %v2075
    %2591 = vmatprep.subr.mxu0 0.0
    %2592 = vmatpush1.msra.mxu0 %v2072
    %2593 = vmatprep.subr.mxu0 0.0
    %2594 = vmatpush1.msra.mxu0 %v2069
    %2595 = vmatprep.subr.mxu0 0.0
    %2596 = vmatpush1.msra.mxu0 %v2066
    %2597 = vmatprep.subr.mxu0 0.0
    %2598 = vmatpush1.msra.mxu0 %v2063
    %2599 = vmatprep.subr.mxu0 0.0
    %2600 = vmatpush1.msra.mxu0 %v2060
    %2601 = vmatprep.subr.mxu0 0.0
    %2602 = vmatpush1.msra.mxu0 %v2057
    %2603 = vmatprep.subr.mxu0 0.0
    %2604 = vmatpush1.msra.mxu0 %v2054
    %2605 = vmatprep.subr.mxu0 0.0
    %2606 = vmatpush2.msra.mxu0 %v2147
    %2607 = vmatprep.subr.mxu0 0.0
    %2608 = vmatpush2.msra.mxu0 %v2144
    %2609 = vmatprep.subr.mxu0 0.0
    %2610 = vmatpush2.msra.mxu0 %v2141
    %2611 = vmatprep.subr.mxu0 0.0
    %2612 = vmatpush2.msra.mxu0 %v2138
    %2613 = vmatprep.subr.mxu0 0.0
    %2614 = vmatpush2.msra.mxu0 %v2135
    %2615 = vmatprep.subr.mxu0 0.0
    %2616 = vmatpush2.msra.mxu0 %v2132
    %2617 = vmatprep.subr.mxu0 0.0
    %2618 = vmatpush2.msra.mxu0 %v2129
    %2619 = vmatprep.subr.mxu0 0.0
    %2620 = vmatpush2.msra.mxu0 %v2126
    %2621 = vmatprep.subr.mxu0 0.0
    %2622 = vmatpush2.msra.mxu0 %v2123
    %2623 = vmatprep.subr.mxu0 0.0
    %2624 = vmatpush2.msra.mxu0 %v2120
    %2625 = vmatprep.subr.mxu0 0.0
    %2626 = vmatpush2.msra.mxu0 %v2117
    %2627 = vmatprep.subr.mxu0 0.0
    %2628 = vmatpush2.msra.mxu0 %v2114
    %2629 = vmatprep.subr.mxu0 0.0
    %2630 = vmatpush2.msra.mxu0 %v2111
    %2631 = vmatprep.subr.mxu0 0.0
    %2632 = vmatpush2.msra.mxu0 %v2108
    %2633 = vmatprep.subr.mxu0 0.0
    %2634 = vmatpush2.msra.mxu0 %v2105
    %2635 = vmatprep.subr.mxu0 0.0
    %2636 = vmatpush2.msra.mxu0 %v2102
    %2637 = vmatprep.mubr.f32.mxu0 %v2157
    %2638 = vmatmul.mubr.f32.gmra.mxu0 %v2156
    %v2639 = vpop.f32.mrf.mxu0
    %v2640 = vadd.f32 0.0, %v2639
    %v2641 = vpop.f32.mrf.mxu0
    %2642 = vmatprep.mubr.f32.mxu0 %v2159
    %2643 = vmatmul.mubr.f32.gmra.mxu0 %v2158
    %v2644 = vpop.f32.mrf.mxu0
    %v2645 = vadd.f32 0.0, %v2644
    %v2646 = vpop.f32.mrf.mxu0
    %2647 = vmatprep.mubr.f32.mxu0 %v2161
    %2648 = vmatmul.mubr.f32.gmra.mxu0 %v2160
    %v2649 = vpop.f32.mrf.mxu0
    %v2650 = vadd.f32 0.0, %v2649
    %v2651 = vpop.f32.mrf.mxu0
    %2652 = vmatprep.mubr.f32.mxu0 %v2163
    %2653 = vmatmul.mubr.f32.gmra.mxu0 %v2162
    %v2654 = vpop.f32.mrf.mxu0
    %v2655 = vadd.f32 0.0, %v2654
    %v2656 = vpop.f32.mrf.mxu0
    %2657 = vmatprep.mubr.f32.mxu0 %v2165
    %2658 = vmatmul.mubr.f32.gmra.mxu0 %v2164
    %v2659 = vpop.f32.mrf.mxu0
    %v2660 = vadd.f32 0.0, %v2659
    %v2661 = vpop.f32.mrf.mxu0
    %2662 = vmatprep.mubr.f32.mxu0 %v2167
    %2663 = vmatmul.mubr.f32.gmra.mxu0 %v2166
    %v2664 = vpop.f32.mrf.mxu0
    %v2665 = vadd.f32 0.0, %v2664
    %v2666 = vpop.f32.mrf.mxu0
    %2667 = vmatprep.mubr.f32.mxu0 %v2169
    %2668 = vmatmul.mubr.f32.gmra.mxu0 %v2168
    %v2669 = vpop.f32.mrf.mxu0
    %v2670 = vadd.f32 0.0, %v2669
    %v2671 = vpop.f32.mrf.mxu0
    %2672 = vmatprep.mubr.f32.mxu0 %v2171
    %2673 = vmatmul.mubr.f32.gmra.mxu0 %v2170
    %v2674 = vpop.f32.mrf.mxu0
    %v2675 = vadd.f32 0.0, %v2674
    %v2676 = vpop.f32.mrf.mxu0
    %2677 = vmatprep.mubr.f32.mxu0 %v2173
    %2678 = vmatmul.mubr.f32.gmra.mxu0 %v2172
    %v2679 = vpop.f32.mrf.mxu0
    %v2680 = vadd.f32 0.0, %v2679
    %v2681 = vpop.f32.mrf.mxu0
    %2682 = vmatprep.mubr.f32.mxu0 %v2175
    %2683 = vmatmul.mubr.f32.gmra.mxu0 %v2174
    %v2684 = vpop.f32.mrf.mxu0
    %v2685 = vadd.f32 0.0, %v2684
    %v2686 = vpop.f32.mrf.mxu0
    %2687 = vmatprep.mubr.f32.mxu0 %v2177
    %2688 = vmatmul.mubr.f32.gmra.mxu0 %v2176
    %v2689 = vpop.f32.mrf.mxu0
    %v2690 = vadd.f32 0.0, %v2689
    %v2691 = vpop.f32.mrf.mxu0
    %2692 = vmatprep.mubr.f32.mxu0 %v2179
    %2693 = vmatmul.mubr.f32.gmra.mxu0 %v2178
    %v2694 = vpop.f32.mrf.mxu0
    %v2695 = vadd.f32 0.0, %v2694
    %v2696 = vpop.f32.mrf.mxu0
    %2697 = vmatprep.mubr.f32.mxu0 %v2181
    %2698 = vmatmul.mubr.f32.gmra.mxu0 %v2180
    %v2699 = vpop.f32.mrf.mxu0
    %v2700 = vadd.f32 0.0, %v2699
    %v2701 = vpop.f32.mrf.mxu0
    %2702 = vmatprep.mubr.f32.mxu0 %v2183
    %2703 = vmatmul.mubr.f32.gmra.mxu0 %v2182
    %v2704 = vpop.f32.mrf.mxu0
    %v2705 = vadd.f32 0.0, %v2704
    %v2706 = vpop.f32.mrf.mxu0
    %2707 = vmatprep.mubr.f32.mxu0 %v2185
    %2708 = vmatmul.mubr.f32.gmra.mxu0 %v2184
    %v2709 = vpop.f32.mrf.mxu0
    %v2710 = vadd.f32 0.0, %v2709
    %v2711 = vpop.f32.mrf.mxu0
    %2712 = vmatprep.mubr.f32.mxu0 %v2187
    %2713 = vmatmul.mubr.f32.gmra.mxu0 %v2186
    %v2714 = vpop.f32.mrf.mxu0
    %v2715 = vadd.f32 0.0, %v2714
    %v2716 = vpop.f32.mrf.mxu0
    %2717 = vmatprep.mubr.f32.mxu0 %v2189
    %2718 = vmatmul.mubr.f32.gmra.mxu0 %v2188
    %v2719 = vpop.f32.mrf.mxu0
    %v2720 = vadd.f32 0.0, %v2719
    %v2721 = vpop.f32.mrf.mxu0
    %2722 = vmatprep.mubr.f32.mxu0 %v2191
    %2723 = vmatmul.mubr.f32.gmra.mxu0 %v2190
    %v2724 = vpop.f32.mrf.mxu0
    %v2725 = vadd.f32 0.0, %v2724
    %v2726 = vpop.f32.mrf.mxu0
    %2727 = vmatprep.mubr.f32.mxu0 %v2193
    %2728 = vmatmul.mubr.f32.gmra.mxu0 %v2192
    %v2729 = vpop.f32.mrf.mxu0
    %v2730 = vadd.f32 0.0, %v2729
    %v2731 = vpop.f32.mrf.mxu0
    %2732 = vmatprep.mubr.f32.mxu0 %v2195
    %2733 = vmatmul.mubr.f32.gmra.mxu0 %v2194
    %v2734 = vpop.f32.mrf.mxu0
    %v2735 = vadd.f32 0.0, %v2734
    %v2736 = vpop.f32.mrf.mxu0
    %2737 = vmatprep.mubr.f32.mxu0 %v2197
    %2738 = vmatmul.mubr.f32.gmra.mxu0 %v2196
    %v2739 = vpop.f32.mrf.mxu0
    %v2740 = vadd.f32 0.0, %v2739
    %v2741 = vpop.f32.mrf.mxu0
    %2742 = vmatprep.mubr.f32.mxu0 %v2199
    %2743 = vmatmul.mubr.f32.gmra.mxu0 %v2198
    %v2744 = vpop.f32.mrf.mxu0
    %v2745 = vadd.f32 0.0, %v2744
    %v2746 = vpop.f32.mrf.mxu0
    %2747 = vmatprep.mubr.f32.mxu0 %v2201
    %2748 = vmatmul.mubr.f32.gmra.mxu0 %v2200
    %v2749 = vpop.f32.mrf.mxu0
    %v2750 = vadd.f32 0.0, %v2749
    %v2751 = vpop.f32.mrf.mxu0
    %2752 = vmatprep.mubr.f32.mxu0 %v2203
    %2753 = vmatmul.mubr.f32.gmra.mxu0 %v2202
    %v2754 = vpop.f32.mrf.mxu0
    %v2755 = vadd.f32 0.0, %v2754
    %v2756 = vpop.f32.mrf.mxu0
    %2757 = vmatprep.mubr.f32.mxu0 %v2205
    %2758 = vmatmul.mubr.f32.gmra.mxu0 %v2204
    %v2759 = vpop.f32.mrf.mxu0
    %v2760 = vadd.f32 0.0, %v2759
    %v2761 = vpop.f32.mrf.mxu0
    %2762 = vmatprep.mubr.f32.mxu0 %v2207
    %2763 = vmatmul.mubr.f32.gmra.mxu0 %v2206
    %v2764 = vpop.f32.mrf.mxu0
    %v2765 = vadd.f32 0.0, %v2764
    %v2766 = vpop.f32.mrf.mxu0
    %2767 = vmatprep.mubr.f32.mxu0 %v2209
    %2768 = vmatmul.mubr.f32.gmra.mxu0 %v2208
    %v2769 = vpop.f32.mrf.mxu0
    %v2770 = vadd.f32 0.0, %v2769
    %v2771 = vpop.f32.mrf.mxu0
    %2772 = vmatprep.mubr.f32.mxu0 %v2211
    %2773 = vmatmul.mubr.f32.gmra.mxu0 %v2210
    %v2774 = vpop.f32.mrf.mxu0
    %v2775 = vadd.f32 0.0, %v2774
    %v2776 = vpop.f32.mrf.mxu0
    %2777 = vmatprep.mubr.f32.mxu0 %v2213
    %2778 = vmatmul.mubr.f32.gmra.mxu0 %v2212
    %v2779 = vpop.f32.mrf.mxu0
    %v2780 = vadd.f32 0.0, %v2779
    %v2781 = vpop.f32.mrf.mxu0
    %2782 = vmatprep.mubr.f32.mxu0 %v2215
    %2783 = vmatmul.mubr.f32.gmra.mxu0 %v2214
    %v2784 = vpop.f32.mrf.mxu0
    %v2785 = vadd.f32 0.0, %v2784
    %v2786 = vpop.f32.mrf.mxu0
    %2787 = vmatprep.mubr.f32.mxu0 %v2217
    %2788 = vmatmul.mubr.f32.gmra.mxu0 %v2216
    %v2789 = vpop.f32.mrf.mxu0
    %v2790 = vadd.f32 0.0, %v2789
    %v2791 = vpop.f32.mrf.mxu0
    %2792 = vmatprep.mubr.f32.mxu0 %v2219
    %2793 = vmatmul.mubr.f32.gmra.mxu0 %v2218
    %v2794 = vpop.f32.mrf.mxu0
    %v2795 = vadd.f32 0.0, %v2794
    %v2796 = vpop.f32.mrf.mxu0
    %2797 = vmatprep.mubr.f32.mxu0 %v2221
    %2798 = vmatmul.mubr.f32.gmra.mxu0 %v2220
    %v2799 = vpop.f32.mrf.mxu0
    %v2800 = vadd.f32 0.0, %v2799
    %v2801 = vpop.f32.mrf.mxu0
    %2802 = vmatprep.mubr.f32.mxu0 %v2223
    %2803 = vmatmul.mubr.f32.gmra.mxu0 %v2222
    %v2804 = vpop.f32.mrf.mxu0
    %v2805 = vadd.f32 0.0, %v2804
    %v2806 = vpop.f32.mrf.mxu0
    %2807 = vmatprep.mubr.f32.mxu0 %v2225
    %2808 = vmatmul.mubr.f32.gmra.mxu0 %v2224
    %v2809 = vpop.f32.mrf.mxu0
    %v2810 = vadd.f32 0.0, %v2809
    %v2811 = vpop.f32.mrf.mxu0
    %2812 = vmatprep.mubr.f32.mxu0 %v2227
    %2813 = vmatmul.mubr.f32.gmra.mxu0 %v2226
    %v2814 = vpop.f32.mrf.mxu0
    %v2815 = vadd.f32 0.0, %v2814
    %v2816 = vpop.f32.mrf.mxu0
    %2817 = vmatprep.mubr.f32.mxu0 %v2229
    %2818 = vmatmul.mubr.f32.gmra.mxu0 %v2228
    %v2819 = vpop.f32.mrf.mxu0
    %v2820 = vadd.f32 0.0, %v2819
    %v2821 = vpop.f32.mrf.mxu0
    %2822 = vmatprep.mubr.f32.mxu0 %v2231
    %2823 = vmatmul.mubr.f32.gmra.mxu0 %v2230
    %v2824 = vpop.f32.mrf.mxu0
    %v2825 = vadd.f32 0.0, %v2824
    %v2826 = vpop.f32.mrf.mxu0
    %2827 = vmatprep.mubr.f32.mxu0 %v2233
    %2828 = vmatmul.mubr.f32.gmra.mxu0 %v2232
    %v2829 = vpop.f32.mrf.mxu0
    %v2830 = vadd.f32 0.0, %v2829
    %v2831 = vpop.f32.mrf.mxu0
    %2832 = vmatprep.mubr.f32.mxu0 %v2235
    %2833 = vmatmul.mubr.f32.gmra.mxu0 %v2234
    %v2834 = vpop.f32.mrf.mxu0
    %v2835 = vadd.f32 0.0, %v2834
    %v2836 = vpop.f32.mrf.mxu0
    %2837 = vmatprep.mubr.f32.mxu0 %v2237
    %2838 = vmatmul.mubr.f32.gmra.mxu0 %v2236
    %v2839 = vpop.f32.mrf.mxu0
    %v2840 = vadd.f32 0.0, %v2839
    %v2841 = vpop.f32.mrf.mxu0
    %2842 = vmatprep.mubr.f32.mxu0 %v2239
    %2843 = vmatmul.mubr.f32.gmra.mxu0 %v2238
    %v2844 = vpop.f32.mrf.mxu0
    %v2845 = vadd.f32 0.0, %v2844
    %v2846 = vpop.f32.mrf.mxu0
    %2847 = vmatprep.mubr.f32.mxu0 %v2241
    %2848 = vmatmul.mubr.f32.gmra.mxu0 %v2240
    %v2849 = vpop.f32.mrf.mxu0
    %v2850 = vadd.f32 0.0, %v2849
    %v2851 = vpop.f32.mrf.mxu0
    %2852 = vmatprep.mubr.f32.mxu0 %v2243
    %2853 = vmatmul.mubr.f32.gmra.mxu0 %v2242
    %v2854 = vpop.f32.mrf.mxu0
    %v2855 = vadd.f32 0.0, %v2854
    %v2856 = vpop.f32.mrf.mxu0
    %2857 = vdwg.mxu0
    %2858 = vst [vmem:[#allocation17] sm:$0xff] %v2311
    %2859 = vst [vmem:[#allocation17 + $0x8] sm:$0xff] %v2313
    %vm2860 = vcmask 785408
    %2861 = vst.msk [vmem:[#allocation17 + $0x10] sm:$0xff] %vm2860, %v2640
    %2862 = vst [vmem:[#allocation17 + $0x18] sm:$0xff] %v2317
    %2863 = vst [vmem:[#allocation17 + $0x20] sm:$0xff] %v2319
    %2864 = vst.msk [vmem:[#allocation17 + $0x28] sm:$0xff] %vm2860, %v2645
    %2865 = vst [vmem:[#allocation17 + $0x30] sm:$0xff] %v2323
    %2866 = vst [vmem:[#allocation17 + $0x38] sm:$0xff] %v2325
    %2867 = vst.msk [vmem:[#allocation17 + $0x40] sm:$0xff] %vm2860, %v2650
    %2868 = vst [vmem:[#allocation17 + $0x48] sm:$0xff] %v2329
    %2869 = vst [vmem:[#allocation17 + $0x50] sm:$0xff] %v2331
    %2870 = vst.msk [vmem:[#allocation17 + $0x58] sm:$0xff] %vm2860, %v2655
    %2871 = vst [vmem:[#allocation17 + $0x60] sm:$0xff] %v2335
    %2872 = vst [vmem:[#allocation17 + $0x68] sm:$0xff] %v2337
    %2873 = vst.msk [vmem:[#allocation17 + $0x70] sm:$0xff] %vm2860, %v2660
    %2874 = vst [vmem:[#allocation17 + $0x78] sm:$0xff] %v2341
    %2875 = vst [vmem:[#allocation17 + $0x80] sm:$0xff] %v2343
    %2876 = vst.msk [vmem:[#allocation17 + $0x88] sm:$0xff] %vm2860, %v2665
    %2877 = vst [vmem:[#allocation17 + $0x90] sm:$0xff] %v2347
    %2878 = vst [vmem:[#allocation17 + $0x98] sm:$0xff] %v2349
    %2879 = vst.msk [vmem:[#allocation17 + $0xa0] sm:$0xff] %vm2860, %v2670
    %2880 = vst [vmem:[#allocation17 + $0xa8] sm:$0xff] %v2353
    %2881 = vst [vmem:[#allocation17 + $0xb0] sm:$0xff] %v2355
    %2882 = vst.msk [vmem:[#allocation17 + $0xb8] sm:$0xff] %vm2860, %v2675
    %2883 = vst [vmem:[#allocation17 + $0xc0] sm:$0xff] %v2359
    %2884 = vst [vmem:[#allocation17 + $0xc8] sm:$0xff] %v2361
    %2885 = vst.msk [vmem:[#allocation17 + $0xd0] sm:$0xff] %vm2860, %v2680
    %2886 = vst [vmem:[#allocation17 + $0xd8] sm:$0xff] %v2365
    %2887 = vst [vmem:[#allocation17 + $0xe0] sm:$0xff] %v2367
    %2888 = vst.msk [vmem:[#allocation17 + $0xe8] sm:$0xff] %vm2860, %v2685
    %2889 = vst [vmem:[#allocation17 + $0xf0] sm:$0xff] %v2371
    %2890 = vst [vmem:[#allocation17 + $0xf8] sm:$0xff] %v2373
    %2891 = vst.msk [vmem:[#allocation17 + $0x100] sm:$0xff] %vm2860, %v2690
    %2892 = vst [vmem:[#allocation17 + $0x108] sm:$0xff] %v2377
    %2893 = vst [vmem:[#allocation17 + $0x110] sm:$0xff] %v2379
    %2894 = vst.msk [vmem:[#allocation17 + $0x118] sm:$0xff] %vm2860, %v2695
    %2895 = vst [vmem:[#allocation17 + $0x120] sm:$0xff] %v2383
    %2896 = vst [vmem:[#allocation17 + $0x128] sm:$0xff] %v2385
    %2897 = vst.msk [vmem:[#allocation17 + $0x130] sm:$0xff] %vm2860, %v2700
    %2898 = vst [vmem:[#allocation17 + $0x138] sm:$0xff] %v2389
    %2899 = vst [vmem:[#allocation17 + $0x140] sm:$0xff] %v2391
    %2900 = vst.msk [vmem:[#allocation17 + $0x148] sm:$0xff] %vm2860, %v2705
    %2901 = vst [vmem:[#allocation17 + $0x150] sm:$0xff] %v2395
    %2902 = vst [vmem:[#allocation17 + $0x158] sm:$0xff] %v2397
    %2903 = vst.msk [vmem:[#allocation17 + $0x160] sm:$0xff] %vm2860, %v2710
    %2904 = vst [vmem:[#allocation17 + $0x168] sm:$0xff] %v2401
    %2905 = vst [vmem:[#allocation17 + $0x170] sm:$0xff] %v2403
    %2906 = vst.msk [vmem:[#allocation17 + $0x178] sm:$0xff] %vm2860, %v2715
    %2907 = vst [vmem:[#allocation17 + $0x180] sm:$0xff] %v2407
    %2908 = vst [vmem:[#allocation17 + $0x188] sm:$0xff] %v2409
    %2909 = vst.msk [vmem:[#allocation17 + $0x190] sm:$0xff] %vm2860, %v2720
    %2910 = vst [vmem:[#allocation17 + $0x198] sm:$0xff] %v2413
    %2911 = vst [vmem:[#allocation17 + $0x1a0] sm:$0xff] %v2415
    %2912 = vst.msk [vmem:[#allocation17 + $0x1a8] sm:$0xff] %vm2860, %v2725
    %2913 = vst [vmem:[#allocation17 + $0x1b0] sm:$0xff] %v2419
    %2914 = vst [vmem:[#allocation17 + $0x1b8] sm:$0xff] %v2421
    %2915 = vst.msk [vmem:[#allocation17 + $0x1c0] sm:$0xff] %vm2860, %v2730
    %2916 = vst [vmem:[#allocation17 + $0x1c8] sm:$0xff] %v2425
    %2917 = vst [vmem:[#allocation17 + $0x1d0] sm:$0xff] %v2427
    %2918 = vst.msk [vmem:[#allocation17 + $0x1d8] sm:$0xff] %vm2860, %v2735
    %2919 = vst [vmem:[#allocation17 + $0x1e0] sm:$0xff] %v2431
    %2920 = vst [vmem:[#allocation17 + $0x1e8] sm:$0xff] %v2433
    %2921 = vst.msk [vmem:[#allocation17 + $0x1f0] sm:$0xff] %vm2860, %v2740
    %2922 = vst [vmem:[#allocation17 + $0x1f8] sm:$0xff] %v2437
    %2923 = vst [vmem:[#allocation17 + $0x200] sm:$0xff] %v2439
    %2924 = vst.msk [vmem:[#allocation17 + $0x208] sm:$0xff] %vm2860, %v2745
    %2925 = vst [vmem:[#allocation17 + $0x210] sm:$0xff] %v2443
    %2926 = vst [vmem:[#allocation17 + $0x218] sm:$0xff] %v2445
    %2927 = vst.msk [vmem:[#allocation17 + $0x220] sm:$0xff] %vm2860, %v2750
    %2928 = vst [vmem:[#allocation17 + $0x228] sm:$0xff] %v2449
    %2929 = vst [vmem:[#allocation17 + $0x230] sm:$0xff] %v2451
    %2930 = vst.msk [vmem:[#allocation17 + $0x238] sm:$0xff] %vm2860, %v2755
    %2931 = vst [vmem:[#allocation17 + $0x240] sm:$0xff] %v2455
    %2932 = vst [vmem:[#allocation17 + $0x248] sm:$0xff] %v2457
    %2933 = vst.msk [vmem:[#allocation17 + $0x250] sm:$0xff] %vm2860, %v2760
    %2934 = vst [vmem:[#allocation17 + $0x258] sm:$0xff] %v2461
    %2935 = vst [vmem:[#allocation17 + $0x260] sm:$0xff] %v2463
    %2936 = vst.msk [vmem:[#allocation17 + $0x268] sm:$0xff] %vm2860, %v2765
    %2937 = vst [vmem:[#allocation17 + $0x270] sm:$0xff] %v2467
    %2938 = vst [vmem:[#allocation17 + $0x278] sm:$0xff] %v2469
    %2939 = vst.msk [vmem:[#allocation17 + $0x280] sm:$0xff] %vm2860, %v2770
    %2940 = vst [vmem:[#allocation17 + $0x288] sm:$0xff] %v2473
    %2941 = vst [vmem:[#allocation17 + $0x290] sm:$0xff] %v2475
    %2942 = vst.msk [vmem:[#allocation17 + $0x298] sm:$0xff] %vm2860, %v2775
    %2943 = vst [vmem:[#allocation17 + $0x2a0] sm:$0xff] %v2479
    %2944 = vst [vmem:[#allocation17 + $0x2a8] sm:$0xff] %v2481
    %2945 = vst.msk [vmem:[#allocation17 + $0x2b0] sm:$0xff] %vm2860, %v2780
    %2946 = vst [vmem:[#allocation17 + $0x2b8] sm:$0xff] %v2485
    %2947 = vst [vmem:[#allocation17 + $0x2c0] sm:$0xff] %v2487
    %2948 = vst.msk [vmem:[#allocation17 + $0x2c8] sm:$0xff] %vm2860, %v2785
    %2949 = vst [vmem:[#allocation17 + $0x2d0] sm:$0xff] %v2491
    %2950 = vst [vmem:[#allocation17 + $0x2d8] sm:$0xff] %v2493
    %2951 = vst.msk [vmem:[#allocation17 + $0x2e0] sm:$0xff] %vm2860, %v2790
    %2952 = vst [vmem:[#allocation17 + $0x2e8] sm:$0xff] %v2497
    %2953 = vst [vmem:[#allocation17 + $0x2f0] sm:$0xff] %v2499
    %2954 = vst.msk [vmem:[#allocation17 + $0x2f8] sm:$0xff] %vm2860, %v2795
    %2955 = vst [vmem:[#allocation17 + $0x300] sm:$0xff] %v2503
    %2956 = vst [vmem:[#allocation17 + $0x308] sm:$0xff] %v2505
    %2957 = vst.msk [vmem:[#allocation17 + $0x310] sm:$0xff] %vm2860, %v2800
    %2958 = vst [vmem:[#allocation17 + $0x318] sm:$0xff] %v2509
    %2959 = vst [vmem:[#allocation17 + $0x320] sm:$0xff] %v2511
    %2960 = vst.msk [vmem:[#allocation17 + $0x328] sm:$0xff] %vm2860, %v2805
    %2961 = vst [vmem:[#allocation17 + $0x330] sm:$0xff] %v2515
    %2962 = vst [vmem:[#allocation17 + $0x338] sm:$0xff] %v2517
    %2963 = vst.msk [vmem:[#allocation17 + $0x340] sm:$0xff] %vm2860, %v2810
    %2964 = vst [vmem:[#allocation17 + $0x348] sm:$0xff] %v2521
    %2965 = vst [vmem:[#allocation17 + $0x350] sm:$0xff] %v2523
    %2966 = vst.msk [vmem:[#allocation17 + $0x358] sm:$0xff] %vm2860, %v2815
    %2967 = vst [vmem:[#allocation17 + $0x360] sm:$0xff] %v2527
    %2968 = vst [vmem:[#allocation17 + $0x368] sm:$0xff] %v2529
    %2969 = vst.msk [vmem:[#allocation17 + $0x370] sm:$0xff] %vm2860, %v2820
    %2970 = vst [vmem:[#allocation17 + $0x378] sm:$0xff] %v2533
    %2971 = vst [vmem:[#allocation17 + $0x380] sm:$0xff] %v2535
    %2972 = vst.msk [vmem:[#allocation17 + $0x388] sm:$0xff] %vm2860, %v2825
    %2973 = vst [vmem:[#allocation17 + $0x390] sm:$0xff] %v2539
    %2974 = vst [vmem:[#allocation17 + $0x398] sm:$0xff] %v2541
    %2975 = vst.msk [vmem:[#allocation17 + $0x3a0] sm:$0xff] %vm2860, %v2830
    %2976 = vst [vmem:[#allocation17 + $0x3a8] sm:$0xff] %v2545
    %2977 = vst [vmem:[#allocation17 + $0x3b0] sm:$0xff] %v2547
    %2978 = vst.msk [vmem:[#allocation17 + $0x3b8] sm:$0xff] %vm2860, %v2835
    %2979 = vst [vmem:[#allocation17 + $0x3c0] sm:$0xff] %v2551
    %2980 = vst [vmem:[#allocation17 + $0x3c8] sm:$0xff] %v2553
    %2981 = vst.msk [vmem:[#allocation17 + $0x3d0] sm:$0xff] %vm2860, %v2840
    %2982 = vst [vmem:[#allocation17 + $0x3d8] sm:$0xff] %v2557
    %2983 = vst [vmem:[#allocation17 + $0x3e0] sm:$0xff] %v2559
    %2984 = vst.msk [vmem:[#allocation17 + $0x3e8] sm:$0xff] %vm2860, %v2845
    %2985 = vst [vmem:[#allocation17 + $0x3f0] sm:$0xff] %v2563
    %2986 = vst [vmem:[#allocation17 + $0x3f8] sm:$0xff] %v2565
    %2987 = vst.msk [vmem:[#allocation17 + $0x400] sm:$0xff] %vm2860, %v2850
    %2988 = vst [vmem:[#allocation17 + $0x408] sm:$0xff] %v2569
    %2989 = vst [vmem:[#allocation17 + $0x410] sm:$0xff] %v2571
    %2990 = vst.msk [vmem:[#allocation17 + $0x418] sm:$0xff] %vm2860, %v2855
    %v2991 = vlaneseq
    %v2992 = vshrl.u32 %v2991, 7
    %v2993 = vsub.s32 0, %v2992
    %v2994 = vrot.slane %v1960, %v2993
    %v2995 = vlaneseq
    %v2996 = vshrl.u32 %v2995, 7
    %v2997 = vsub.s32 0, %v2996
    %v2998 = vrot.slane %v1962, %v2997
    %v2999 = vmul.f32 %v1964, %v2994
    %v3000 = vmul.f32 %v1965, %v2998
    %v3001 = vmul.f32 %v1966, %v2994
    %v3002 = vmul.f32 %v1967, %v2998
    %v3003 = vmul.f32 %v1968, %v2994
    %v3004 = vmul.f32 %v1969, %v2998
    %v3005 = vmul.f32 %v1970, %v2994
    %v3006 = vmul.f32 %v1971, %v2998
    %v3007 = vmul.f32 %v1972, %v2994
    %v3008 = vmul.f32 %v1973, %v2998
    %v3009 = vmul.f32 %v1974, %v2994
    %v3010 = vmul.f32 %v1975, %v2998
    %v3011 = vmul.f32 %v1976, %v2994
    %v3012 = vmul.f32 %v1977, %v2998
    %v3013 = vmul.f32 %v1978, %v2994
    %v3014 = vmul.f32 %v1979, %v2998
    %v3015 = vmul.f32 %v1980, %v2994
    %v3016 = vmul.f32 %v1981, %v2998
    %v3017 = vmul.f32 %v1982, %v2994
    %v3018 = vmul.f32 %v1983, %v2998
    %v3019 = vmul.f32 %v1984, %v2994
    %v3020 = vmul.f32 %v1985, %v2998
    %v3021 = vmul.f32 %v1986, %v2994
    %v3022 = vmul.f32 %v1987, %v2998
    %v3023 = vmul.f32 %v1988, %v2994
    %v3024 = vmul.f32 %v1989, %v2998
    %v3025 = vmul.f32 %v1990, %v2994
    %v3026 = vmul.f32 %v1991, %v2998
    %v3027 = vmul.f32 %v1992, %v2994
    %v3028 = vmul.f32 %v1993, %v2998
    %v3029 = vmul.f32 %v1994, %v2994
    %v3030 = vmul.f32 %v1995, %v2998
    %v3031 = vmul.f32 %v1996, %v2994
    %v3032 = vmul.f32 %v1997, %v2998
    %v3033 = vmul.f32 %v1998, %v2994
    %v3034 = vmul.f32 %v1999, %v2998
    %v3035 = vmul.f32 %v2000, %v2994
    %v3036 = vmul.f32 %v2001, %v2998
    %v3037 = vmul.f32 %v2002, %v2994
    %v3038 = vmul.f32 %v2003, %v2998
    %v3039 = vmul.f32 %v2004, %v2994
    %v3040 = vmul.f32 %v2005, %v2998
    %v3041 = vmul.f32 %v2006, %v2994
    %v3042 = vmul.f32 %v2007, %v2998
    %v3043 = vmul.f32 %v2008, %v2994
    %v3044 = vmul.f32 %v2009, %v2998
    %v3045 = vmul.f32 %v2010, %v2994
    %v3046 = vmul.f32 %v2011, %v2998
    %v3047 = vmul.f32 %v2012, %v2994
    %v3048 = vmul.f32 %v2013, %v2998
    %v3049 = vmul.f32 %v2014, %v2994
    %v3050 = vmul.f32 %v2015, %v2998
    %v3051 = vmul.f32 %v2016, %v2994
    %v3052 = vmul.f32 %v2017, %v2998
    %v3053 = vmul.f32 %v2018, %v2994
    %v3054 = vmul.f32 %v2019, %v2998
    %v3055 = vmul.f32 %v2020, %v2994
    %v3056 = vmul.f32 %v2021, %v2998
    %v3057 = vmul.f32 %v2022, %v2994
    %v3058 = vmul.f32 %v2023, %v2998
    %v3059 = vmul.f32 %v2024, %v2994
    %v3060 = vmul.f32 %v2025, %v2998
    %v3061 = vmul.f32 %v2026, %v2994
    %v3062 = vmul.f32 %v2027, %v2998
    %v3063 = vmul.f32 %v2028, %v2994
    %v3064 = vmul.f32 %v2029, %v2998
    %v3065 = vmul.f32 %v2030, %v2994
    %v3066 = vmul.f32 %v2031, %v2998
    %v3067 = vmul.f32 %v2032, %v2994
    %v3068 = vmul.f32 %v2033, %v2998
    %v3069 = vmul.f32 %v2034, %v2994
    %v3070 = vmul.f32 %v2035, %v2998
    %v3071 = vmul.f32 %v2036, %v2994
    %v3072 = vmul.f32 %v2037, %v2998
    %v3073 = vmul.f32 %v2038, %v2994
    %v3074 = vmul.f32 %v2039, %v2998
    %v3075 = vmul.f32 %v2040, %v2994
    %v3076 = vmul.f32 %v2041, %v2998
    %v3077 = vmul.f32 %v2042, %v2994
    %v3078 = vmul.f32 %v2043, %v2998
    %v3079 = vmul.f32 %v2044, %v2994
    %v3080 = vmul.f32 %v2045, %v2998
    %v3081 = vmul.f32 %v2046, %v2994
    %v3082 = vmul.f32 %v2047, %v2998
    %v3083 = vmul.f32 %v2048, %v2994
    %v3084 = vmul.f32 %v2049, %v2998
    %v3085 = vmul.f32 %v2050, %v2994
    %v3086 = vmul.f32 %v2051, %v2998
    %3087 = vmatprep.subr.mxu0 %v2098
    %3088 = vmatpush1.msra.mxu0 %v2097
    %3089 = vmatprep.subr.mxu0 %v2095
    %3090 = vmatpush1.msra.mxu0 %v2094
    %3091 = vmatprep.subr.mxu0 %v2092
    %3092 = vmatpush1.msra.mxu0 %v2091
    %3093 = vmatprep.subr.mxu0 %v2089
    %3094 = vmatpush1.msra.mxu0 %v2088
    %3095 = vmatprep.subr.mxu0 %v2086
    %3096 = vmatpush1.msra.mxu0 %v2085
    %3097 = vmatprep.subr.mxu0 %v2083
    %3098 = vmatpush1.msra.mxu0 %v2082
    %3099 = vmatprep.subr.mxu0 %v2080
    %3100 = vmatpush1.msra.mxu0 %v2079
    %3101 = vmatprep.subr.mxu0 %v2077
    %3102 = vmatpush1.msra.mxu0 %v2076
    %3103 = vmatprep.subr.mxu0 %v2074
    %3104 = vmatpush1.msra.mxu0 %v2073
    %3105 = vmatprep.subr.mxu0 %v2071
    %3106 = vmatpush1.msra.mxu0 %v2070
    %3107 = vmatprep.subr.mxu0 %v2068
    %3108 = vmatpush1.msra.mxu0 %v2067
    %3109 = vmatprep.subr.mxu0 %v2065
    %3110 = vmatpush1.msra.mxu0 %v2064
    %3111 = vmatprep.subr.mxu0 %v2062
    %3112 = vmatpush1.msra.mxu0 %v2061
    %3113 = vmatprep.subr.mxu0 %v2059
    %3114 = vmatpush1.msra.mxu0 %v2058
    %3115 = vmatprep.subr.mxu0 %v2056
    %3116 = vmatpush1.msra.mxu0 %v2055
    %3117 = vmatprep.subr.mxu0 %v2053
    %3118 = vmatpush1.msra.mxu0 %v2052
    %3119 = vmatprep.subr.mxu0 %v2146
    %3120 = vmatpush2.msra.mxu0 %v2145
    %3121 = vmatprep.subr.mxu0 %v2143
    %3122 = vmatpush2.msra.mxu0 %v2142
    %3123 = vmatprep.subr.mxu0 %v2140
    %3124 = vmatpush2.msra.mxu0 %v2139
    %3125 = vmatprep.subr.mxu0 %v2137
    %3126 = vmatpush2.msra.mxu0 %v2136
    %3127 = vmatprep.subr.mxu0 %v2134
    %3128 = vmatpush2.msra.mxu0 %v2133
    %3129 = vmatprep.subr.mxu0 %v2131
    %3130 = vmatpush2.msra.mxu0 %v2130
    %3131 = vmatprep.subr.mxu0 %v2128
    %3132 = vmatpush2.msra.mxu0 %v2127
    %3133 = vmatprep.subr.mxu0 %v2125
    %3134 = vmatpush2.msra.mxu0 %v2124
    %3135 = vmatprep.subr.mxu0 %v2122
    %3136 = vmatpush2.msra.mxu0 %v2121
    %3137 = vmatprep.subr.mxu0 %v2119
    %3138 = vmatpush2.msra.mxu0 %v2118
    %3139 = vmatprep.subr.mxu0 %v2116
    %3140 = vmatpush2.msra.mxu0 %v2115
    %3141 = vmatprep.subr.mxu0 %v2113
    %3142 = vmatpush2.msra.mxu0 %v2112
    %3143 = vmatprep.subr.mxu0 %v2110
    %3144 = vmatpush2.msra.mxu0 %v2109
    %3145 = vmatprep.subr.mxu0 %v2107
    %3146 = vmatpush2.msra.mxu0 %v2106
    %3147 = vmatprep.subr.mxu0 %v2104
    %3148 = vmatpush2.msra.mxu0 %v2103
    %3149 = vmatprep.subr.mxu0 %v2101
    %3150 = vmatpush2.msra.mxu0 %v2100
    %3151 = vmatprep.mubr.f32.mxu0 %v3000
    %3152 = vmatmul.mubr.f32.gmra.mxu0 %v2999
    %v3153 = vpop.f32.mrf.mxu0
    %v3154 = vadd.f32 0.0, %v3153
    %v3155 = vpop.f32.mrf.mxu0
    %v3156 = vadd.f32 0.0, %v3155
    %3157 = vmatprep.mubr.f32.mxu0 %v3002
    %3158 = vmatmul.mubr.f32.gmra.mxu0 %v3001
    %v3159 = vpop.f32.mrf.mxu0
    %v3160 = vadd.f32 0.0, %v3159
    %v3161 = vpop.f32.mrf.mxu0
    %v3162 = vadd.f32 0.0, %v3161
    %3163 = vmatprep.mubr.f32.mxu0 %v3004
    %3164 = vmatmul.mubr.f32.gmra.mxu0 %v3003
    %v3165 = vpop.f32.mrf.mxu0
    %v3166 = vadd.f32 0.0, %v3165
    %v3167 = vpop.f32.mrf.mxu0
    %v3168 = vadd.f32 0.0, %v3167
    %3169 = vmatprep.mubr.f32.mxu0 %v3006
    %3170 = vmatmul.mubr.f32.gmra.mxu0 %v3005
    %v3171 = vpop.f32.mrf.mxu0
    %v3172 = vadd.f32 0.0, %v3171
    %v3173 = vpop.f32.mrf.mxu0
    %v3174 = vadd.f32 0.0, %v3173
    %3175 = vmatprep.mubr.f32.mxu0 %v3008
    %3176 = vmatmul.mubr.f32.gmra.mxu0 %v3007
    %v3177 = vpop.f32.mrf.mxu0
    %v3178 = vadd.f32 0.0, %v3177
    %v3179 = vpop.f32.mrf.mxu0
    %v3180 = vadd.f32 0.0, %v3179
    %3181 = vmatprep.mubr.f32.mxu0 %v3010
    %3182 = vmatmul.mubr.f32.gmra.mxu0 %v3009
    %v3183 = vpop.f32.mrf.mxu0
    %v3184 = vadd.f32 0.0, %v3183
    %v3185 = vpop.f32.mrf.mxu0
    %v3186 = vadd.f32 0.0, %v3185
    %3187 = vmatprep.mubr.f32.mxu0 %v3012
    %3188 = vmatmul.mubr.f32.gmra.mxu0 %v3011
    %v3189 = vpop.f32.mrf.mxu0
    %v3190 = vadd.f32 0.0, %v3189
    %v3191 = vpop.f32.mrf.mxu0
    %v3192 = vadd.f32 0.0, %v3191
    %3193 = vmatprep.mubr.f32.mxu0 %v3014
    %3194 = vmatmul.mubr.f32.gmra.mxu0 %v3013
    %v3195 = vpop.f32.mrf.mxu0
    %v3196 = vadd.f32 0.0, %v3195
    %v3197 = vpop.f32.mrf.mxu0
    %v3198 = vadd.f32 0.0, %v3197
    %3199 = vmatprep.mubr.f32.mxu0 %v3016
    %3200 = vmatmul.mubr.f32.gmra.mxu0 %v3015
    %v3201 = vpop.f32.mrf.mxu0
    %v3202 = vadd.f32 0.0, %v3201
    %v3203 = vpop.f32.mrf.mxu0
    %v3204 = vadd.f32 0.0, %v3203
    %3205 = vmatprep.mubr.f32.mxu0 %v3018
    %3206 = vmatmul.mubr.f32.gmra.mxu0 %v3017
    %v3207 = vpop.f32.mrf.mxu0
    %v3208 = vadd.f32 0.0, %v3207
    %v3209 = vpop.f32.mrf.mxu0
    %v3210 = vadd.f32 0.0, %v3209
    %3211 = vmatprep.mubr.f32.mxu0 %v3020
    %3212 = vmatmul.mubr.f32.gmra.mxu0 %v3019
    %v3213 = vpop.f32.mrf.mxu0
    %v3214 = vadd.f32 0.0, %v3213
    %v3215 = vpop.f32.mrf.mxu0
    %v3216 = vadd.f32 0.0, %v3215
    %3217 = vmatprep.mubr.f32.mxu0 %v3022
    %3218 = vmatmul.mubr.f32.gmra.mxu0 %v3021
    %v3219 = vpop.f32.mrf.mxu0
    %v3220 = vadd.f32 0.0, %v3219
    %v3221 = vpop.f32.mrf.mxu0
    %v3222 = vadd.f32 0.0, %v3221
    %3223 = vmatprep.mubr.f32.mxu0 %v3024
    %3224 = vmatmul.mubr.f32.gmra.mxu0 %v3023
    %v3225 = vpop.f32.mrf.mxu0
    %v3226 = vadd.f32 0.0, %v3225
    %v3227 = vpop.f32.mrf.mxu0
    %v3228 = vadd.f32 0.0, %v3227
    %3229 = vmatprep.mubr.f32.mxu0 %v3026
    %3230 = vmatmul.mubr.f32.gmra.mxu0 %v3025
    %v3231 = vpop.f32.mrf.mxu0
    %v3232 = vadd.f32 0.0, %v3231
    %v3233 = vpop.f32.mrf.mxu0
    %v3234 = vadd.f32 0.0, %v3233
    %3235 = vmatprep.mubr.f32.mxu0 %v3028
    %3236 = vmatmul.mubr.f32.gmra.mxu0 %v3027
    %v3237 = vpop.f32.mrf.mxu0
    %v3238 = vadd.f32 0.0, %v3237
    %v3239 = vpop.f32.mrf.mxu0
    %v3240 = vadd.f32 0.0, %v3239
    %3241 = vmatprep.mubr.f32.mxu0 %v3030
    %3242 = vmatmul.mubr.f32.gmra.mxu0 %v3029
    %v3243 = vpop.f32.mrf.mxu0
    %v3244 = vadd.f32 0.0, %v3243
    %v3245 = vpop.f32.mrf.mxu0
    %v3246 = vadd.f32 0.0, %v3245
    %3247 = vmatprep.mubr.f32.mxu0 %v3032
    %3248 = vmatmul.mubr.f32.gmra.mxu0 %v3031
    %v3249 = vpop.f32.mrf.mxu0
    %v3250 = vadd.f32 0.0, %v3249
    %v3251 = vpop.f32.mrf.mxu0
    %v3252 = vadd.f32 0.0, %v3251
    %3253 = vmatprep.mubr.f32.mxu0 %v3034
    %3254 = vmatmul.mubr.f32.gmra.mxu0 %v3033
    %v3255 = vpop.f32.mrf.mxu0
    %v3256 = vadd.f32 0.0, %v3255
    %v3257 = vpop.f32.mrf.mxu0
    %v3258 = vadd.f32 0.0, %v3257
    %3259 = vmatprep.mubr.f32.mxu0 %v3036
    %3260 = vmatmul.mubr.f32.gmra.mxu0 %v3035
    %v3261 = vpop.f32.mrf.mxu0
    %v3262 = vadd.f32 0.0, %v3261
    %v3263 = vpop.f32.mrf.mxu0
    %v3264 = vadd.f32 0.0, %v3263
    %3265 = vmatprep.mubr.f32.mxu0 %v3038
    %3266 = vmatmul.mubr.f32.gmra.mxu0 %v3037
    %v3267 = vpop.f32.mrf.mxu0
    %v3268 = vadd.f32 0.0, %v3267
    %v3269 = vpop.f32.mrf.mxu0
    %v3270 = vadd.f32 0.0, %v3269
    %3271 = vmatprep.mubr.f32.mxu0 %v3040
    %3272 = vmatmul.mubr.f32.gmra.mxu0 %v3039
    %v3273 = vpop.f32.mrf.mxu0
    %v3274 = vadd.f32 0.0, %v3273
    %v3275 = vpop.f32.mrf.mxu0
    %v3276 = vadd.f32 0.0, %v3275
    %3277 = vmatprep.mubr.f32.mxu0 %v3042
    %3278 = vmatmul.mubr.f32.gmra.mxu0 %v3041
    %v3279 = vpop.f32.mrf.mxu0
    %v3280 = vadd.f32 0.0, %v3279
    %v3281 = vpop.f32.mrf.mxu0
    %v3282 = vadd.f32 0.0, %v3281
    %3283 = vmatprep.mubr.f32.mxu0 %v3044
    %3284 = vmatmul.mubr.f32.gmra.mxu0 %v3043
    %v3285 = vpop.f32.mrf.mxu0
    %v3286 = vadd.f32 0.0, %v3285
    %v3287 = vpop.f32.mrf.mxu0
    %v3288 = vadd.f32 0.0, %v3287
    %3289 = vmatprep.mubr.f32.mxu0 %v3046
    %3290 = vmatmul.mubr.f32.gmra.mxu0 %v3045
    %v3291 = vpop.f32.mrf.mxu0
    %v3292 = vadd.f32 0.0, %v3291
    %v3293 = vpop.f32.mrf.mxu0
    %v3294 = vadd.f32 0.0, %v3293
    %3295 = vmatprep.mubr.f32.mxu0 %v3048
    %3296 = vmatmul.mubr.f32.gmra.mxu0 %v3047
    %v3297 = vpop.f32.mrf.mxu0
    %v3298 = vadd.f32 0.0, %v3297
    %v3299 = vpop.f32.mrf.mxu0
    %v3300 = vadd.f32 0.0, %v3299
    %3301 = vmatprep.mubr.f32.mxu0 %v3050
    %3302 = vmatmul.mubr.f32.gmra.mxu0 %v3049
    %v3303 = vpop.f32.mrf.mxu0
    %v3304 = vadd.f32 0.0, %v3303
    %v3305 = vpop.f32.mrf.mxu0
    %v3306 = vadd.f32 0.0, %v3305
    %3307 = vmatprep.mubr.f32.mxu0 %v3052
    %3308 = vmatmul.mubr.f32.gmra.mxu0 %v3051
    %v3309 = vpop.f32.mrf.mxu0
    %v3310 = vadd.f32 0.0, %v3309
    %v3311 = vpop.f32.mrf.mxu0
    %v3312 = vadd.f32 0.0, %v3311
    %3313 = vmatprep.mubr.f32.mxu0 %v3054
    %3314 = vmatmul.mubr.f32.gmra.mxu0 %v3053
    %v3315 = vpop.f32.mrf.mxu0
    %v3316 = vadd.f32 0.0, %v3315
    %v3317 = vpop.f32.mrf.mxu0
    %v3318 = vadd.f32 0.0, %v3317
    %3319 = vmatprep.mubr.f32.mxu0 %v3056
    %3320 = vmatmul.mubr.f32.gmra.mxu0 %v3055
    %v3321 = vpop.f32.mrf.mxu0
    %v3322 = vadd.f32 0.0, %v3321
    %v3323 = vpop.f32.mrf.mxu0
    %v3324 = vadd.f32 0.0, %v3323
    %3325 = vmatprep.mubr.f32.mxu0 %v3058
    %3326 = vmatmul.mubr.f32.gmra.mxu0 %v3057
    %v3327 = vpop.f32.mrf.mxu0
    %v3328 = vadd.f32 0.0, %v3327
    %v3329 = vpop.f32.mrf.mxu0
    %v3330 = vadd.f32 0.0, %v3329
    %3331 = vmatprep.mubr.f32.mxu0 %v3060
    %3332 = vmatmul.mubr.f32.gmra.mxu0 %v3059
    %v3333 = vpop.f32.mrf.mxu0
    %v3334 = vadd.f32 0.0, %v3333
    %v3335 = vpop.f32.mrf.mxu0
    %v3336 = vadd.f32 0.0, %v3335
    %3337 = vmatprep.mubr.f32.mxu0 %v3062
    %3338 = vmatmul.mubr.f32.gmra.mxu0 %v3061
    %v3339 = vpop.f32.mrf.mxu0
    %v3340 = vadd.f32 0.0, %v3339
    %v3341 = vpop.f32.mrf.mxu0
    %v3342 = vadd.f32 0.0, %v3341
    %3343 = vmatprep.mubr.f32.mxu0 %v3064
    %3344 = vmatmul.mubr.f32.gmra.mxu0 %v3063
    %v3345 = vpop.f32.mrf.mxu0
    %v3346 = vadd.f32 0.0, %v3345
    %v3347 = vpop.f32.mrf.mxu0
    %v3348 = vadd.f32 0.0, %v3347
    %3349 = vmatprep.mubr.f32.mxu0 %v3066
    %3350 = vmatmul.mubr.f32.gmra.mxu0 %v3065
    %v3351 = vpop.f32.mrf.mxu0
    %v3352 = vadd.f32 0.0, %v3351
    %v3353 = vpop.f32.mrf.mxu0
    %v3354 = vadd.f32 0.0, %v3353
    %3355 = vmatprep.mubr.f32.mxu0 %v3068
    %3356 = vmatmul.mubr.f32.gmra.mxu0 %v3067
    %v3357 = vpop.f32.mrf.mxu0
    %v3358 = vadd.f32 0.0, %v3357
    %v3359 = vpop.f32.mrf.mxu0
    %v3360 = vadd.f32 0.0, %v3359
    %3361 = vmatprep.mubr.f32.mxu0 %v3070
    %3362 = vmatmul.mubr.f32.gmra.mxu0 %v3069
    %v3363 = vpop.f32.mrf.mxu0
    %v3364 = vadd.f32 0.0, %v3363
    %v3365 = vpop.f32.mrf.mxu0
    %v3366 = vadd.f32 0.0, %v3365
    %3367 = vmatprep.mubr.f32.mxu0 %v3072
    %3368 = vmatmul.mubr.f32.gmra.mxu0 %v3071
    %v3369 = vpop.f32.mrf.mxu0
    %v3370 = vadd.f32 0.0, %v3369
    %v3371 = vpop.f32.mrf.mxu0
    %v3372 = vadd.f32 0.0, %v3371
    %3373 = vmatprep.mubr.f32.mxu0 %v3074
    %3374 = vmatmul.mubr.f32.gmra.mxu0 %v3073
    %v3375 = vpop.f32.mrf.mxu0
    %v3376 = vadd.f32 0.0, %v3375
    %v3377 = vpop.f32.mrf.mxu0
    %v3378 = vadd.f32 0.0, %v3377
    %3379 = vmatprep.mubr.f32.mxu0 %v3076
    %3380 = vmatmul.mubr.f32.gmra.mxu0 %v3075
    %v3381 = vpop.f32.mrf.mxu0
    %v3382 = vadd.f32 0.0, %v3381
    %v3383 = vpop.f32.mrf.mxu0
    %v3384 = vadd.f32 0.0, %v3383
    %3385 = vmatprep.mubr.f32.mxu0 %v3078
    %3386 = vmatmul.mubr.f32.gmra.mxu0 %v3077
    %v3387 = vpop.f32.mrf.mxu0
    %v3388 = vadd.f32 0.0, %v3387
    %v3389 = vpop.f32.mrf.mxu0
    %v3390 = vadd.f32 0.0, %v3389
    %3391 = vmatprep.mubr.f32.mxu0 %v3080
    %3392 = vmatmul.mubr.f32.gmra.mxu0 %v3079
    %v3393 = vpop.f32.mrf.mxu0
    %v3394 = vadd.f32 0.0, %v3393
    %v3395 = vpop.f32.mrf.mxu0
    %v3396 = vadd.f32 0.0, %v3395
    %3397 = vmatprep.mubr.f32.mxu0 %v3082
    %3398 = vmatmul.mubr.f32.gmra.mxu0 %v3081
    %v3399 = vpop.f32.mrf.mxu0
    %v3400 = vadd.f32 0.0, %v3399
    %v3401 = vpop.f32.mrf.mxu0
    %v3402 = vadd.f32 0.0, %v3401
    %3403 = vmatprep.mubr.f32.mxu0 %v3084
    %3404 = vmatmul.mubr.f32.gmra.mxu0 %v3083
    %v3405 = vpop.f32.mrf.mxu0
    %v3406 = vadd.f32 0.0, %v3405
    %v3407 = vpop.f32.mrf.mxu0
    %v3408 = vadd.f32 0.0, %v3407
    %3409 = vmatprep.mubr.f32.mxu0 %v3086
    %3410 = vmatmul.mubr.f32.gmra.mxu0 %v3085
    %v3411 = vpop.f32.mrf.mxu0
    %v3412 = vadd.f32 0.0, %v3411
    %v3413 = vpop.f32.mrf.mxu0
    %v3414 = vadd.f32 0.0, %v3413
    %3415 = vdwg.mxu0
    %3416 = vmatprep.subr.mxu0 0.0
    %3417 = vmatpush1.msra.mxu0 %v2099
    %3418 = vmatprep.subr.mxu0 0.0
    %3419 = vmatpush1.msra.mxu0 %v2096
    %3420 = vmatprep.subr.mxu0 0.0
    %3421 = vmatpush1.msra.mxu0 %v2093
    %3422 = vmatprep.subr.mxu0 0.0
    %3423 = vmatpush1.msra.mxu0 %v2090
    %3424 = vmatprep.subr.mxu0 0.0
    %3425 = vmatpush1.msra.mxu0 %v2087
    %3426 = vmatprep.subr.mxu0 0.0
    %3427 = vmatpush1.msra.mxu0 %v2084
    %3428 = vmatprep.subr.mxu0 0.0
    %3429 = vmatpush1.msra.mxu0 %v2081
    %3430 = vmatprep.subr.mxu0 0.0
    %3431 = vmatpush1.msra.mxu0 %v2078
    %3432 = vmatprep.subr.mxu0 0.0
    %3433 = vmatpush1.msra.mxu0 %v2075
    %3434 = vmatprep.subr.mxu0 0.0
    %3435 = vmatpush1.msra.mxu0 %v2072
    %3436 = vmatprep.subr.mxu0 0.0
    %3437 = vmatpush1.msra.mxu0 %v2069
    %3438 = vmatprep.subr.mxu0 0.0
    %3439 = vmatpush1.msra.mxu0 %v2066
    %3440 = vmatprep.subr.mxu0 0.0
    %3441 = vmatpush1.msra.mxu0 %v2063
    %3442 = vmatprep.subr.mxu0 0.0
    %3443 = vmatpush1.msra.mxu0 %v2060
    %3444 = vmatprep.subr.mxu0 0.0
    %3445 = vmatpush1.msra.mxu0 %v2057
    %3446 = vmatprep.subr.mxu0 0.0
    %3447 = vmatpush1.msra.mxu0 %v2054
    %3448 = vmatprep.subr.mxu0 0.0
    %3449 = vmatpush2.msra.mxu0 %v2147
    %3450 = vmatprep.subr.mxu0 0.0
    %3451 = vmatpush2.msra.mxu0 %v2144
    %3452 = vmatprep.subr.mxu0 0.0
    %3453 = vmatpush2.msra.mxu0 %v2141
    %3454 = vmatprep.subr.mxu0 0.0
    %3455 = vmatpush2.msra.mxu0 %v2138
    %3456 = vmatprep.subr.mxu0 0.0
    %3457 = vmatpush2.msra.mxu0 %v2135
    %3458 = vmatprep.subr.mxu0 0.0
    %3459 = vmatpush2.msra.mxu0 %v2132
    %3460 = vmatprep.subr.mxu0 0.0
    %3461 = vmatpush2.msra.mxu0 %v2129
    %3462 = vmatprep.subr.mxu0 0.0
    %3463 = vmatpush2.msra.mxu0 %v2126
    %3464 = vmatprep.subr.mxu0 0.0
    %3465 = vmatpush2.msra.mxu0 %v2123
    %3466 = vmatprep.subr.mxu0 0.0
    %3467 = vmatpush2.msra.mxu0 %v2120
    %3468 = vmatprep.subr.mxu0 0.0
    %3469 = vmatpush2.msra.mxu0 %v2117
    %3470 = vmatprep.subr.mxu0 0.0
    %3471 = vmatpush2.msra.mxu0 %v2114
    %3472 = vmatprep.subr.mxu0 0.0
    %3473 = vmatpush2.msra.mxu0 %v2111
    %3474 = vmatprep.subr.mxu0 0.0
    %3475 = vmatpush2.msra.mxu0 %v2108
    %3476 = vmatprep.subr.mxu0 0.0
    %3477 = vmatpush2.msra.mxu0 %v2105
    %3478 = vmatprep.subr.mxu0 0.0
    %3479 = vmatpush2.msra.mxu0 %v2102
    %3480 = vmatprep.mubr.f32.mxu0 %v3000
    %3481 = vmatmul.mubr.f32.gmra.mxu0 %v2999
    %v3482 = vpop.f32.mrf.mxu0
    %v3483 = vadd.f32 0.0, %v3482
    %v3484 = vpop.f32.mrf.mxu0
    %3485 = vmatprep.mubr.f32.mxu0 %v3002
    %3486 = vmatmul.mubr.f32.gmra.mxu0 %v3001
    %v3487 = vpop.f32.mrf.mxu0
    %v3488 = vadd.f32 0.0, %v3487
    %v3489 = vpop.f32.mrf.mxu0
    %3490 = vmatprep.mubr.f32.mxu0 %v3004
    %3491 = vmatmul.mubr.f32.gmra.mxu0 %v3003
    %v3492 = vpop.f32.mrf.mxu0
    %v3493 = vadd.f32 0.0, %v3492
    %v3494 = vpop.f32.mrf.mxu0
    %3495 = vmatprep.mubr.f32.mxu0 %v3006
    %3496 = vmatmul.mubr.f32.gmra.mxu0 %v3005
    %v3497 = vpop.f32.mrf.mxu0
    %v3498 = vadd.f32 0.0, %v3497
    %v3499 = vpop.f32.mrf.mxu0
    %3500 = vmatprep.mubr.f32.mxu0 %v3008
    %3501 = vmatmul.mubr.f32.gmra.mxu0 %v3007
    %v3502 = vpop.f32.mrf.mxu0
    %v3503 = vadd.f32 0.0, %v3502
    %v3504 = vpop.f32.mrf.mxu0
    %3505 = vmatprep.mubr.f32.mxu0 %v3010
    %3506 = vmatmul.mubr.f32.gmra.mxu0 %v3009
    %v3507 = vpop.f32.mrf.mxu0
    %v3508 = vadd.f32 0.0, %v3507
    %v3509 = vpop.f32.mrf.mxu0
    %3510 = vmatprep.mubr.f32.mxu0 %v3012
    %3511 = vmatmul.mubr.f32.gmra.mxu0 %v3011
    %v3512 = vpop.f32.mrf.mxu0
    %v3513 = vadd.f32 0.0, %v3512
    %v3514 = vpop.f32.mrf.mxu0
    %3515 = vmatprep.mubr.f32.mxu0 %v3014
    %3516 = vmatmul.mubr.f32.gmra.mxu0 %v3013
    %v3517 = vpop.f32.mrf.mxu0
    %v3518 = vadd.f32 0.0, %v3517
    %v3519 = vpop.f32.mrf.mxu0
    %3520 = vmatprep.mubr.f32.mxu0 %v3016
    %3521 = vmatmul.mubr.f32.gmra.mxu0 %v3015
    %v3522 = vpop.f32.mrf.mxu0
    %v3523 = vadd.f32 0.0, %v3522
    %v3524 = vpop.f32.mrf.mxu0
    %3525 = vmatprep.mubr.f32.mxu0 %v3018
    %3526 = vmatmul.mubr.f32.gmra.mxu0 %v3017
    %v3527 = vpop.f32.mrf.mxu0
    %v3528 = vadd.f32 0.0, %v3527
    %v3529 = vpop.f32.mrf.mxu0
    %3530 = vmatprep.mubr.f32.mxu0 %v3020
    %3531 = vmatmul.mubr.f32.gmra.mxu0 %v3019
    %v3532 = vpop.f32.mrf.mxu0
    %v3533 = vadd.f32 0.0, %v3532
    %v3534 = vpop.f32.mrf.mxu0
    %3535 = vmatprep.mubr.f32.mxu0 %v3022
    %3536 = vmatmul.mubr.f32.gmra.mxu0 %v3021
    %v3537 = vpop.f32.mrf.mxu0
    %v3538 = vadd.f32 0.0, %v3537
    %v3539 = vpop.f32.mrf.mxu0
    %3540 = vmatprep.mubr.f32.mxu0 %v3024
    %3541 = vmatmul.mubr.f32.gmra.mxu0 %v3023
    %v3542 = vpop.f32.mrf.mxu0
    %v3543 = vadd.f32 0.0, %v3542
    %v3544 = vpop.f32.mrf.mxu0
    %3545 = vmatprep.mubr.f32.mxu0 %v3026
    %3546 = vmatmul.mubr.f32.gmra.mxu0 %v3025
    %v3547 = vpop.f32.mrf.mxu0
    %v3548 = vadd.f32 0.0, %v3547
    %v3549 = vpop.f32.mrf.mxu0
    %3550 = vmatprep.mubr.f32.mxu0 %v3028
    %3551 = vmatmul.mubr.f32.gmra.mxu0 %v3027
    %v3552 = vpop.f32.mrf.mxu0
    %v3553 = vadd.f32 0.0, %v3552
    %v3554 = vpop.f32.mrf.mxu0
    %3555 = vmatprep.mubr.f32.mxu0 %v3030
    %3556 = vmatmul.mubr.f32.gmra.mxu0 %v3029
    %v3557 = vpop.f32.mrf.mxu0
    %v3558 = vadd.f32 0.0, %v3557
    %v3559 = vpop.f32.mrf.mxu0
    %3560 = vmatprep.mubr.f32.mxu0 %v3032
    %3561 = vmatmul.mubr.f32.gmra.mxu0 %v3031
    %v3562 = vpop.f32.mrf.mxu0
    %v3563 = vadd.f32 0.0, %v3562
    %v3564 = vpop.f32.mrf.mxu0
    %3565 = vmatprep.mubr.f32.mxu0 %v3034
    %3566 = vmatmul.mubr.f32.gmra.mxu0 %v3033
    %v3567 = vpop.f32.mrf.mxu0
    %v3568 = vadd.f32 0.0, %v3567
    %v3569 = vpop.f32.mrf.mxu0
    %3570 = vmatprep.mubr.f32.mxu0 %v3036
    %3571 = vmatmul.mubr.f32.gmra.mxu0 %v3035
    %v3572 = vpop.f32.mrf.mxu0
    %v3573 = vadd.f32 0.0, %v3572
    %v3574 = vpop.f32.mrf.mxu0
    %3575 = vmatprep.mubr.f32.mxu0 %v3038
    %3576 = vmatmul.mubr.f32.gmra.mxu0 %v3037
    %v3577 = vpop.f32.mrf.mxu0
    %v3578 = vadd.f32 0.0, %v3577
    %v3579 = vpop.f32.mrf.mxu0
    %3580 = vmatprep.mubr.f32.mxu0 %v3040
    %3581 = vmatmul.mubr.f32.gmra.mxu0 %v3039
    %v3582 = vpop.f32.mrf.mxu0
    %v3583 = vadd.f32 0.0, %v3582
    %v3584 = vpop.f32.mrf.mxu0
    %3585 = vmatprep.mubr.f32.mxu0 %v3042
    %3586 = vmatmul.mubr.f32.gmra.mxu0 %v3041
    %v3587 = vpop.f32.mrf.mxu0
    %v3588 = vadd.f32 0.0, %v3587
    %v3589 = vpop.f32.mrf.mxu0
    %3590 = vmatprep.mubr.f32.mxu0 %v3044
    %3591 = vmatmul.mubr.f32.gmra.mxu0 %v3043
    %v3592 = vpop.f32.mrf.mxu0
    %v3593 = vadd.f32 0.0, %v3592
    %v3594 = vpop.f32.mrf.mxu0
    %3595 = vmatprep.mubr.f32.mxu0 %v3046
    %3596 = vmatmul.mubr.f32.gmra.mxu0 %v3045
    %v3597 = vpop.f32.mrf.mxu0
    %v3598 = vadd.f32 0.0, %v3597
    %v3599 = vpop.f32.mrf.mxu0
    %3600 = vmatprep.mubr.f32.mxu0 %v3048
    %3601 = vmatmul.mubr.f32.gmra.mxu0 %v3047
    %v3602 = vpop.f32.mrf.mxu0
    %v3603 = vadd.f32 0.0, %v3602
    %v3604 = vpop.f32.mrf.mxu0
    %3605 = vmatprep.mubr.f32.mxu0 %v3050
    %3606 = vmatmul.mubr.f32.gmra.mxu0 %v3049
    %v3607 = vpop.f32.mrf.mxu0
    %v3608 = vadd.f32 0.0, %v3607
    %v3609 = vpop.f32.mrf.mxu0
    %3610 = vmatprep.mubr.f32.mxu0 %v3052
    %3611 = vmatmul.mubr.f32.gmra.mxu0 %v3051
    %v3612 = vpop.f32.mrf.mxu0
    %v3613 = vadd.f32 0.0, %v3612
    %v3614 = vpop.f32.mrf.mxu0
    %3615 = vmatprep.mubr.f32.mxu0 %v3054
    %3616 = vmatmul.mubr.f32.gmra.mxu0 %v3053
    %v3617 = vpop.f32.mrf.mxu0
    %v3618 = vadd.f32 0.0, %v3617
    %v3619 = vpop.f32.mrf.mxu0
    %3620 = vmatprep.mubr.f32.mxu0 %v3056
    %3621 = vmatmul.mubr.f32.gmra.mxu0 %v3055
    %v3622 = vpop.f32.mrf.mxu0
    %v3623 = vadd.f32 0.0, %v3622
    %v3624 = vpop.f32.mrf.mxu0
    %3625 = vmatprep.mubr.f32.mxu0 %v3058
    %3626 = vmatmul.mubr.f32.gmra.mxu0 %v3057
    %v3627 = vpop.f32.mrf.mxu0
    %v3628 = vadd.f32 0.0, %v3627
    %v3629 = vpop.f32.mrf.mxu0
    %3630 = vmatprep.mubr.f32.mxu0 %v3060
    %3631 = vmatmul.mubr.f32.gmra.mxu0 %v3059
    %v3632 = vpop.f32.mrf.mxu0
    %v3633 = vadd.f32 0.0, %v3632
    %v3634 = vpop.f32.mrf.mxu0
    %3635 = vmatprep.mubr.f32.mxu0 %v3062
    %3636 = vmatmul.mubr.f32.gmra.mxu0 %v3061
    %v3637 = vpop.f32.mrf.mxu0
    %v3638 = vadd.f32 0.0, %v3637
    %v3639 = vpop.f32.mrf.mxu0
    %3640 = vmatprep.mubr.f32.mxu0 %v3064
    %3641 = vmatmul.mubr.f32.gmra.mxu0 %v3063
    %v3642 = vpop.f32.mrf.mxu0
    %v3643 = vadd.f32 0.0, %v3642
    %v3644 = vpop.f32.mrf.mxu0
    %3645 = vmatprep.mubr.f32.mxu0 %v3066
    %3646 = vmatmul.mubr.f32.gmra.mxu0 %v3065
    %v3647 = vpop.f32.mrf.mxu0
    %v3648 = vadd.f32 0.0, %v3647
    %v3649 = vpop.f32.mrf.mxu0
    %3650 = vmatprep.mubr.f32.mxu0 %v3068
    %3651 = vmatmul.mubr.f32.gmra.mxu0 %v3067
    %v3652 = vpop.f32.mrf.mxu0
    %v3653 = vadd.f32 0.0, %v3652
    %v3654 = vpop.f32.mrf.mxu0
    %3655 = vmatprep.mubr.f32.mxu0 %v3070
    %3656 = vmatmul.mubr.f32.gmra.mxu0 %v3069
    %v3657 = vpop.f32.mrf.mxu0
    %v3658 = vadd.f32 0.0, %v3657
    %v3659 = vpop.f32.mrf.mxu0
    %3660 = vmatprep.mubr.f32.mxu0 %v3072
    %3661 = vmatmul.mubr.f32.gmra.mxu0 %v3071
    %v3662 = vpop.f32.mrf.mxu0
    %v3663 = vadd.f32 0.0, %v3662
    %v3664 = vpop.f32.mrf.mxu0
    %3665 = vmatprep.mubr.f32.mxu0 %v3074
    %3666 = vmatmul.mubr.f32.gmra.mxu0 %v3073
    %v3667 = vpop.f32.mrf.mxu0
    %v3668 = vadd.f32 0.0, %v3667
    %v3669 = vpop.f32.mrf.mxu0
    %3670 = vmatprep.mubr.f32.mxu0 %v3076
    %3671 = vmatmul.mubr.f32.gmra.mxu0 %v3075
    %v3672 = vpop.f32.mrf.mxu0
    %v3673 = vadd.f32 0.0, %v3672
    %v3674 = vpop.f32.mrf.mxu0
    %3675 = vmatprep.mubr.f32.mxu0 %v3078
    %3676 = vmatmul.mubr.f32.gmra.mxu0 %v3077
    %v3677 = vpop.f32.mrf.mxu0
    %v3678 = vadd.f32 0.0, %v3677
    %v3679 = vpop.f32.mrf.mxu0
    %3680 = vmatprep.mubr.f32.mxu0 %v3080
    %3681 = vmatmul.mubr.f32.gmra.mxu0 %v3079
    %v3682 = vpop.f32.mrf.mxu0
    %v3683 = vadd.f32 0.0, %v3682
    %v3684 = vpop.f32.mrf.mxu0
    %3685 = vmatprep.mubr.f32.mxu0 %v3082
    %3686 = vmatmul.mubr.f32.gmra.mxu0 %v3081
    %v3687 = vpop.f32.mrf.mxu0
    %v3688 = vadd.f32 0.0, %v3687
    %v3689 = vpop.f32.mrf.mxu0
    %3690 = vmatprep.mubr.f32.mxu0 %v3084
    %3691 = vmatmul.mubr.f32.gmra.mxu0 %v3083
    %v3692 = vpop.f32.mrf.mxu0
    %v3693 = vadd.f32 0.0, %v3692
    %v3694 = vpop.f32.mrf.mxu0
    %3695 = vmatprep.mubr.f32.mxu0 %v3086
    %3696 = vmatmul.mubr.f32.gmra.mxu0 %v3085
    %v3697 = vpop.f32.mrf.mxu0
    %v3698 = vadd.f32 0.0, %v3697
    %v3699 = vpop.f32.mrf.mxu0
    %3700 = vdwg.mxu0
    %s3701 = scalar_lea.vmem [#allocation17], 1056
    %3702 = vst [vmem:[%s3701] sm:$0xff] %v3154
    %3703 = vst [vmem:[%s3701 + $0x8] sm:$0xff] %v3156
    %3704 = vst.msk [vmem:[%s3701 + $0x10] sm:$0xff] %vm2860, %v3483
    %3705 = vst [vmem:[%s3701 + $0x18] sm:$0xff] %v3160
    %3706 = vst [vmem:[%s3701 + $0x20] sm:$0xff] %v3162
    %3707 = vst.msk [vmem:[%s3701 + $0x28] sm:$0xff] %vm2860, %v3488
    %3708 = vst [vmem:[%s3701 + $0x30] sm:$0xff] %v3166
    %3709 = vst [vmem:[%s3701 + $0x38] sm:$0xff] %v3168
    %3710 = vst.msk [vmem:[%s3701 + $0x40] sm:$0xff] %vm2860, %v3493
    %3711 = vst [vmem:[%s3701 + $0x48] sm:$0xff] %v3172
    %3712 = vst [vmem:[%s3701 + $0x50] sm:$0xff] %v3174
    %3713 = vst.msk [vmem:[%s3701 + $0x58] sm:$0xff] %vm2860, %v3498
    %3714 = vst [vmem:[%s3701 + $0x60] sm:$0xff] %v3178
    %3715 = vst [vmem:[%s3701 + $0x68] sm:$0xff] %v3180
    %3716 = vst.msk [vmem:[%s3701 + $0x70] sm:$0xff] %vm2860, %v3503
    %3717 = vst [vmem:[%s3701 + $0x78] sm:$0xff] %v3184
    %3718 = vst [vmem:[%s3701 + $0x80] sm:$0xff] %v3186
    %3719 = vst.msk [vmem:[%s3701 + $0x88] sm:$0xff] %vm2860, %v3508
    %3720 = vst [vmem:[%s3701 + $0x90] sm:$0xff] %v3190
    %3721 = vst [vmem:[%s3701 + $0x98] sm:$0xff] %v3192
    %3722 = vst.msk [vmem:[%s3701 + $0xa0] sm:$0xff] %vm2860, %v3513
    %3723 = vst [vmem:[%s3701 + $0xa8] sm:$0xff] %v3196
    %3724 = vst [vmem:[%s3701 + $0xb0] sm:$0xff] %v3198
    %3725 = vst.msk [vmem:[%s3701 + $0xb8] sm:$0xff] %vm2860, %v3518
    %3726 = vst [vmem:[%s3701 + $0xc0] sm:$0xff] %v3202
    %3727 = vst [vmem:[%s3701 + $0xc8] sm:$0xff] %v3204
    %3728 = vst.msk [vmem:[%s3701 + $0xd0] sm:$0xff] %vm2860, %v3523
    %3729 = vst [vmem:[%s3701 + $0xd8] sm:$0xff] %v3208
    %3730 = vst [vmem:[%s3701 + $0xe0] sm:$0xff] %v3210
    %3731 = vst.msk [vmem:[%s3701 + $0xe8] sm:$0xff] %vm2860, %v3528
    %3732 = vst [vmem:[%s3701 + $0xf0] sm:$0xff] %v3214
    %3733 = vst [vmem:[%s3701 + $0xf8] sm:$0xff] %v3216
    %3734 = vst.msk [vmem:[%s3701 + $0x100] sm:$0xff] %vm2860, %v3533
    %3735 = vst [vmem:[%s3701 + $0x108] sm:$0xff] %v3220
    %3736 = vst [vmem:[%s3701 + $0x110] sm:$0xff] %v3222
    %3737 = vst.msk [vmem:[%s3701 + $0x118] sm:$0xff] %vm2860, %v3538
    %3738 = vst [vmem:[%s3701 + $0x120] sm:$0xff] %v3226
    %3739 = vst [vmem:[%s3701 + $0x128] sm:$0xff] %v3228
    %3740 = vst.msk [vmem:[%s3701 + $0x130] sm:$0xff] %vm2860, %v3543
    %3741 = vst [vmem:[%s3701 + $0x138] sm:$0xff] %v3232
    %3742 = vst [vmem:[%s3701 + $0x140] sm:$0xff] %v3234
    %3743 = vst.msk [vmem:[%s3701 + $0x148] sm:$0xff] %vm2860, %v3548
    %3744 = vst [vmem:[%s3701 + $0x150] sm:$0xff] %v3238
    %3745 = vst [vmem:[%s3701 + $0x158] sm:$0xff] %v3240
    %3746 = vst.msk [vmem:[%s3701 + $0x160] sm:$0xff] %vm2860, %v3553
    %3747 = vst [vmem:[%s3701 + $0x168] sm:$0xff] %v3244
    %3748 = vst [vmem:[%s3701 + $0x170] sm:$0xff] %v3246
    %3749 = vst.msk [vmem:[%s3701 + $0x178] sm:$0xff] %vm2860, %v3558
    %3750 = vst [vmem:[%s3701 + $0x180] sm:$0xff] %v3250
    %3751 = vst [vmem:[%s3701 + $0x188] sm:$0xff] %v3252
    %3752 = vst.msk [vmem:[%s3701 + $0x190] sm:$0xff] %vm2860, %v3563
    %3753 = vst [vmem:[%s3701 + $0x198] sm:$0xff] %v3256
    %3754 = vst [vmem:[%s3701 + $0x1a0] sm:$0xff] %v3258
    %3755 = vst.msk [vmem:[%s3701 + $0x1a8] sm:$0xff] %vm2860, %v3568
    %3756 = vst [vmem:[%s3701 + $0x1b0] sm:$0xff] %v3262
    %3757 = vst [vmem:[%s3701 + $0x1b8] sm:$0xff] %v3264
    %3758 = vst.msk [vmem:[%s3701 + $0x1c0] sm:$0xff] %vm2860, %v3573
    %3759 = vst [vmem:[%s3701 + $0x1c8] sm:$0xff] %v3268
    %3760 = vst [vmem:[%s3701 + $0x1d0] sm:$0xff] %v3270
    %3761 = vst.msk [vmem:[%s3701 + $0x1d8] sm:$0xff] %vm2860, %v3578
    %3762 = vst [vmem:[%s3701 + $0x1e0] sm:$0xff] %v3274
    %3763 = vst [vmem:[%s3701 + $0x1e8] sm:$0xff] %v3276
    %3764 = vst.msk [vmem:[%s3701 + $0x1f0] sm:$0xff] %vm2860, %v3583
    %3765 = vst [vmem:[%s3701 + $0x1f8] sm:$0xff] %v3280
    %3766 = vst [vmem:[%s3701 + $0x200] sm:$0xff] %v3282
    %3767 = vst.msk [vmem:[%s3701 + $0x208] sm:$0xff] %vm2860, %v3588
    %3768 = vst [vmem:[%s3701 + $0x210] sm:$0xff] %v3286
    %3769 = vst [vmem:[%s3701 + $0x218] sm:$0xff] %v3288
    %3770 = vst.msk [vmem:[%s3701 + $0x220] sm:$0xff] %vm2860, %v3593
    %3771 = vst [vmem:[%s3701 + $0x228] sm:$0xff] %v3292
    %3772 = vst [vmem:[%s3701 + $0x230] sm:$0xff] %v3294
    %3773 = vst.msk [vmem:[%s3701 + $0x238] sm:$0xff] %vm2860, %v3598
    %3774 = vst [vmem:[%s3701 + $0x240] sm:$0xff] %v3298
    %3775 = vst [vmem:[%s3701 + $0x248] sm:$0xff] %v3300
    %3776 = vst.msk [vmem:[%s3701 + $0x250] sm:$0xff] %vm2860, %v3603
    %3777 = vst [vmem:[%s3701 + $0x258] sm:$0xff] %v3304
    %3778 = vst [vmem:[%s3701 + $0x260] sm:$0xff] %v3306
    %3779 = vst.msk [vmem:[%s3701 + $0x268] sm:$0xff] %vm2860, %v3608
    %3780 = vst [vmem:[%s3701 + $0x270] sm:$0xff] %v3310
    %3781 = vst [vmem:[%s3701 + $0x278] sm:$0xff] %v3312
    %3782 = vst.msk [vmem:[%s3701 + $0x280] sm:$0xff] %vm2860, %v3613
    %3783 = vst [vmem:[%s3701 + $0x288] sm:$0xff] %v3316
    %3784 = vst [vmem:[%s3701 + $0x290] sm:$0xff] %v3318
    %3785 = vst.msk [vmem:[%s3701 + $0x298] sm:$0xff] %vm2860, %v3618
    %3786 = vst [vmem:[%s3701 + $0x2a0] sm:$0xff] %v3322
    %3787 = vst [vmem:[%s3701 + $0x2a8] sm:$0xff] %v3324
    %3788 = vst.msk [vmem:[%s3701 + $0x2b0] sm:$0xff] %vm2860, %v3623
    %3789 = vst [vmem:[%s3701 + $0x2b8] sm:$0xff] %v3328
    %3790 = vst [vmem:[%s3701 + $0x2c0] sm:$0xff] %v3330
    %3791 = vst.msk [vmem:[%s3701 + $0x2c8] sm:$0xff] %vm2860, %v3628
    %3792 = vst [vmem:[%s3701 + $0x2d0] sm:$0xff] %v3334
    %3793 = vst [vmem:[%s3701 + $0x2d8] sm:$0xff] %v3336
    %3794 = vst.msk [vmem:[%s3701 + $0x2e0] sm:$0xff] %vm2860, %v3633
    %3795 = vst [vmem:[%s3701 + $0x2e8] sm:$0xff] %v3340
    %3796 = vst [vmem:[%s3701 + $0x2f0] sm:$0xff] %v3342
    %3797 = vst.msk [vmem:[%s3701 + $0x2f8] sm:$0xff] %vm2860, %v3638
    %3798 = vst [vmem:[%s3701 + $0x300] sm:$0xff] %v3346
    %3799 = vst [vmem:[%s3701 + $0x308] sm:$0xff] %v3348
    %3800 = vst.msk [vmem:[%s3701 + $0x310] sm:$0xff] %vm2860, %v3643
    %3801 = vst [vmem:[%s3701 + $0x318] sm:$0xff] %v3352
    %3802 = vst [vmem:[%s3701 + $0x320] sm:$0xff] %v3354
    %3803 = vst.msk [vmem:[%s3701 + $0x328] sm:$0xff] %vm2860, %v3648
    %3804 = vst [vmem:[%s3701 + $0x330] sm:$0xff] %v3358
    %3805 = vst [vmem:[%s3701 + $0x338] sm:$0xff] %v3360
    %3806 = vst.msk [vmem:[%s3701 + $0x340] sm:$0xff] %vm2860, %v3653
    %3807 = vst [vmem:[%s3701 + $0x348] sm:$0xff] %v3364
    %3808 = vst [vmem:[%s3701 + $0x350] sm:$0xff] %v3366
    %3809 = vst.msk [vmem:[%s3701 + $0x358] sm:$0xff] %vm2860, %v3658
    %3810 = vst [vmem:[%s3701 + $0x360] sm:$0xff] %v3370
    %3811 = vst [vmem:[%s3701 + $0x368] sm:$0xff] %v3372
    %3812 = vst.msk [vmem:[%s3701 + $0x370] sm:$0xff] %vm2860, %v3663
    %3813 = vst [vmem:[%s3701 + $0x378] sm:$0xff] %v3376
    %3814 = vst [vmem:[%s3701 + $0x380] sm:$0xff] %v3378
    %3815 = vst.msk [vmem:[%s3701 + $0x388] sm:$0xff] %vm2860, %v3668
    %3816 = vst [vmem:[%s3701 + $0x390] sm:$0xff] %v3382
    %3817 = vst [vmem:[%s3701 + $0x398] sm:$0xff] %v3384
    %3818 = vst.msk [vmem:[%s3701 + $0x3a0] sm:$0xff] %vm2860, %v3673
    %3819 = vst [vmem:[%s3701 + $0x3a8] sm:$0xff] %v3388
    %3820 = vst [vmem:[%s3701 + $0x3b0] sm:$0xff] %v3390
    %3821 = vst.msk [vmem:[%s3701 + $0x3b8] sm:$0xff] %vm2860, %v3678
    %3822 = vst [vmem:[%s3701 + $0x3c0] sm:$0xff] %v3394
    %3823 = vst [vmem:[%s3701 + $0x3c8] sm:$0xff] %v3396
    %3824 = vst.msk [vmem:[%s3701 + $0x3d0] sm:$0xff] %vm2860, %v3683
    %3825 = vst [vmem:[%s3701 + $0x3d8] sm:$0xff] %v3400
    %3826 = vst [vmem:[%s3701 + $0x3e0] sm:$0xff] %v3402
    %3827 = vst.msk [vmem:[%s3701 + $0x3e8] sm:$0xff] %vm2860, %v3688
    %3828 = vst [vmem:[%s3701 + $0x3f0] sm:$0xff] %v3406
    %3829 = vst [vmem:[%s3701 + $0x3f8] sm:$0xff] %v3408
    %3830 = vst.msk [vmem:[%s3701 + $0x400] sm:$0xff] %vm2860, %v3693
    %3831 = vst [vmem:[%s3701 + $0x408] sm:$0xff] %v3412
    %3832 = vst [vmem:[%s3701 + $0x410] sm:$0xff] %v3414
    %3833 = vst.msk [vmem:[%s3701 + $0x418] sm:$0xff] %vm2860, %v3698
    // Predicated region
    $region90: #{mcm_forward.1} parent=1 // pred_check
      _
    $region91: #{mcm_forward.1} parent=1 // pred_check_branch
      %3835 = sbr.rel (0) target = $region93
    $region92: #{mcm_forward.1} parent=1 // pred_region
      %s3837 = ssub.s32 33792, 33792
      %3838 = vsyncadd [#allocation5], %s3837
      %s3839 = sshll.u32 [#allocation17], 4
      %s3840 = int_to_ptr.vmem [resolvable:$true] %s3839
      %3845 = dma.vmem_to_hbm [thread:$0]  %s3840, 33792, %s14, [#allocation5], 384, 384, 24
    $region93: #{mcm_forward.1} parent=1 // pred_fallthru
      _
    // Predicated region
    $region94: #{mcm_forward.1} parent=1 // pred_check
      _
    $region95: #{mcm_forward.1} parent=1 // pred_check_branch
      %3847 = sbr.rel (0) target = $region97
    $region96: #{mcm_forward.1} parent=1 // pred_region
      _
    $region97: #{mcm_forward.1} parent=1 // pred_fallthru
      _
    // Predicated region
    $region98: #{mcm_forward.1} parent=1 // pred_check
      _
    $region99: #{mcm_forward.1} parent=1 // pred_check_branch
      %3849 = sbr.rel (0) target = $region101
    $region100: #{mcm_forward.1} parent=1 // pred_region
      %3850 = dma.done [#allocation5], 33792
    $region101: #{mcm_forward.1} parent=1 // pred_fallthru
      _
    // Predicated region
    $region102: #{mcm_forward.1} parent=1 // pred_check
      _
    $region103: #{mcm_forward.1} parent=1 // pred_check_branch
      %3852 = sbr.rel (0) target = $region105
    $region104: #{mcm_forward.1} parent=1 // pred_region
      _
    $region105: #{mcm_forward.1} parent=1 // pred_fallthru
      _
    %3853 = vsyncpa [#allocation4], 1
    %3854 = vsyncpa [#allocation7], 1
    %3855 = vsyncpa [#allocation10], 1
    %3856 = vsyncpa [#allocation13], 1
    %3857 = vsyncpa [#allocation16], 1
    %3858 = vsyncpa [#allocation5], 1

</llo_original>
